<compile_context>
chip_gen: v6e
topology: v6e:2x2x1
jax: 0.10.0
libtpu: 0.0.40
codegen_flags: <defaults>
</compile_context>

<pallas_src>
import functools

import jax
import jax.numpy as jnp
from jax import lax
from jax.experimental import pallas as pl
from jax.experimental.pallas import tpu as pltpu

EPS = 1e-5        # torch BatchNorm1d default eps
C = 32            # hidden width == padded input-channel width (lane-aligned)

# ------------------------- packed parameter slab layout ----------------------
# (rows x 32 lanes, f32). All section offsets are multiples of 8 rows.
OFF_F1_W = 0                       # f1 conv: 3 taps x (32,32); only rows 0:3 of each tap used (Cin=3)
OFF_F1_B = 96                      # f1 bias row (section padded to 8 rows)
OFF_UNITS = 104                    # 5 SNetUnits follow
UNIT_ROWS = 208                    # 96 lin taps + 96 gate taps + 8 b_lin + 8 b_gate
U_LIN_W, U_GATE_W, U_LIN_B, U_GATE_B = 0, 96, 192, 200
OFF_O_W = OFF_UNITS + 5 * UNIT_ROWS     # 1144: o_layer weight, torch (3,32) in rows 0:3
OFF_O_B = OFF_O_W + C                   # 1176: o_layer bias in lanes 0:3 of this row
TOTAL_ROWS = OFF_O_B + 8                # 1184  (~148 KiB of parameters)


# ------------------------------ in-kernel helpers ----------------------------

def _sigmoid(x):
    # sigmoid(x) = 0.5*tanh(0.5*x) + 0.5 : one EUP op, no inf intermediates.
    return 0.5 * jnp.tanh(0.5 * x) + 0.5


def _elu(x):
    return jnp.where(x > 0.0, x, jnp.exp(jnp.minimum(x, 0.0)) - 1.0)


def _batchnorm(x):
    """BatchNorm1d(affine=False): batch stats over all (B*L) rows, per channel."""
    m = jnp.mean(x, axis=0, keepdims=True)            # (1, C)
    xc = x - m
    v = jnp.mean(xc * xc, axis=0, keepdims=True)      # centered two-pass variance
    return xc * lax.rsqrt(v + EPS)


def _shifted(x, first_row, last_row):
    """Per-sequence x[l-1] / x[l+1] (zero padded at sequence ends).

    x is (B*L, C) with rows batch-major; `first_row`/`last_row` mask rows at
    l == 0 / l == L-1 so shifts never leak across batch boundaries.
    """
    n, c = x.shape
    zero = jnp.zeros((1, c), jnp.float32)
    x_m1 = jnp.concatenate([zero, x[: n - 1, :]], axis=0)   # x[l-1]
    x_p1 = jnp.concatenate([x[1:, :], zero], axis=0)        # x[l+1]
    x_m1 = jnp.where(first_row, 0.0, x_m1)
    x_p1 = jnp.where(last_row, 0.0, x_p1)
    return x_m1, x_p1


def _conv_k3(x_m1, x0, x_p1, p_ref, w_off, b_row):
    """Conv1d(k=3, s=1, p=1) as three accumulating matmuls with per-tap weights."""
    y = jnp.dot(x_m1, p_ref[w_off: w_off + C, :],
                preferred_element_type=jnp.float32)
    y = y + jnp.dot(x0, p_ref[w_off + C: w_off + 2 * C, :],
                    preferred_element_type=jnp.float32)
    y = y + jnp.dot(x_p1, p_ref[w_off + 2 * C: w_off + 3 * C, :],
                    preferred_element_type=jnp.float32)
    return y + p_ref[b_row: b_row + 1, :]


# ---------------------------------- kernel -----------------------------------

def simplenet_kernel(x_ref, p_ref, out_ref, *, batch, seqlen):
    x = x_ref[...]                               # (B*L, 32); channels >= 3 are zero
    n = batch * seqlen

    # Hoisted batch-boundary masks (reused by all 6 conv layers).
    row = lax.broadcasted_iota(jnp.int32, (n, C), 0)
    first_row = row == 0
    last_row = row == seqlen - 1
    for b in range(1, batch):
        first_row = jnp.logical_or(first_row, row == b * seqlen)
        last_row = jnp.logical_or(last_row, row == b * seqlen + seqlen - 1)

    # f1: Conv1d(3 -> 32) + ELU
    xm1, xp1 = _shifted(x, first_row, last_row)
    h = _elu(_conv_k3(xm1, x, xp1, p_ref, OFF_F1_W, OFF_F1_B))

    # f2..f6: SNetUnit = conv(bnorm(h)) with GLU gate (lin/gate weights split).
    for i in range(5):
        base = OFF_UNITS + i * UNIT_ROWS
        xb = _batchnorm(h)
        bm1, bp1 = _shifted(xb, first_row, last_row)
        lin = _conv_k3(bm1, xb, bp1, p_ref, base + U_LIN_W, base + U_LIN_B)
        gate = _conv_k3(bm1, xb, bp1, p_ref, base + U_GATE_W, base + U_GATE_B)
        h = lin * _sigmoid(gate)

    # o_layer + final reduction, refactored so the MXU output is 32 lanes wide:
    #   sum(x * (h @ Wo^T + bo)) == sum(h * (x @ Wo)) + sum(x * bo)
    u = jnp.dot(x, p_ref[OFF_O_W: OFF_O_W + C, :],
                preferred_element_type=jnp.float32)            # (B*L, 32)
    prod = h * u + x * p_ref[OFF_O_B: OFF_O_B + 1, :]
    per_b = jnp.concatenate(
        [jnp.sum(prod[b * seqlen:(b + 1) * seqlen, :], axis=0, keepdims=True)
         for b in range(batch)], axis=0)                       # (B, 32)
    out_ref[...] = jnp.sum(per_b, axis=1, keepdims=True)       # (B, 1)


# --------------------------------- wrapper -----------------------------------

@jax.jit
def simplenet_forward(x, slab):
    batch, seqlen, cin = x.shape
    n = batch * seqlen
    # Pad input channels to the 32-lane working width (zeros -> exact result).
    x_flat = jnp.pad(x, ((0, 0), (0, 0), (0, C - cin))).reshape(n, C)

    n_dots = 3 + 5 * 6 + 1
    cost = pl.CostEstimate(
        flops=2 * n * C * C * n_dots + 30 * n * C,
        transcendentals=6 * n * C,
        bytes_accessed=4 * (n * C + TOTAL_ROWS * C + batch),
    )
    vmem = pl.BlockSpec(memory_space=pltpu.MemorySpace.VMEM)
    out = pl.pallas_call(
        functools.partial(simplenet_kernel, batch=batch, seqlen=seqlen),
        out_shape=jax.ShapeDtypeStruct((batch, 1), jnp.float32),
        in_specs=[vmem, vmem],
        out_specs=vmem,
        cost_estimate=cost,
    )(x_flat, slab)
    return out[:, 0]


# --------------------------- deterministic parameters ------------------------

def init_params(key):
    """Build the packed parameter slab (layout at the OFF_* constants).

    torch -> slab mapping (if porting real weights):
      Conv1d weight W[o, c, k]   -> tap-k block rows = c, cols = o  (W[:, :, k].T)
      SNetUnit conv out channels 0:32 -> lin half, 32:64 -> gate half
      Linear(32, 3) weight (3,32) -> rows 0:3 of the o_layer block (as stored)
    """
    ks = jax.random.split(key, 14)

    def u(k, shape, fan_in):
        bound = 1.0 / float(fan_in) ** 0.5
        return jax.random.uniform(k, shape, jnp.float32, -bound, bound)

    slab = jnp.zeros((TOTAL_ROWS, C), jnp.float32)

    # f1: Conv1d(3, 32, 3, padding=1)
    w1 = u(ks[0], (3, 3, C), 3 * 3)                      # [tap, cin, cout]
    for k in range(3):
        slab = slab.at[OFF_F1_W + C * k: OFF_F1_W + C * k + 3, :].set(w1[k])
    slab = slab.at[OFF_F1_B, :].set(u(ks[1], (C,), 3 * 3))

    # f2..f6: SNetUnit conv(32 -> 64), split per tap into lin / gate halves.
    for i in range(5):
        w = u(ks[2 + 2 * i], (3, C, 2 * C), 3 * C)       # [tap, cin, cout]
        b = u(ks[3 + 2 * i], (2 * C,), 3 * C)
        base = OFF_UNITS + i * UNIT_ROWS
        for k in range(3):
            slab = slab.at[base + U_LIN_W + C * k:
                           base + U_LIN_W + C * (k + 1), :].set(w[k, :, :C])
            slab = slab.at[base + U_GATE_W + C * k:
                           base + U_GATE_W + C * (k + 1), :].set(w[k, :, C:])
        slab = slab.at[base + U_LIN_B, :].set(b[:C])
        slab = slab.at[base + U_GATE_B, :].set(b[C:])

    # o_layer: Linear(32, 3)
    slab = slab.at[OFF_O_W: OFF_O_W + 3, :].set(u(ks[12], (3, C), C))
    slab = slab.at[OFF_O_B, :3].set(u(ks[13], (3,), C))
    return slab


if __name__ == "__main__":
    key = jax.random.PRNGKey(0)
    kx, kp = jax.random.split(key)

    B, L = 2, 16                        # x: (batch, seq, 3) as in torch forward(x)
    x = jax.random.normal(kx, (B, L, 3), jnp.float32)
    slab = init_params(kp)

    out = simplenet_forward(x, slab)
    jax.block_until_ready(out)
    assert out.shape == (B,) and out.dtype == jnp.float32
    print("KERNEL_OK")
</pallas_src>

<mosaic_0001>
module attributes {stable_mosaic.version = 11 : i64} {
  func.func @simplenet_kernel(%arg0: memref<32x32xf32, #tpu.memory_space<vmem>>, %arg1: memref<1184x32xf32, #tpu.memory_space<vmem>>, %arg2: memref<2x1xf32, #tpu.memory_space<vmem>>) attributes {dimension_semantics = [], scalar_prefetch = 0 : i64, scratch_operands = 0 : i64, tpu.core_type = #tpu.core_type<tc>} {
    %c0 = arith.constant 0 : index
    %c0_0 = arith.constant 0 : index
    %0 = vector.load %arg0[%c0, %c0_0] : memref<32x32xf32, #tpu.memory_space<vmem>>, vector<32x32xf32>
    %1 = tpu.iota {dimensions = array<i32: 0>} : vector<32x32xi32>
    %c0_i32 = arith.constant 0 : i32
    %2 = vector.broadcast %c0_i32 : i32 to vector<32x32xi32>
    %3 = arith.cmpi eq, %1, %2 : vector<32x32xi32>
    %c15_i32 = arith.constant 15 : i32
    %4 = vector.broadcast %c15_i32 : i32 to vector<32x32xi32>
    %5 = arith.cmpi eq, %1, %4 : vector<32x32xi32>
    %c16_i32 = arith.constant 16 : i32
    %6 = vector.broadcast %c16_i32 : i32 to vector<32x32xi32>
    %7 = arith.cmpi eq, %1, %6 : vector<32x32xi32>
    %8 = arith.ori %3, %7 : vector<32x32xi1>
    %c31_i32 = arith.constant 31 : i32
    %9 = vector.broadcast %c31_i32 : i32 to vector<32x32xi32>
    %10 = arith.cmpi eq, %1, %9 : vector<32x32xi32>
    %11 = arith.ori %5, %10 : vector<32x32xi1>
    %cst = arith.constant 0.000000e+00 : f32
    %12 = vector.broadcast %cst : f32 to vector<1x32xf32>
    %13 = vector.extract_strided_slice %0 {offsets = [0, 0], sizes = [31, 32], strides = [1, 1]} : vector<32x32xf32> to vector<31x32xf32>
    %14 = tpu.concatenate %12, %13 in 0 : vector<1x32xf32>, vector<31x32xf32> -> vector<32x32xf32>
    %15 = vector.extract_strided_slice %0 {offsets = [1, 0], sizes = [31, 32], strides = [1, 1]} : vector<32x32xf32> to vector<31x32xf32>
    %16 = tpu.concatenate %15, %12 in 0 : vector<31x32xf32>, vector<1x32xf32> -> vector<32x32xf32>
    %cst_1 = arith.constant 0.000000e+00 : f32
    %17 = vector.broadcast %cst_1 : f32 to vector<32x32xf32>
    %18 = arith.select %8, %17, %14 : vector<32x32xi1>, vector<32x32xf32>
    %cst_2 = arith.constant 0.000000e+00 : f32
    %19 = vector.broadcast %cst_2 : f32 to vector<32x32xf32>
    %20 = arith.select %11, %19, %16 : vector<32x32xi1>, vector<32x32xf32>
    %c0_3 = arith.constant 0 : index
    %c0_4 = arith.constant 0 : index
    %21 = vector.load %arg1[%c0_3, %c0_4] : memref<1184x32xf32, #tpu.memory_space<vmem>>, vector<32x32xf32>
    %cst_5 = arith.constant dense<0.000000e+00> : vector<32x32xf32>
    %22 = tpu.matmul %18, %21, %cst_5 {dimension_numbers = #tpu.dot_dimension_numbers<[1], [0], [0], [1], [0, 0, 1, 1], [], []>} : vector<32x32xf32>, vector<32x32xf32>, vector<32x32xf32> -> vector<32x32xf32>
    %c32 = arith.constant 32 : index
    %c0_6 = arith.constant 0 : index
    %23 = vector.load %arg1[%c32, %c0_6] : memref<1184x32xf32, #tpu.memory_space<vmem>>, vector<32x32xf32>
    %cst_7 = arith.constant dense<0.000000e+00> : vector<32x32xf32>
    %24 = tpu.matmul %0, %23, %cst_7 {dimension_numbers = #tpu.dot_dimension_numbers<[1], [0], [0], [1], [0, 0, 1, 1], [], []>} : vector<32x32xf32>, vector<32x32xf32>, vector<32x32xf32> -> vector<32x32xf32>
    %25 = arith.addf %22, %24 : vector<32x32xf32>
    %c64 = arith.constant 64 : index
    %c0_8 = arith.constant 0 : index
    %26 = vector.load %arg1[%c64, %c0_8] : memref<1184x32xf32, #tpu.memory_space<vmem>>, vector<32x32xf32>
    %cst_9 = arith.constant dense<0.000000e+00> : vector<32x32xf32>
    %27 = tpu.matmul %20, %26, %cst_9 {dimension_numbers = #tpu.dot_dimension_numbers<[1], [0], [0], [1], [0, 0, 1, 1], [], []>} : vector<32x32xf32>, vector<32x32xf32>, vector<32x32xf32> -> vector<32x32xf32>
    %28 = arith.addf %25, %27 : vector<32x32xf32>
    %c96 = arith.constant 96 : index
    %c0_10 = arith.constant 0 : index
    %29 = vector.load %arg1[%c96, %c0_10] : memref<1184x32xf32, #tpu.memory_space<vmem>>, vector<1x32xf32>
    %30 = vector.broadcast %29 : vector<1x32xf32> to vector<32x32xf32>
    %31 = arith.addf %28, %30 : vector<32x32xf32>
    %cst_11 = arith.constant 0.000000e+00 : f32
    %32 = vector.broadcast %cst_11 : f32 to vector<32x32xf32>
    %33 = arith.cmpf ogt, %31, %32 : vector<32x32xf32>
    %cst_12 = arith.constant 0.000000e+00 : f32
    %34 = vector.broadcast %cst_12 : f32 to vector<32x32xf32>
    %35 = arith.minimumf %31, %34 : vector<32x32xf32>
    %36 = math.exp %35 : vector<32x32xf32>
    %cst_13 = arith.constant 1.000000e+00 : f32
    %37 = vector.broadcast %cst_13 : f32 to vector<32x32xf32>
    %38 = arith.subf %36, %37 : vector<32x32xf32>
    %39 = arith.select %33, %31, %38 : vector<32x32xi1>, vector<32x32xf32>
    %cst_14 = arith.constant dense<0.000000e+00> : vector<32xf32>
    %40 = vector.multi_reduction <add>, %39, %cst_14 [0] : vector<32x32xf32> to vector<32xf32>
    %41 = vector.shape_cast %40 : vector<32xf32> to vector<1x32xf32>
    %cst_15 = arith.constant 3.200000e+01 : f32
    %42 = vector.broadcast %cst_15 : f32 to vector<1x32xf32>
    %43 = arith.divf %41, %42 : vector<1x32xf32>
    %44 = vector.broadcast %43 : vector<1x32xf32> to vector<32x32xf32>
    %45 = arith.subf %39, %44 : vector<32x32xf32>
    %46 = arith.mulf %45, %45 : vector<32x32xf32>
    %cst_16 = arith.constant dense<0.000000e+00> : vector<32xf32>
    %47 = vector.multi_reduction <add>, %46, %cst_16 [0] : vector<32x32xf32> to vector<32xf32>
    %48 = vector.shape_cast %47 : vector<32xf32> to vector<1x32xf32>
    %cst_17 = arith.constant 3.200000e+01 : f32
    %49 = vector.broadcast %cst_17 : f32 to vector<1x32xf32>
    %50 = arith.divf %48, %49 : vector<1x32xf32>
    %cst_18 = arith.constant 9.99999974E-6 : f32
    %51 = vector.broadcast %cst_18 : f32 to vector<1x32xf32>
    %52 = arith.addf %50, %51 : vector<1x32xf32>
    %53 = math.rsqrt %52 : vector<1x32xf32>
    %54 = vector.broadcast %53 : vector<1x32xf32> to vector<32x32xf32>
    %55 = arith.mulf %45, %54 : vector<32x32xf32>
    %cst_19 = arith.constant 0.000000e+00 : f32
    %56 = vector.broadcast %cst_19 : f32 to vector<1x32xf32>
    %57 = vector.extract_strided_slice %55 {offsets = [0, 0], sizes = [31, 32], strides = [1, 1]} : vector<32x32xf32> to vector<31x32xf32>
    %58 = tpu.concatenate %56, %57 in 0 : vector<1x32xf32>, vector<31x32xf32> -> vector<32x32xf32>
    %59 = vector.extract_strided_slice %55 {offsets = [1, 0], sizes = [31, 32], strides = [1, 1]} : vector<32x32xf32> to vector<31x32xf32>
    %60 = tpu.concatenate %59, %56 in 0 : vector<31x32xf32>, vector<1x32xf32> -> vector<32x32xf32>
    %cst_20 = arith.constant 0.000000e+00 : f32
    %61 = vector.broadcast %cst_20 : f32 to vector<32x32xf32>
    %62 = arith.select %8, %61, %58 : vector<32x32xi1>, vector<32x32xf32>
    %cst_21 = arith.constant 0.000000e+00 : f32
    %63 = vector.broadcast %cst_21 : f32 to vector<32x32xf32>
    %64 = arith.select %11, %63, %60 : vector<32x32xi1>, vector<32x32xf32>
    %c104 = arith.constant 104 : index
    %c0_22 = arith.constant 0 : index
    %65 = vector.load %arg1[%c104, %c0_22] : memref<1184x32xf32, #tpu.memory_space<vmem>>, vector<32x32xf32>
    %cst_23 = arith.constant dense<0.000000e+00> : vector<32x32xf32>
    %66 = tpu.matmul %62, %65, %cst_23 {dimension_numbers = #tpu.dot_dimension_numbers<[1], [0], [0], [1], [0, 0, 1, 1], [], []>} : vector<32x32xf32>, vector<32x32xf32>, vector<32x32xf32> -> vector<32x32xf32>
    %c136 = arith.constant 136 : index
    %c0_24 = arith.constant 0 : index
    %67 = vector.load %arg1[%c136, %c0_24] : memref<1184x32xf32, #tpu.memory_space<vmem>>, vector<32x32xf32>
    %cst_25 = arith.constant dense<0.000000e+00> : vector<32x32xf32>
    %68 = tpu.matmul %55, %67, %cst_25 {dimension_numbers = #tpu.dot_dimension_numbers<[1], [0], [0], [1], [0, 0, 1, 1], [], []>} : vector<32x32xf32>, vector<32x32xf32>, vector<32x32xf32> -> vector<32x32xf32>
    %69 = arith.addf %66, %68 : vector<32x32xf32>
    %c168 = arith.constant 168 : index
    %c0_26 = arith.constant 0 : index
    %70 = vector.load %arg1[%c168, %c0_26] : memref<1184x32xf32, #tpu.memory_space<vmem>>, vector<32x32xf32>
    %cst_27 = arith.constant dense<0.000000e+00> : vector<32x32xf32>
    %71 = tpu.matmul %64, %70, %cst_27 {dimension_numbers = #tpu.dot_dimension_numbers<[1], [0], [0], [1], [0, 0, 1, 1], [], []>} : vector<32x32xf32>, vector<32x32xf32>, vector<32x32xf32> -> vector<32x32xf32>
    %72 = arith.addf %69, %71 : vector<32x32xf32>
    %c296 = arith.constant 296 : index
    %c0_28 = arith.constant 0 : index
    %73 = vector.load %arg1[%c296, %c0_28] : memref<1184x32xf32, #tpu.memory_space<vmem>>, vector<1x32xf32>
    %74 = vector.broadcast %73 : vector<1x32xf32> to vector<32x32xf32>
    %75 = arith.addf %72, %74 : vector<32x32xf32>
    %c200 = arith.constant 200 : index
    %c0_29 = arith.constant 0 : index
    %76 = vector.load %arg1[%c200, %c0_29] : memref<1184x32xf32, #tpu.memory_space<vmem>>, vector<32x32xf32>
    %cst_30 = arith.constant dense<0.000000e+00> : vector<32x32xf32>
    %77 = tpu.matmul %62, %76, %cst_30 {dimension_numbers = #tpu.dot_dimension_numbers<[1], [0], [0], [1], [0, 0, 1, 1], [], []>} : vector<32x32xf32>, vector<32x32xf32>, vector<32x32xf32> -> vector<32x32xf32>
    %c232 = arith.constant 232 : index
    %c0_31 = arith.constant 0 : index
    %78 = vector.load %arg1[%c232, %c0_31] : memref<1184x32xf32, #tpu.memory_space<vmem>>, vector<32x32xf32>
    %cst_32 = arith.constant dense<0.000000e+00> : vector<32x32xf32>
    %79 = tpu.matmul %55, %78, %cst_32 {dimension_numbers = #tpu.dot_dimension_numbers<[1], [0], [0], [1], [0, 0, 1, 1], [], []>} : vector<32x32xf32>, vector<32x32xf32>, vector<32x32xf32> -> vector<32x32xf32>
    %80 = arith.addf %77, %79 : vector<32x32xf32>
    %c264 = arith.constant 264 : index
    %c0_33 = arith.constant 0 : index
    %81 = vector.load %arg1[%c264, %c0_33] : memref<1184x32xf32, #tpu.memory_space<vmem>>, vector<32x32xf32>
    %cst_34 = arith.constant dense<0.000000e+00> : vector<32x32xf32>
    %82 = tpu.matmul %64, %81, %cst_34 {dimension_numbers = #tpu.dot_dimension_numbers<[1], [0], [0], [1], [0, 0, 1, 1], [], []>} : vector<32x32xf32>, vector<32x32xf32>, vector<32x32xf32> -> vector<32x32xf32>
    %83 = arith.addf %80, %82 : vector<32x32xf32>
    %c304 = arith.constant 304 : index
    %c0_35 = arith.constant 0 : index
    %84 = vector.load %arg1[%c304, %c0_35] : memref<1184x32xf32, #tpu.memory_space<vmem>>, vector<1x32xf32>
    %85 = vector.broadcast %84 : vector<1x32xf32> to vector<32x32xf32>
    %86 = arith.addf %83, %85 : vector<32x32xf32>
    %cst_36 = arith.constant 5.000000e-01 : f32
    %87 = vector.broadcast %cst_36 : f32 to vector<32x32xf32>
    %88 = arith.mulf %87, %86 : vector<32x32xf32>
    %89 = math.tanh %88 : vector<32x32xf32>
    %cst_37 = arith.constant 5.000000e-01 : f32
    %90 = vector.broadcast %cst_37 : f32 to vector<32x32xf32>
    %91 = arith.mulf %90, %89 : vector<32x32xf32>
    %cst_38 = arith.constant 5.000000e-01 : f32
    %92 = vector.broadcast %cst_38 : f32 to vector<32x32xf32>
    %93 = arith.addf %91, %92 : vector<32x32xf32>
    %94 = arith.mulf %75, %93 : vector<32x32xf32>
    %cst_39 = arith.constant dense<0.000000e+00> : vector<32xf32>
    %95 = vector.multi_reduction <add>, %94, %cst_39 [0] : vector<32x32xf32> to vector<32xf32>
    %96 = vector.shape_cast %95 : vector<32xf32> to vector<1x32xf32>
    %cst_40 = arith.constant 3.200000e+01 : f32
    %97 = vector.broadcast %cst_40 : f32 to vector<1x32xf32>
    %98 = arith.divf %96, %97 : vector<1x32xf32>
    %99 = vector.broadcast %98 : vector<1x32xf32> to vector<32x32xf32>
    %100 = arith.subf %94, %99 : vector<32x32xf32>
    %101 = arith.mulf %100, %100 : vector<32x32xf32>
    %cst_41 = arith.constant dense<0.000000e+00> : vector<32xf32>
    %102 = vector.multi_reduction <add>, %101, %cst_41 [0] : vector<32x32xf32> to vector<32xf32>
    %103 = vector.shape_cast %102 : vector<32xf32> to vector<1x32xf32>
    %cst_42 = arith.constant 3.200000e+01 : f32
    %104 = vector.broadcast %cst_42 : f32 to vector<1x32xf32>
    %105 = arith.divf %103, %104 : vector<1x32xf32>
    %cst_43 = arith.constant 9.99999974E-6 : f32
    %106 = vector.broadcast %cst_43 : f32 to vector<1x32xf32>
    %107 = arith.addf %105, %106 : vector<1x32xf32>
    %108 = math.rsqrt %107 : vector<1x32xf32>
    %109 = vector.broadcast %108 : vector<1x32xf32> to vector<32x32xf32>
    %110 = arith.mulf %100, %109 : vector<32x32xf32>
    %cst_44 = arith.constant 0.000000e+00 : f32
    %111 = vector.broadcast %cst_44 : f32 to vector<1x32xf32>
    %112 = vector.extract_strided_slice %110 {offsets = [0, 0], sizes = [31, 32], strides = [1, 1]} : vector<32x32xf32> to vector<31x32xf32>
    %113 = tpu.concatenate %111, %112 in 0 : vector<1x32xf32>, vector<31x32xf32> -> vector<32x32xf32>
    %114 = vector.extract_strided_slice %110 {offsets = [1, 0], sizes = [31, 32], strides = [1, 1]} : vector<32x32xf32> to vector<31x32xf32>
    %115 = tpu.concatenate %114, %111 in 0 : vector<31x32xf32>, vector<1x32xf32> -> vector<32x32xf32>
    %cst_45 = arith.constant 0.000000e+00 : f32
    %116 = vector.broadcast %cst_45 : f32 to vector<32x32xf32>
    %117 = arith.select %8, %116, %113 : vector<32x32xi1>, vector<32x32xf32>
    %cst_46 = arith.constant 0.000000e+00 : f32
    %118 = vector.broadcast %cst_46 : f32 to vector<32x32xf32>
    %119 = arith.select %11, %118, %115 : vector<32x32xi1>, vector<32x32xf32>
    %c312 = arith.constant 312 : index
    %c0_47 = arith.constant 0 : index
    %120 = vector.load %arg1[%c312, %c0_47] : memref<1184x32xf32, #tpu.memory_space<vmem>>, vector<32x32xf32>
    %cst_48 = arith.constant dense<0.000000e+00> : vector<32x32xf32>
    %121 = tpu.matmul %117, %120, %cst_48 {dimension_numbers = #tpu.dot_dimension_numbers<[1], [0], [0], [1], [0, 0, 1, 1], [], []>} : vector<32x32xf32>, vector<32x32xf32>, vector<32x32xf32> -> vector<32x32xf32>
    %c344 = arith.constant 344 : index
    %c0_49 = arith.constant 0 : index
    %122 = vector.load %arg1[%c344, %c0_49] : memref<1184x32xf32, #tpu.memory_space<vmem>>, vector<32x32xf32>
    %cst_50 = arith.constant dense<0.000000e+00> : vector<32x32xf32>
    %123 = tpu.matmul %110, %122, %cst_50 {dimension_numbers = #tpu.dot_dimension_numbers<[1], [0], [0], [1], [0, 0, 1, 1], [], []>} : vector<32x32xf32>, vector<32x32xf32>, vector<32x32xf32> -> vector<32x32xf32>
    %124 = arith.addf %121, %123 : vector<32x32xf32>
    %c376 = arith.constant 376 : index
    %c0_51 = arith.constant 0 : index
    %125 = vector.load %arg1[%c376, %c0_51] : memref<1184x32xf32, #tpu.memory_space<vmem>>, vector<32x32xf32>
    %cst_52 = arith.constant dense<0.000000e+00> : vector<32x32xf32>
    %126 = tpu.matmul %119, %125, %cst_52 {dimension_numbers = #tpu.dot_dimension_numbers<[1], [0], [0], [1], [0, 0, 1, 1], [], []>} : vector<32x32xf32>, vector<32x32xf32>, vector<32x32xf32> -> vector<32x32xf32>
    %127 = arith.addf %124, %126 : vector<32x32xf32>
    %c504 = arith.constant 504 : index
    %c0_53 = arith.constant 0 : index
    %128 = vector.load %arg1[%c504, %c0_53] : memref<1184x32xf32, #tpu.memory_space<vmem>>, vector<1x32xf32>
    %129 = vector.broadcast %128 : vector<1x32xf32> to vector<32x32xf32>
    %130 = arith.addf %127, %129 : vector<32x32xf32>
    %c408 = arith.constant 408 : index
    %c0_54 = arith.constant 0 : index
    %131 = vector.load %arg1[%c408, %c0_54] : memref<1184x32xf32, #tpu.memory_space<vmem>>, vector<32x32xf32>
    %cst_55 = arith.constant dense<0.000000e+00> : vector<32x32xf32>
    %132 = tpu.matmul %117, %131, %cst_55 {dimension_numbers = #tpu.dot_dimension_numbers<[1], [0], [0], [1], [0, 0, 1, 1], [], []>} : vector<32x32xf32>, vector<32x32xf32>, vector<32x32xf32> -> vector<32x32xf32>
    %c440 = arith.constant 440 : index
    %c0_56 = arith.constant 0 : index
    %133 = vector.load %arg1[%c440, %c0_56] : memref<1184x32xf32, #tpu.memory_space<vmem>>, vector<32x32xf32>
    %cst_57 = arith.constant dense<0.000000e+00> : vector<32x32xf32>
    %134 = tpu.matmul %110, %133, %cst_57 {dimension_numbers = #tpu.dot_dimension_numbers<[1], [0], [0], [1], [0, 0, 1, 1], [], []>} : vector<32x32xf32>, vector<32x32xf32>, vector<32x32xf32> -> vector<32x32xf32>
    %135 = arith.addf %132, %134 : vector<32x32xf32>
    %c472 = arith.constant 472 : index
    %c0_58 = arith.constant 0 : index
    %136 = vector.load %arg1[%c472, %c0_58] : memref<1184x32xf32, #tpu.memory_space<vmem>>, vector<32x32xf32>
    %cst_59 = arith.constant dense<0.000000e+00> : vector<32x32xf32>
    %137 = tpu.matmul %119, %136, %cst_59 {dimension_numbers = #tpu.dot_dimension_numbers<[1], [0], [0], [1], [0, 0, 1, 1], [], []>} : vector<32x32xf32>, vector<32x32xf32>, vector<32x32xf32> -> vector<32x32xf32>
    %138 = arith.addf %135, %137 : vector<32x32xf32>
    %c512 = arith.constant 512 : index
    %c0_60 = arith.constant 0 : index
    %139 = vector.load %arg1[%c512, %c0_60] : memref<1184x32xf32, #tpu.memory_space<vmem>>, vector<1x32xf32>
    %140 = vector.broadcast %139 : vector<1x32xf32> to vector<32x32xf32>
    %141 = arith.addf %138, %140 : vector<32x32xf32>
    %cst_61 = arith.constant 5.000000e-01 : f32
    %142 = vector.broadcast %cst_61 : f32 to vector<32x32xf32>
    %143 = arith.mulf %142, %141 : vector<32x32xf32>
    %144 = math.tanh %143 : vector<32x32xf32>
    %cst_62 = arith.constant 5.000000e-01 : f32
    %145 = vector.broadcast %cst_62 : f32 to vector<32x32xf32>
    %146 = arith.mulf %145, %144 : vector<32x32xf32>
    %cst_63 = arith.constant 5.000000e-01 : f32
    %147 = vector.broadcast %cst_63 : f32 to vector<32x32xf32>
    %148 = arith.addf %146, %147 : vector<32x32xf32>
    %149 = arith.mulf %130, %148 : vector<32x32xf32>
    %cst_64 = arith.constant dense<0.000000e+00> : vector<32xf32>
    %150 = vector.multi_reduction <add>, %149, %cst_64 [0] : vector<32x32xf32> to vector<32xf32>
    %151 = vector.shape_cast %150 : vector<32xf32> to vector<1x32xf32>
    %cst_65 = arith.constant 3.200000e+01 : f32
    %152 = vector.broadcast %cst_65 : f32 to vector<1x32xf32>
    %153 = arith.divf %151, %152 : vector<1x32xf32>
    %154 = vector.broadcast %153 : vector<1x32xf32> to vector<32x32xf32>
    %155 = arith.subf %149, %154 : vector<32x32xf32>
    %156 = arith.mulf %155, %155 : vector<32x32xf32>
    %cst_66 = arith.constant dense<0.000000e+00> : vector<32xf32>
    %157 = vector.multi_reduction <add>, %156, %cst_66 [0] : vector<32x32xf32> to vector<32xf32>
    %158 = vector.shape_cast %157 : vector<32xf32> to vector<1x32xf32>
    %cst_67 = arith.constant 3.200000e+01 : f32
    %159 = vector.broadcast %cst_67 : f32 to vector<1x32xf32>
    %160 = arith.divf %158, %159 : vector<1x32xf32>
    %cst_68 = arith.constant 9.99999974E-6 : f32
    %161 = vector.broadcast %cst_68 : f32 to vector<1x32xf32>
    %162 = arith.addf %160, %161 : vector<1x32xf32>
    %163 = math.rsqrt %162 : vector<1x32xf32>
    %164 = vector.broadcast %163 : vector<1x32xf32> to vector<32x32xf32>
    %165 = arith.mulf %155, %164 : vector<32x32xf32>
    %cst_69 = arith.constant 0.000000e+00 : f32
    %166 = vector.broadcast %cst_69 : f32 to vector<1x32xf32>
    %167 = vector.extract_strided_slice %165 {offsets = [0, 0], sizes = [31, 32], strides = [1, 1]} : vector<32x32xf32> to vector<31x32xf32>
    %168 = tpu.concatenate %166, %167 in 0 : vector<1x32xf32>, vector<31x32xf32> -> vector<32x32xf32>
    %169 = vector.extract_strided_slice %165 {offsets = [1, 0], sizes = [31, 32], strides = [1, 1]} : vector<32x32xf32> to vector<31x32xf32>
    %170 = tpu.concatenate %169, %166 in 0 : vector<31x32xf32>, vector<1x32xf32> -> vector<32x32xf32>
    %cst_70 = arith.constant 0.000000e+00 : f32
    %171 = vector.broadcast %cst_70 : f32 to vector<32x32xf32>
    %172 = arith.select %8, %171, %168 : vector<32x32xi1>, vector<32x32xf32>
    %cst_71 = arith.constant 0.000000e+00 : f32
    %173 = vector.broadcast %cst_71 : f32 to vector<32x32xf32>
    %174 = arith.select %11, %173, %170 : vector<32x32xi1>, vector<32x32xf32>
    %c520 = arith.constant 520 : index
    %c0_72 = arith.constant 0 : index
    %175 = vector.load %arg1[%c520, %c0_72] : memref<1184x32xf32, #tpu.memory_space<vmem>>, vector<32x32xf32>
    %cst_73 = arith.constant dense<0.000000e+00> : vector<32x32xf32>
    %176 = tpu.matmul %172, %175, %cst_73 {dimension_numbers = #tpu.dot_dimension_numbers<[1], [0], [0], [1], [0, 0, 1, 1], [], []>} : vector<32x32xf32>, vector<32x32xf32>, vector<32x32xf32> -> vector<32x32xf32>
    %c552 = arith.constant 552 : index
    %c0_74 = arith.constant 0 : index
    %177 = vector.load %arg1[%c552, %c0_74] : memref<1184x32xf32, #tpu.memory_space<vmem>>, vector<32x32xf32>
    %cst_75 = arith.constant dense<0.000000e+00> : vector<32x32xf32>
    %178 = tpu.matmul %165, %177, %cst_75 {dimension_numbers = #tpu.dot_dimension_numbers<[1], [0], [0], [1], [0, 0, 1, 1], [], []>} : vector<32x32xf32>, vector<32x32xf32>, vector<32x32xf32> -> vector<32x32xf32>
    %179 = arith.addf %176, %178 : vector<32x32xf32>
    %c584 = arith.constant 584 : index
    %c0_76 = arith.constant 0 : index
    %180 = vector.load %arg1[%c584, %c0_76] : memref<1184x32xf32, #tpu.memory_space<vmem>>, vector<32x32xf32>
    %cst_77 = arith.constant dense<0.000000e+00> : vector<32x32xf32>
    %181 = tpu.matmul %174, %180, %cst_77 {dimension_numbers = #tpu.dot_dimension_numbers<[1], [0], [0], [1], [0, 0, 1, 1], [], []>} : vector<32x32xf32>, vector<32x32xf32>, vector<32x32xf32> -> vector<32x32xf32>
    %182 = arith.addf %179, %181 : vector<32x32xf32>
    %c712 = arith.constant 712 : index
    %c0_78 = arith.constant 0 : index
    %183 = vector.load %arg1[%c712, %c0_78] : memref<1184x32xf32, #tpu.memory_space<vmem>>, vector<1x32xf32>
    %184 = vector.broadcast %183 : vector<1x32xf32> to vector<32x32xf32>
    %185 = arith.addf %182, %184 : vector<32x32xf32>
    %c616 = arith.constant 616 : index
    %c0_79 = arith.constant 0 : index
    %186 = vector.load %arg1[%c616, %c0_79] : memref<1184x32xf32, #tpu.memory_space<vmem>>, vector<32x32xf32>
    %cst_80 = arith.constant dense<0.000000e+00> : vector<32x32xf32>
    %187 = tpu.matmul %172, %186, %cst_80 {dimension_numbers = #tpu.dot_dimension_numbers<[1], [0], [0], [1], [0, 0, 1, 1], [], []>} : vector<32x32xf32>, vector<32x32xf32>, vector<32x32xf32> -> vector<32x32xf32>
    %c648 = arith.constant 648 : index
    %c0_81 = arith.constant 0 : index
    %188 = vector.load %arg1[%c648, %c0_81] : memref<1184x32xf32, #tpu.memory_space<vmem>>, vector<32x32xf32>
    %cst_82 = arith.constant dense<0.000000e+00> : vector<32x32xf32>
    %189 = tpu.matmul %165, %188, %cst_82 {dimension_numbers = #tpu.dot_dimension_numbers<[1], [0], [0], [1], [0, 0, 1, 1], [], []>} : vector<32x32xf32>, vector<32x32xf32>, vector<32x32xf32> -> vector<32x32xf32>
    %190 = arith.addf %187, %189 : vector<32x32xf32>
    %c680 = arith.constant 680 : index
    %c0_83 = arith.constant 0 : index
    %191 = vector.load %arg1[%c680, %c0_83] : memref<1184x32xf32, #tpu.memory_space<vmem>>, vector<32x32xf32>
    %cst_84 = arith.constant dense<0.000000e+00> : vector<32x32xf32>
    %192 = tpu.matmul %174, %191, %cst_84 {dimension_numbers = #tpu.dot_dimension_numbers<[1], [0], [0], [1], [0, 0, 1, 1], [], []>} : vector<32x32xf32>, vector<32x32xf32>, vector<32x32xf32> -> vector<32x32xf32>
    %193 = arith.addf %190, %192 : vector<32x32xf32>
    %c720 = arith.constant 720 : index
    %c0_85 = arith.constant 0 : index
    %194 = vector.load %arg1[%c720, %c0_85] : memref<1184x32xf32, #tpu.memory_space<vmem>>, vector<1x32xf32>
    %195 = vector.broadcast %194 : vector<1x32xf32> to vector<32x32xf32>
    %196 = arith.addf %193, %195 : vector<32x32xf32>
    %cst_86 = arith.constant 5.000000e-01 : f32
    %197 = vector.broadcast %cst_86 : f32 to vector<32x32xf32>
    %198 = arith.mulf %197, %196 : vector<32x32xf32>
    %199 = math.tanh %198 : vector<32x32xf32>
    %cst_87 = arith.constant 5.000000e-01 : f32
    %200 = vector.broadcast %cst_87 : f32 to vector<32x32xf32>
    %201 = arith.mulf %200, %199 : vector<32x32xf32>
    %cst_88 = arith.constant 5.000000e-01 : f32
    %202 = vector.broadcast %cst_88 : f32 to vector<32x32xf32>
    %203 = arith.addf %201, %202 : vector<32x32xf32>
    %204 = arith.mulf %185, %203 : vector<32x32xf32>
    %cst_89 = arith.constant dense<0.000000e+00> : vector<32xf32>
    %205 = vector.multi_reduction <add>, %204, %cst_89 [0] : vector<32x32xf32> to vector<32xf32>
    %206 = vector.shape_cast %205 : vector<32xf32> to vector<1x32xf32>
    %cst_90 = arith.constant 3.200000e+01 : f32
    %207 = vector.broadcast %cst_90 : f32 to vector<1x32xf32>
    %208 = arith.divf %206, %207 : vector<1x32xf32>
    %209 = vector.broadcast %208 : vector<1x32xf32> to vector<32x32xf32>
    %210 = arith.subf %204, %209 : vector<32x32xf32>
    %211 = arith.mulf %210, %210 : vector<32x32xf32>
    %cst_91 = arith.constant dense<0.000000e+00> : vector<32xf32>
    %212 = vector.multi_reduction <add>, %211, %cst_91 [0] : vector<32x32xf32> to vector<32xf32>
    %213 = vector.shape_cast %212 : vector<32xf32> to vector<1x32xf32>
    %cst_92 = arith.constant 3.200000e+01 : f32
    %214 = vector.broadcast %cst_92 : f32 to vector<1x32xf32>
    %215 = arith.divf %213, %214 : vector<1x32xf32>
    %cst_93 = arith.constant 9.99999974E-6 : f32
    %216 = vector.broadcast %cst_93 : f32 to vector<1x32xf32>
    %217 = arith.addf %215, %216 : vector<1x32xf32>
    %218 = math.rsqrt %217 : vector<1x32xf32>
    %219 = vector.broadcast %218 : vector<1x32xf32> to vector<32x32xf32>
    %220 = arith.mulf %210, %219 : vector<32x32xf32>
    %cst_94 = arith.constant 0.000000e+00 : f32
    %221 = vector.broadcast %cst_94 : f32 to vector<1x32xf32>
    %222 = vector.extract_strided_slice %220 {offsets = [0, 0], sizes = [31, 32], strides = [1, 1]} : vector<32x32xf32> to vector<31x32xf32>
    %223 = tpu.concatenate %221, %222 in 0 : vector<1x32xf32>, vector<31x32xf32> -> vector<32x32xf32>
    %224 = vector.extract_strided_slice %220 {offsets = [1, 0], sizes = [31, 32], strides = [1, 1]} : vector<32x32xf32> to vector<31x32xf32>
    %225 = tpu.concatenate %224, %221 in 0 : vector<31x32xf32>, vector<1x32xf32> -> vector<32x32xf32>
    %cst_95 = arith.constant 0.000000e+00 : f32
    %226 = vector.broadcast %cst_95 : f32 to vector<32x32xf32>
    %227 = arith.select %8, %226, %223 : vector<32x32xi1>, vector<32x32xf32>
    %cst_96 = arith.constant 0.000000e+00 : f32
    %228 = vector.broadcast %cst_96 : f32 to vector<32x32xf32>
    %229 = arith.select %11, %228, %225 : vector<32x32xi1>, vector<32x32xf32>
    %c728 = arith.constant 728 : index
    %c0_97 = arith.constant 0 : index
    %230 = vector.load %arg1[%c728, %c0_97] : memref<1184x32xf32, #tpu.memory_space<vmem>>, vector<32x32xf32>
    %cst_98 = arith.constant dense<0.000000e+00> : vector<32x32xf32>
    %231 = tpu.matmul %227, %230, %cst_98 {dimension_numbers = #tpu.dot_dimension_numbers<[1], [0], [0], [1], [0, 0, 1, 1], [], []>} : vector<32x32xf32>, vector<32x32xf32>, vector<32x32xf32> -> vector<32x32xf32>
    %c760 = arith.constant 760 : index
    %c0_99 = arith.constant 0 : index
    %232 = vector.load %arg1[%c760, %c0_99] : memref<1184x32xf32, #tpu.memory_space<vmem>>, vector<32x32xf32>
    %cst_100 = arith.constant dense<0.000000e+00> : vector<32x32xf32>
    %233 = tpu.matmul %220, %232, %cst_100 {dimension_numbers = #tpu.dot_dimension_numbers<[1], [0], [0], [1], [0, 0, 1, 1], [], []>} : vector<32x32xf32>, vector<32x32xf32>, vector<32x32xf32> -> vector<32x32xf32>
    %234 = arith.addf %231, %233 : vector<32x32xf32>
    %c792 = arith.constant 792 : index
    %c0_101 = arith.constant 0 : index
    %235 = vector.load %arg1[%c792, %c0_101] : memref<1184x32xf32, #tpu.memory_space<vmem>>, vector<32x32xf32>
    %cst_102 = arith.constant dense<0.000000e+00> : vector<32x32xf32>
    %236 = tpu.matmul %229, %235, %cst_102 {dimension_numbers = #tpu.dot_dimension_numbers<[1], [0], [0], [1], [0, 0, 1, 1], [], []>} : vector<32x32xf32>, vector<32x32xf32>, vector<32x32xf32> -> vector<32x32xf32>
    %237 = arith.addf %234, %236 : vector<32x32xf32>
    %c920 = arith.constant 920 : index
    %c0_103 = arith.constant 0 : index
    %238 = vector.load %arg1[%c920, %c0_103] : memref<1184x32xf32, #tpu.memory_space<vmem>>, vector<1x32xf32>
    %239 = vector.broadcast %238 : vector<1x32xf32> to vector<32x32xf32>
    %240 = arith.addf %237, %239 : vector<32x32xf32>
    %c824 = arith.constant 824 : index
    %c0_104 = arith.constant 0 : index
    %241 = vector.load %arg1[%c824, %c0_104] : memref<1184x32xf32, #tpu.memory_space<vmem>>, vector<32x32xf32>
    %cst_105 = arith.constant dense<0.000000e+00> : vector<32x32xf32>
    %242 = tpu.matmul %227, %241, %cst_105 {dimension_numbers = #tpu.dot_dimension_numbers<[1], [0], [0], [1], [0, 0, 1, 1], [], []>} : vector<32x32xf32>, vector<32x32xf32>, vector<32x32xf32> -> vector<32x32xf32>
    %c856 = arith.constant 856 : index
    %c0_106 = arith.constant 0 : index
    %243 = vector.load %arg1[%c856, %c0_106] : memref<1184x32xf32, #tpu.memory_space<vmem>>, vector<32x32xf32>
    %cst_107 = arith.constant dense<0.000000e+00> : vector<32x32xf32>
    %244 = tpu.matmul %220, %243, %cst_107 {dimension_numbers = #tpu.dot_dimension_numbers<[1], [0], [0], [1], [0, 0, 1, 1], [], []>} : vector<32x32xf32>, vector<32x32xf32>, vector<32x32xf32> -> vector<32x32xf32>
    %245 = arith.addf %242, %244 : vector<32x32xf32>
    %c888 = arith.constant 888 : index
    %c0_108 = arith.constant 0 : index
    %246 = vector.load %arg1[%c888, %c0_108] : memref<1184x32xf32, #tpu.memory_space<vmem>>, vector<32x32xf32>
    %cst_109 = arith.constant dense<0.000000e+00> : vector<32x32xf32>
    %247 = tpu.matmul %229, %246, %cst_109 {dimension_numbers = #tpu.dot_dimension_numbers<[1], [0], [0], [1], [0, 0, 1, 1], [], []>} : vector<32x32xf32>, vector<32x32xf32>, vector<32x32xf32> -> vector<32x32xf32>
    %248 = arith.addf %245, %247 : vector<32x32xf32>
    %c928 = arith.constant 928 : index
    %c0_110 = arith.constant 0 : index
    %249 = vector.load %arg1[%c928, %c0_110] : memref<1184x32xf32, #tpu.memory_space<vmem>>, vector<1x32xf32>
    %250 = vector.broadcast %249 : vector<1x32xf32> to vector<32x32xf32>
    %251 = arith.addf %248, %250 : vector<32x32xf32>
    %cst_111 = arith.constant 5.000000e-01 : f32
    %252 = vector.broadcast %cst_111 : f32 to vector<32x32xf32>
    %253 = arith.mulf %252, %251 : vector<32x32xf32>
    %254 = math.tanh %253 : vector<32x32xf32>
    %cst_112 = arith.constant 5.000000e-01 : f32
    %255 = vector.broadcast %cst_112 : f32 to vector<32x32xf32>
    %256 = arith.mulf %255, %254 : vector<32x32xf32>
    %cst_113 = arith.constant 5.000000e-01 : f32
    %257 = vector.broadcast %cst_113 : f32 to vector<32x32xf32>
    %258 = arith.addf %256, %257 : vector<32x32xf32>
    %259 = arith.mulf %240, %258 : vector<32x32xf32>
    %cst_114 = arith.constant dense<0.000000e+00> : vector<32xf32>
    %260 = vector.multi_reduction <add>, %259, %cst_114 [0] : vector<32x32xf32> to vector<32xf32>
    %261 = vector.shape_cast %260 : vector<32xf32> to vector<1x32xf32>
    %cst_115 = arith.constant 3.200000e+01 : f32
    %262 = vector.broadcast %cst_115 : f32 to vector<1x32xf32>
    %263 = arith.divf %261, %262 : vector<1x32xf32>
    %264 = vector.broadcast %263 : vector<1x32xf32> to vector<32x32xf32>
    %265 = arith.subf %259, %264 : vector<32x32xf32>
    %266 = arith.mulf %265, %265 : vector<32x32xf32>
    %cst_116 = arith.constant dense<0.000000e+00> : vector<32xf32>
    %267 = vector.multi_reduction <add>, %266, %cst_116 [0] : vector<32x32xf32> to vector<32xf32>
    %268 = vector.shape_cast %267 : vector<32xf32> to vector<1x32xf32>
    %cst_117 = arith.constant 3.200000e+01 : f32
    %269 = vector.broadcast %cst_117 : f32 to vector<1x32xf32>
    %270 = arith.divf %268, %269 : vector<1x32xf32>
    %cst_118 = arith.constant 9.99999974E-6 : f32
    %271 = vector.broadcast %cst_118 : f32 to vector<1x32xf32>
    %272 = arith.addf %270, %271 : vector<1x32xf32>
    %273 = math.rsqrt %272 : vector<1x32xf32>
    %274 = vector.broadcast %273 : vector<1x32xf32> to vector<32x32xf32>
    %275 = arith.mulf %265, %274 : vector<32x32xf32>
    %cst_119 = arith.constant 0.000000e+00 : f32
    %276 = vector.broadcast %cst_119 : f32 to vector<1x32xf32>
    %277 = vector.extract_strided_slice %275 {offsets = [0, 0], sizes = [31, 32], strides = [1, 1]} : vector<32x32xf32> to vector<31x32xf32>
    %278 = tpu.concatenate %276, %277 in 0 : vector<1x32xf32>, vector<31x32xf32> -> vector<32x32xf32>
    %279 = vector.extract_strided_slice %275 {offsets = [1, 0], sizes = [31, 32], strides = [1, 1]} : vector<32x32xf32> to vector<31x32xf32>
    %280 = tpu.concatenate %279, %276 in 0 : vector<31x32xf32>, vector<1x32xf32> -> vector<32x32xf32>
    %cst_120 = arith.constant 0.000000e+00 : f32
    %281 = vector.broadcast %cst_120 : f32 to vector<32x32xf32>
    %282 = arith.select %8, %281, %278 : vector<32x32xi1>, vector<32x32xf32>
    %cst_121 = arith.constant 0.000000e+00 : f32
    %283 = vector.broadcast %cst_121 : f32 to vector<32x32xf32>
    %284 = arith.select %11, %283, %280 : vector<32x32xi1>, vector<32x32xf32>
    %c936 = arith.constant 936 : index
    %c0_122 = arith.constant 0 : index
    %285 = vector.load %arg1[%c936, %c0_122] : memref<1184x32xf32, #tpu.memory_space<vmem>>, vector<32x32xf32>
    %cst_123 = arith.constant dense<0.000000e+00> : vector<32x32xf32>
    %286 = tpu.matmul %282, %285, %cst_123 {dimension_numbers = #tpu.dot_dimension_numbers<[1], [0], [0], [1], [0, 0, 1, 1], [], []>} : vector<32x32xf32>, vector<32x32xf32>, vector<32x32xf32> -> vector<32x32xf32>
    %c968 = arith.constant 968 : index
    %c0_124 = arith.constant 0 : index
    %287 = vector.load %arg1[%c968, %c0_124] : memref<1184x32xf32, #tpu.memory_space<vmem>>, vector<32x32xf32>
    %cst_125 = arith.constant dense<0.000000e+00> : vector<32x32xf32>
    %288 = tpu.matmul %275, %287, %cst_125 {dimension_numbers = #tpu.dot_dimension_numbers<[1], [0], [0], [1], [0, 0, 1, 1], [], []>} : vector<32x32xf32>, vector<32x32xf32>, vector<32x32xf32> -> vector<32x32xf32>
    %289 = arith.addf %286, %288 : vector<32x32xf32>
    %c1000 = arith.constant 1000 : index
    %c0_126 = arith.constant 0 : index
    %290 = vector.load %arg1[%c1000, %c0_126] : memref<1184x32xf32, #tpu.memory_space<vmem>>, vector<32x32xf32>
    %cst_127 = arith.constant dense<0.000000e+00> : vector<32x32xf32>
    %291 = tpu.matmul %284, %290, %cst_127 {dimension_numbers = #tpu.dot_dimension_numbers<[1], [0], [0], [1], [0, 0, 1, 1], [], []>} : vector<32x32xf32>, vector<32x32xf32>, vector<32x32xf32> -> vector<32x32xf32>
    %292 = arith.addf %289, %291 : vector<32x32xf32>
    %c1128 = arith.constant 1128 : index
    %c0_128 = arith.constant 0 : index
    %293 = vector.load %arg1[%c1128, %c0_128] : memref<1184x32xf32, #tpu.memory_space<vmem>>, vector<1x32xf32>
    %294 = vector.broadcast %293 : vector<1x32xf32> to vector<32x32xf32>
    %295 = arith.addf %292, %294 : vector<32x32xf32>
    %c1032 = arith.constant 1032 : index
    %c0_129 = arith.constant 0 : index
    %296 = vector.load %arg1[%c1032, %c0_129] : memref<1184x32xf32, #tpu.memory_space<vmem>>, vector<32x32xf32>
    %cst_130 = arith.constant dense<0.000000e+00> : vector<32x32xf32>
    %297 = tpu.matmul %282, %296, %cst_130 {dimension_numbers = #tpu.dot_dimension_numbers<[1], [0], [0], [1], [0, 0, 1, 1], [], []>} : vector<32x32xf32>, vector<32x32xf32>, vector<32x32xf32> -> vector<32x32xf32>
    %c1064 = arith.constant 1064 : index
    %c0_131 = arith.constant 0 : index
    %298 = vector.load %arg1[%c1064, %c0_131] : memref<1184x32xf32, #tpu.memory_space<vmem>>, vector<32x32xf32>
    %cst_132 = arith.constant dense<0.000000e+00> : vector<32x32xf32>
    %299 = tpu.matmul %275, %298, %cst_132 {dimension_numbers = #tpu.dot_dimension_numbers<[1], [0], [0], [1], [0, 0, 1, 1], [], []>} : vector<32x32xf32>, vector<32x32xf32>, vector<32x32xf32> -> vector<32x32xf32>
    %300 = arith.addf %297, %299 : vector<32x32xf32>
    %c1096 = arith.constant 1096 : index
    %c0_133 = arith.constant 0 : index
    %301 = vector.load %arg1[%c1096, %c0_133] : memref<1184x32xf32, #tpu.memory_space<vmem>>, vector<32x32xf32>
    %cst_134 = arith.constant dense<0.000000e+00> : vector<32x32xf32>
    %302 = tpu.matmul %284, %301, %cst_134 {dimension_numbers = #tpu.dot_dimension_numbers<[1], [0], [0], [1], [0, 0, 1, 1], [], []>} : vector<32x32xf32>, vector<32x32xf32>, vector<32x32xf32> -> vector<32x32xf32>
    %303 = arith.addf %300, %302 : vector<32x32xf32>
    %c1136 = arith.constant 1136 : index
    %c0_135 = arith.constant 0 : index
    %304 = vector.load %arg1[%c1136, %c0_135] : memref<1184x32xf32, #tpu.memory_space<vmem>>, vector<1x32xf32>
    %305 = vector.broadcast %304 : vector<1x32xf32> to vector<32x32xf32>
    %306 = arith.addf %303, %305 : vector<32x32xf32>
    %cst_136 = arith.constant 5.000000e-01 : f32
    %307 = vector.broadcast %cst_136 : f32 to vector<32x32xf32>
    %308 = arith.mulf %307, %306 : vector<32x32xf32>
    %309 = math.tanh %308 : vector<32x32xf32>
    %cst_137 = arith.constant 5.000000e-01 : f32
    %310 = vector.broadcast %cst_137 : f32 to vector<32x32xf32>
    %311 = arith.mulf %310, %309 : vector<32x32xf32>
    %cst_138 = arith.constant 5.000000e-01 : f32
    %312 = vector.broadcast %cst_138 : f32 to vector<32x32xf32>
    %313 = arith.addf %311, %312 : vector<32x32xf32>
    %314 = arith.mulf %295, %313 : vector<32x32xf32>
    %c1144 = arith.constant 1144 : index
    %c0_139 = arith.constant 0 : index
    %315 = vector.load %arg1[%c1144, %c0_139] : memref<1184x32xf32, #tpu.memory_space<vmem>>, vector<32x32xf32>
    %cst_140 = arith.constant dense<0.000000e+00> : vector<32x32xf32>
    %316 = tpu.matmul %0, %315, %cst_140 {dimension_numbers = #tpu.dot_dimension_numbers<[1], [0], [0], [1], [0, 0, 1, 1], [], []>} : vector<32x32xf32>, vector<32x32xf32>, vector<32x32xf32> -> vector<32x32xf32>
    %317 = arith.mulf %314, %316 : vector<32x32xf32>
    %c1176 = arith.constant 1176 : index
    %c0_141 = arith.constant 0 : index
    %318 = vector.load %arg1[%c1176, %c0_141] : memref<1184x32xf32, #tpu.memory_space<vmem>>, vector<1x32xf32>
    %319 = vector.broadcast %318 : vector<1x32xf32> to vector<32x32xf32>
    %320 = arith.mulf %0, %319 : vector<32x32xf32>
    %321 = arith.addf %317, %320 : vector<32x32xf32>
    %322 = vector.extract_strided_slice %321 {offsets = [0, 0], sizes = [16, 32], strides = [1, 1]} : vector<32x32xf32> to vector<16x32xf32>
    %cst_142 = arith.constant dense<0.000000e+00> : vector<32xf32>
    %323 = vector.multi_reduction <add>, %322, %cst_142 [0] : vector<16x32xf32> to vector<32xf32>
    %324 = vector.shape_cast %323 : vector<32xf32> to vector<1x32xf32>
    %325 = vector.extract_strided_slice %321 {offsets = [16, 0], sizes = [16, 32], strides = [1, 1]} : vector<32x32xf32> to vector<16x32xf32>
    %cst_143 = arith.constant dense<0.000000e+00> : vector<32xf32>
    %326 = vector.multi_reduction <add>, %325, %cst_143 [0] : vector<16x32xf32> to vector<32xf32>
    %327 = vector.shape_cast %326 : vector<32xf32> to vector<1x32xf32>
    %328 = tpu.concatenate %324, %327 in 0 : vector<1x32xf32>, vector<1x32xf32> -> vector<2x32xf32>
    %cst_144 = arith.constant dense<0.000000e+00> : vector<2xf32>
    %329 = vector.multi_reduction <add>, %328, %cst_144 [1] : vector<2x32xf32> to vector<2xf32>
    %330 = vector.shape_cast %329 : vector<2xf32> to vector<2x1xf32>
    %c0_145 = arith.constant 0 : index
    %c0_146 = arith.constant 0 : index
    %331 = vector.load %arg2[%c0_145, %c0_146] : memref<2x1xf32, #tpu.memory_space<vmem>>, vector<2x1xf32>
    tpu.vector_store %arg2[%c0_145, %c0_146], %330 {strides = array<i32>} : memref<2x1xf32, #tpu.memory_space<vmem>>, vector<2x1xf32>,
    return
  }
}

</mosaic_0001>

<llo_original>
// kernel: simplenet_forward.1
$region0: #{simplenet_forward.1}
  #allocation0 [shape = 'u32[]', space=smem, size = 0x4, offset = 0x4, fixed_abs, tag = 'smem constant byte address 0x4 - core index']
  #allocation1 [shape = 'u32[144,128]{1,0:T(1,128)}', space=vmem, size = 0x12000, scoped, tag = 'internal scratch']
  %s0 = inlined_call_operand.vmem [shape: f32[32,32], index: 0, kind: input, shape index: {}]
  %s1 = inlined_call_operand.vmem [shape: f32[1184,32], index: 1, kind: input, shape index: {}]
  %s2 = inlined_call_operand.vmem [shape: f32[2,1], index: 2, kind: output, shape index: {}]
  %s3 = sld [smem:[#allocation0]]
  $region18: #{simplenet_forward.1} parent=0
    _
  %s5 = ssub.s32 1, %s3
  %s6 = scalar_select 0, %s5, %s3
  // Predicated region
  $region2: #{simplenet_forward.1} parent=0 // pred_check
    _
  $region3: #{simplenet_forward.1} parent=0 // pred_check_branch
    %8 = sbr.rel (0) target = $region5
  $region4: #{simplenet_forward.1} parent=0 // pred_region
    _
  $region5: #{simplenet_forward.1} parent=0 // pred_fallthru
    _
  // Predicated region
  $region6: #{simplenet_forward.1} parent=0 // pred_check
    _
  $region7: #{simplenet_forward.1} parent=0 // pred_check_branch
    %10 = sbr.rel (0) target = $region9
  $region8: #{simplenet_forward.1} parent=0 // pred_region
    _
  $region9: #{simplenet_forward.1} parent=0 // pred_fallthru
    _
  %v11 = vld [vmem:[%s0] sm:$0xff]
  %v12 = vld [vmem:[%s0 + $0x8] sm:$0xff]
  %v13 = vld [vmem:[%s0 + $0x10] sm:$0xff]
  %v14 = vld [vmem:[%s0 + $0x18] sm:$0xff]
  %v15 = vlaneseq
  %v16 = vshrl.u32 %v15, 7
  %v17 = vadd.s32 %v16, 8
  %v18 = vadd.s32 %v16, 16
  %v19 = vadd.s32 %v16, 24
  %vm20 = vcmp.eq.s32.totalorder %v16, 0
  %vm21 = vcmp.eq.s32.totalorder %v17, 0
  %vm22 = vcmp.eq.s32.totalorder %v18, 0
  %vm23 = vcmp.eq.s32.totalorder %v19, 0
  %vm24 = vcmp.eq.s32.totalorder %v16, 15
  %vm25 = vcmp.eq.s32.totalorder %v17, 15
  %vm26 = vcmp.eq.s32.totalorder %v18, 15
  %vm27 = vcmp.eq.s32.totalorder %v19, 15
  %vm28 = vcmp.eq.s32.totalorder %v16, 16
  %vm29 = vcmp.eq.s32.totalorder %v17, 16
  %vm30 = vcmp.eq.s32.totalorder %v18, 16
  %vm31 = vcmp.eq.s32.totalorder %v19, 16
  %vm32 = vmor %vm20, %vm28
  %vm33 = vmor %vm21, %vm29
  %vm34 = vmor %vm22, %vm30
  %vm35 = vmor %vm23, %vm31
  %vm36 = vcmp.eq.s32.totalorder %v16, 31
  %vm37 = vcmp.eq.s32.totalorder %v17, 31
  %vm38 = vcmp.eq.s32.totalorder %v18, 31
  %vm39 = vcmp.eq.s32.totalorder %v19, 31
  %vm40 = vmor %vm24, %vm36
  %vm41 = vmor %vm25, %vm37
  %vm42 = vmor %vm26, %vm38
  %vm43 = vmor %vm27, %vm39
  %vm48 = vcmask 1040384
  %v49 = vrot.slane %v11, 7
  %v50 = vrot.slane %v12, 7
  %v51 = vsel %vm48, %v49, %v50
  %v52 = vrot.slane %v13, 7
  %v53 = vsel %vm48, %v50, %v52
  %v54 = vrot.slane %v14, 7
  %v55 = vsel %vm48, %v52, %v54
  %v60 = vsel %vm48, 0.0, %v49
  %vm61 = vcmask 1046528
  %v62 = vrot.slane %v11, 1
  %v63 = vrot.slane %v12, 1
  %v64 = vsel %vm61, %v62, %v63
  %v65 = vrot.slane %v13, 1
  %v66 = vsel %vm61, %v63, %v65
  %v67 = vrot.slane %v14, 1
  %v68 = vsel %vm61, %v65, %v67
  %v73 = vsel %vm61, %v67, 0.0
  %v74 = vsel %vm32, 0.0, %v60
  %v75 = vsel %vm33, 0.0, %v51
  %v76 = vsel %vm34, 0.0, %v53
  %v77 = vsel %vm35, 0.0, %v55
  %v78 = vsel %vm40, 0.0, %v64
  %v79 = vsel %vm41, 0.0, %v66
  %v80 = vsel %vm42, 0.0, %v68
  %v81 = vsel %vm43, 0.0, %v73
  %v82 = vld [vmem:[%s1] sm:$0xff]
  %v83 = vld [vmem:[%s1 + $0x8] sm:$0xff]
  %v84 = vld [vmem:[%s1 + $0x10] sm:$0xff]
  %v85 = vld [vmem:[%s1 + $0x18] sm:$0xff]
  %v86 = vld [vmem:[%s1 + $0x20] sm:$0xff]
  %v87 = vld [vmem:[%s1 + $0x28] sm:$0xff]
  %v88 = vld [vmem:[%s1 + $0x30] sm:$0xff]
  %v89 = vld [vmem:[%s1 + $0x38] sm:$0xff]
  %vm90 = vcmask 261120
  %v91 = vsel %vm90, %v11, 0
  %v93 = vsel %vm90, %v12, 0
  %v95 = vsel %vm90, %v13, 0
  %v97 = vsel %vm90, %v14, 0
  %99 = vmatprep.subr.mxu0 0.0
  %100 = vmatpush1.msra.mxu0 0.0
  %101 = vmatprep.subr.mxu0 0.0
  %102 = vmatpush1.msra.mxu0 0.0
  %103 = vmatprep.subr.mxu0 0.0
  %104 = vmatpush1.msra.mxu0 0.0
  %105 = vmatprep.subr.mxu0 0.0
  %106 = vmatpush1.msra.mxu0 0.0
  %107 = vmatprep.subr.mxu0 0.0
  %108 = vmatpush1.msra.mxu0 0.0
  %109 = vmatprep.subr.mxu0 0.0
  %110 = vmatpush1.msra.mxu0 0.0
  %111 = vmatprep.subr.mxu0 0.0
  %112 = vmatpush1.msra.mxu0 0.0
  %113 = vmatprep.subr.mxu0 0.0
  %114 = vmatpush1.msra.mxu0 0.0
  %115 = vmatprep.subr.mxu0 0.0
  %116 = vmatpush1.msra.mxu0 0.0
  %117 = vmatprep.subr.mxu0 0.0
  %118 = vmatpush1.msra.mxu0 0.0
  %119 = vmatprep.subr.mxu0 0.0
  %120 = vmatpush1.msra.mxu0 0.0
  %121 = vmatprep.subr.mxu0 0.0
  %122 = vmatpush1.msra.mxu0 0.0
  %123 = vmatprep.subr.mxu0 0.0
  %124 = vmatpush1.msra.mxu0 %v89
  %125 = vmatprep.subr.mxu0 0.0
  %126 = vmatpush1.msra.mxu0 %v88
  %127 = vmatprep.subr.mxu0 0.0
  %128 = vmatpush1.msra.mxu0 %v87
  %129 = vmatprep.subr.mxu0 0.0
  %130 = vmatpush1.msra.mxu0 %v86
  %131 = vmatprep.subr.mxu0 0.0
  %132 = vmatpush2.msra.mxu0 0.0
  %133 = vmatprep.subr.mxu0 0.0
  %134 = vmatpush2.msra.mxu0 0.0
  %135 = vmatprep.subr.mxu0 0.0
  %136 = vmatpush2.msra.mxu0 0.0
  %137 = vmatprep.subr.mxu0 0.0
  %138 = vmatpush2.msra.mxu0 0.0
  %139 = vmatprep.subr.mxu0 0.0
  %140 = vmatpush2.msra.mxu0 0.0
  %141 = vmatprep.subr.mxu0 0.0
  %142 = vmatpush2.msra.mxu0 0.0
  %143 = vmatprep.subr.mxu0 0.0
  %144 = vmatpush2.msra.mxu0 0.0
  %145 = vmatprep.subr.mxu0 0.0
  %146 = vmatpush2.msra.mxu0 0.0
  %147 = vmatprep.subr.mxu0 0.0
  %148 = vmatpush2.msra.mxu0 0.0
  %149 = vmatprep.subr.mxu0 0.0
  %150 = vmatpush2.msra.mxu0 0.0
  %151 = vmatprep.subr.mxu0 0.0
  %152 = vmatpush2.msra.mxu0 0.0
  %153 = vmatprep.subr.mxu0 0.0
  %154 = vmatpush2.msra.mxu0 0.0
  %155 = vmatprep.subr.mxu0 0.0
  %156 = vmatpush2.msra.mxu0 0.0
  %157 = vmatprep.subr.mxu0 0.0
  %158 = vmatpush2.msra.mxu0 0.0
  %159 = vmatprep.subr.mxu0 0.0
  %160 = vmatpush2.msra.mxu0 0.0
  %161 = vmatprep.subr.mxu0 0.0
  %162 = vmatpush2.msra.mxu0 0.0
  %163 = vmatprep.mubr.f32.mxu0 0.0
  %164 = vmatmul.mubr.f32.gmra.mxu0 %v91
  %v165 = vpop.f32.mrf.mxu0
  %v166 = vadd.f32 0.0, %v165
  %v167 = vpop.f32.mrf.mxu0
  %168 = vmatprep.mubr.f32.mxu0 0.0
  %169 = vmatmul.mubr.f32.gmra.mxu0 %v93
  %v170 = vpop.f32.mrf.mxu0
  %v171 = vadd.f32 0.0, %v170
  %v172 = vpop.f32.mrf.mxu0
  %173 = vmatprep.mubr.f32.mxu0 0.0
  %174 = vmatmul.mubr.f32.gmra.mxu0 %v95
  %v175 = vpop.f32.mrf.mxu0
  %v176 = vadd.f32 0.0, %v175
  %v177 = vpop.f32.mrf.mxu0
  %178 = vmatprep.mubr.f32.mxu0 0.0
  %179 = vmatmul.mubr.f32.gmra.mxu0 %v97
  %v180 = vpop.f32.mrf.mxu0
  %v181 = vadd.f32 0.0, %v180
  %v182 = vpop.f32.mrf.mxu0
  %183 = vdwg.mxu0
  %v185 = vsel %vm90, %v74, 0
  %v188 = vsel %vm90, %v75, 0
  %v191 = vsel %vm90, %v76, 0
  %v194 = vsel %vm90, %v77, 0
  %196 = vmatprep.subr.mxu0 0.0
  %197 = vmatpush1.msra.mxu0 0.0
  %198 = vmatprep.subr.mxu0 0.0
  %199 = vmatpush1.msra.mxu0 0.0
  %200 = vmatprep.subr.mxu0 0.0
  %201 = vmatpush1.msra.mxu0 0.0
  %202 = vmatprep.subr.mxu0 0.0
  %203 = vmatpush1.msra.mxu0 0.0
  %204 = vmatprep.subr.mxu0 0.0
  %205 = vmatpush1.msra.mxu0 0.0
  %206 = vmatprep.subr.mxu0 0.0
  %207 = vmatpush1.msra.mxu0 0.0
  %208 = vmatprep.subr.mxu0 0.0
  %209 = vmatpush1.msra.mxu0 0.0
  %210 = vmatprep.subr.mxu0 0.0
  %211 = vmatpush1.msra.mxu0 0.0
  %212 = vmatprep.subr.mxu0 0.0
  %213 = vmatpush1.msra.mxu0 0.0
  %214 = vmatprep.subr.mxu0 0.0
  %215 = vmatpush1.msra.mxu0 0.0
  %216 = vmatprep.subr.mxu0 0.0
  %217 = vmatpush1.msra.mxu0 0.0
  %218 = vmatprep.subr.mxu0 0.0
  %219 = vmatpush1.msra.mxu0 0.0
  %220 = vmatprep.subr.mxu0 0.0
  %221 = vmatpush1.msra.mxu0 %v85
  %222 = vmatprep.subr.mxu0 0.0
  %223 = vmatpush1.msra.mxu0 %v84
  %224 = vmatprep.subr.mxu0 0.0
  %225 = vmatpush1.msra.mxu0 %v83
  %226 = vmatprep.subr.mxu0 0.0
  %227 = vmatpush1.msra.mxu0 %v82
  %228 = vmatprep.subr.mxu0 0.0
  %229 = vmatpush2.msra.mxu0 0.0
  %230 = vmatprep.subr.mxu0 0.0
  %231 = vmatpush2.msra.mxu0 0.0
  %232 = vmatprep.subr.mxu0 0.0
  %233 = vmatpush2.msra.mxu0 0.0
  %234 = vmatprep.subr.mxu0 0.0
  %235 = vmatpush2.msra.mxu0 0.0
  %236 = vmatprep.subr.mxu0 0.0
  %237 = vmatpush2.msra.mxu0 0.0
  %238 = vmatprep.subr.mxu0 0.0
  %239 = vmatpush2.msra.mxu0 0.0
  %240 = vmatprep.subr.mxu0 0.0
  %241 = vmatpush2.msra.mxu0 0.0
  %242 = vmatprep.subr.mxu0 0.0
  %243 = vmatpush2.msra.mxu0 0.0
  %244 = vmatprep.subr.mxu0 0.0
  %245 = vmatpush2.msra.mxu0 0.0
  %246 = vmatprep.subr.mxu0 0.0
  %247 = vmatpush2.msra.mxu0 0.0
  %248 = vmatprep.subr.mxu0 0.0
  %249 = vmatpush2.msra.mxu0 0.0
  %250 = vmatprep.subr.mxu0 0.0
  %251 = vmatpush2.msra.mxu0 0.0
  %252 = vmatprep.subr.mxu0 0.0
  %253 = vmatpush2.msra.mxu0 0.0
  %254 = vmatprep.subr.mxu0 0.0
  %255 = vmatpush2.msra.mxu0 0.0
  %256 = vmatprep.subr.mxu0 0.0
  %257 = vmatpush2.msra.mxu0 0.0
  %258 = vmatprep.subr.mxu0 0.0
  %259 = vmatpush2.msra.mxu0 0.0
  %260 = vmatprep.mubr.f32.mxu0 0.0
  %261 = vmatmul.mubr.f32.gmra.mxu0 %v185
  %v262 = vpop.f32.mrf.mxu0
  %v263 = vadd.f32 %v166, %v262
  %v264 = vpop.f32.mrf.mxu0
  %265 = vmatprep.mubr.f32.mxu0 0.0
  %266 = vmatmul.mubr.f32.gmra.mxu0 %v188
  %v267 = vpop.f32.mrf.mxu0
  %v268 = vadd.f32 %v171, %v267
  %v269 = vpop.f32.mrf.mxu0
  %270 = vmatprep.mubr.f32.mxu0 0.0
  %271 = vmatmul.mubr.f32.gmra.mxu0 %v191
  %v272 = vpop.f32.mrf.mxu0
  %v273 = vadd.f32 %v176, %v272
  %v274 = vpop.f32.mrf.mxu0
  %275 = vmatprep.mubr.f32.mxu0 0.0
  %276 = vmatmul.mubr.f32.gmra.mxu0 %v194
  %v277 = vpop.f32.mrf.mxu0
  %v278 = vadd.f32 %v181, %v277
  %v279 = vpop.f32.mrf.mxu0
  %280 = vdwg.mxu0
  %v281 = vld [vmem:[%s1 + $0x40] sm:$0xff]
  %v282 = vld [vmem:[%s1 + $0x48] sm:$0xff]
  %v283 = vld [vmem:[%s1 + $0x50] sm:$0xff]
  %v284 = vld [vmem:[%s1 + $0x58] sm:$0xff]
  %v286 = vsel %vm90, %v78, 0
  %v289 = vsel %vm90, %v79, 0
  %v292 = vsel %vm90, %v80, 0
  %v295 = vsel %vm90, %v81, 0
  %297 = vmatprep.subr.mxu0 0.0
  %298 = vmatpush1.msra.mxu0 0.0
  %299 = vmatprep.subr.mxu0 0.0
  %300 = vmatpush1.msra.mxu0 0.0
  %301 = vmatprep.subr.mxu0 0.0
  %302 = vmatpush1.msra.mxu0 0.0
  %303 = vmatprep.subr.mxu0 0.0
  %304 = vmatpush1.msra.mxu0 0.0
  %305 = vmatprep.subr.mxu0 0.0
  %306 = vmatpush1.msra.mxu0 0.0
  %307 = vmatprep.subr.mxu0 0.0
  %308 = vmatpush1.msra.mxu0 0.0
  %309 = vmatprep.subr.mxu0 0.0
  %310 = vmatpush1.msra.mxu0 0.0
  %311 = vmatprep.subr.mxu0 0.0
  %312 = vmatpush1.msra.mxu0 0.0
  %313 = vmatprep.subr.mxu0 0.0
  %314 = vmatpush1.msra.mxu0 0.0
  %315 = vmatprep.subr.mxu0 0.0
  %316 = vmatpush1.msra.mxu0 0.0
  %317 = vmatprep.subr.mxu0 0.0
  %318 = vmatpush1.msra.mxu0 0.0
  %319 = vmatprep.subr.mxu0 0.0
  %320 = vmatpush1.msra.mxu0 0.0
  %321 = vmatprep.subr.mxu0 0.0
  %322 = vmatpush1.msra.mxu0 %v284
  %323 = vmatprep.subr.mxu0 0.0
  %324 = vmatpush1.msra.mxu0 %v283
  %325 = vmatprep.subr.mxu0 0.0
  %326 = vmatpush1.msra.mxu0 %v282
  %327 = vmatprep.subr.mxu0 0.0
  %328 = vmatpush1.msra.mxu0 %v281
  %329 = vmatprep.subr.mxu0 0.0
  %330 = vmatpush2.msra.mxu0 0.0
  %331 = vmatprep.subr.mxu0 0.0
  %332 = vmatpush2.msra.mxu0 0.0
  %333 = vmatprep.subr.mxu0 0.0
  %334 = vmatpush2.msra.mxu0 0.0
  %335 = vmatprep.subr.mxu0 0.0
  %336 = vmatpush2.msra.mxu0 0.0
  %337 = vmatprep.subr.mxu0 0.0
  %338 = vmatpush2.msra.mxu0 0.0
  %339 = vmatprep.subr.mxu0 0.0
  %340 = vmatpush2.msra.mxu0 0.0
  %341 = vmatprep.subr.mxu0 0.0
  %342 = vmatpush2.msra.mxu0 0.0
  %343 = vmatprep.subr.mxu0 0.0
  %344 = vmatpush2.msra.mxu0 0.0
  %345 = vmatprep.subr.mxu0 0.0
  %346 = vmatpush2.msra.mxu0 0.0
  %347 = vmatprep.subr.mxu0 0.0
  %348 = vmatpush2.msra.mxu0 0.0
  %349 = vmatprep.subr.mxu0 0.0
  %350 = vmatpush2.msra.mxu0 0.0
  %351 = vmatprep.subr.mxu0 0.0
  %352 = vmatpush2.msra.mxu0 0.0
  %353 = vmatprep.subr.mxu0 0.0
  %354 = vmatpush2.msra.mxu0 0.0
  %355 = vmatprep.subr.mxu0 0.0
  %356 = vmatpush2.msra.mxu0 0.0
  %357 = vmatprep.subr.mxu0 0.0
  %358 = vmatpush2.msra.mxu0 0.0
  %359 = vmatprep.subr.mxu0 0.0
  %360 = vmatpush2.msra.mxu0 0.0
  %361 = vmatprep.mubr.f32.mxu0 0.0
  %362 = vmatmul.mubr.f32.gmra.mxu0 %v286
  %v363 = vpop.f32.mrf.mxu0
  %v364 = vadd.f32 0.0, %v363
  %v365 = vpop.f32.mrf.mxu0
  %366 = vmatprep.mubr.f32.mxu0 0.0
  %367 = vmatmul.mubr.f32.gmra.mxu0 %v289
  %v368 = vpop.f32.mrf.mxu0
  %v369 = vadd.f32 0.0, %v368
  %v370 = vpop.f32.mrf.mxu0
  %371 = vmatprep.mubr.f32.mxu0 0.0
  %372 = vmatmul.mubr.f32.gmra.mxu0 %v292
  %v373 = vpop.f32.mrf.mxu0
  %v374 = vadd.f32 0.0, %v373
  %v375 = vpop.f32.mrf.mxu0
  %376 = vmatprep.mubr.f32.mxu0 0.0
  %377 = vmatmul.mubr.f32.gmra.mxu0 %v295
  %v378 = vpop.f32.mrf.mxu0
  %v379 = vadd.f32 0.0, %v378
  %v380 = vpop.f32.mrf.mxu0
  %381 = vdwg.mxu0
  %v382 = vadd.f32 %v263, %v364
  %v383 = vadd.f32 %v268, %v369
  %v384 = vadd.f32 %v273, %v374
  %v385 = vadd.f32 %v278, %v379
  %v386 = vld [vmem:[%s1 + $0x60] sm:$0x1]
  %v387 = vlaneseq
  %v388 = vshrl.u32 %v387, 7
  %v389 = vsub.s32 0, %v388
  %v390 = vrot.slane %v386, %v389
  %v391 = vadd.f32 %v382, %v390
  %v392 = vadd.f32 %v383, %v390
  %v393 = vadd.f32 %v384, %v390
  %v394 = vadd.f32 %v385, %v390
  %vm395 = vcmp.gt.f32.partialorder %v391, 0.0
  %vm396 = vcmp.gt.f32.partialorder %v392, 0.0
  %vm397 = vcmp.gt.f32.partialorder %v393, 0.0
  %vm398 = vcmp.gt.f32.partialorder %v394, 0.0
  %v399 = vmin.f32 %v391, 0.0
  %v400 = vmin.f32 %v392, 0.0
  %v401 = vmin.f32 %v393, 0.0
  %v402 = vmin.f32 %v394, 0.0
  %v403 = vmul.f32 %v399, 1.442695
  %v404 = vpow.pop %v403
  %v405 = vmul.f32 %v400, 1.442695
  %v406 = vpow.pop %v405
  %v407 = vmul.f32 %v401, 1.442695
  %v408 = vpow.pop %v407
  %v409 = vmul.f32 %v402, 1.442695
  %v410 = vpow.pop %v409
  %v411 = vsub.f32 %v404, 1.0
  %v412 = vsub.f32 %v406, 1.0
  %v413 = vsub.f32 %v408, 1.0
  %v414 = vsub.f32 %v410, 1.0
  %v415 = vsel %vm395, %v391, %v411
  %v416 = vsel %vm396, %v392, %v412
  %v417 = vsel %vm397, %v393, %v413
  %v418 = vsel %vm398, %v394, %v414
  %v419 = vsel %vm90, %v415, 0.0
  %v420 = vsel %vm90, %v416, 0.0
  %v421 = vadd.f32 %v419, %v420
  %v422 = vsel %vm90, %v417, 0.0
  %v423 = vadd.f32 %v421, %v422
  %v424 = vsel %vm90, %v418, 0.0
  %v425 = vadd.f32 %v423, %v424
  %v426 = vrot.slane %v425, 4
  %v427 = vadd.f32 %v425, %v426
  %v428 = vrot.slane %v427, 2
  %v429 = vadd.f32 %v427, %v428
  %v430 = vrot.slane %v429, 1
  %v431 = vadd.f32 %v429, %v430
  %v432 = vrcp.pop 32.0
  %v433 = vmul.f32 %v431, %v432
  %v434 = vsub.f32 %v415, %v433
  %v435 = vsub.f32 %v416, %v433
  %v436 = vsub.f32 %v417, %v433
  %v437 = vsub.f32 %v418, %v433
  %v438 = vmul.f32 %v434, %v434
  %v439 = vmul.f32 %v435, %v435
  %v440 = vmul.f32 %v436, %v436
  %v441 = vmul.f32 %v437, %v437
  %v442 = vsel %vm90, %v438, 0.0
  %v443 = vsel %vm90, %v439, 0.0
  %v444 = vadd.f32 %v442, %v443
  %v445 = vsel %vm90, %v440, 0.0
  %v446 = vadd.f32 %v444, %v445
  %v447 = vsel %vm90, %v441, 0.0
  %v448 = vadd.f32 %v446, %v447
  %v449 = vrot.slane %v448, 4
  %v450 = vadd.f32 %v448, %v449
  %v451 = vrot.slane %v450, 2
  %v452 = vadd.f32 %v450, %v451
  %v453 = vrot.slane %v452, 1
  %v454 = vadd.f32 %v452, %v453
  %v455 = vmul.f32 %v454, %v432
  %v456 = vadd.f32 %v455, 1e-05
  %v457 = vrsqrt.pop %v456
  %v458 = vmul.f32 %v434, %v457
  %v459 = vmul.f32 %v435, %v457
  %v460 = vmul.f32 %v436, %v457
  %v461 = vmul.f32 %v437, %v457
  %v466 = vrot.slane %v458, 7
  %v467 = vrot.slane %v459, 7
  %v468 = vsel %vm48, %v466, %v467
  %v469 = vrot.slane %v460, 7
  %v470 = vsel %vm48, %v467, %v469
  %v471 = vrot.slane %v461, 7
  %v472 = vsel %vm48, %v469, %v471
  %v477 = vsel %vm48, 0.0, %v466
  %v478 = vrot.slane %v458, 1
  %v479 = vrot.slane %v459, 1
  %v480 = vsel %vm61, %v478, %v479
  %v481 = vrot.slane %v460, 1
  %v482 = vsel %vm61, %v479, %v481
  %v483 = vrot.slane %v461, 1
  %v484 = vsel %vm61, %v481, %v483
  %v489 = vsel %vm61, %v483, 0.0
  %v490 = vsel %vm32, 0.0, %v477
  %v491 = vsel %vm33, 0.0, %v468
  %v492 = vsel %vm34, 0.0, %v470
  %v493 = vsel %vm35, 0.0, %v472
  %v494 = vsel %vm40, 0.0, %v480
  %v495 = vsel %vm41, 0.0, %v482
  %v496 = vsel %vm42, 0.0, %v484
  %v497 = vsel %vm43, 0.0, %v489
  %v498 = vld [vmem:[%s1 + $0x68] sm:$0xff]
  %v499 = vld [vmem:[%s1 + $0x70] sm:$0xff]
  %v500 = vld [vmem:[%s1 + $0x78] sm:$0xff]
  %v501 = vld [vmem:[%s1 + $0x80] sm:$0xff]
  %v502 = vld [vmem:[%s1 + $0x88] sm:$0xff]
  %v503 = vld [vmem:[%s1 + $0x90] sm:$0xff]
  %v504 = vld [vmem:[%s1 + $0x98] sm:$0xff]
  %v505 = vld [vmem:[%s1 + $0xa0] sm:$0xff]
  %v506 = vsel %vm90, %v458, 0
  %v508 = vsel %vm90, %v459, 0
  %v510 = vsel %vm90, %v460, 0
  %v512 = vsel %vm90, %v461, 0
  %514 = vmatprep.subr.mxu0 0.0
  %515 = vmatpush1.msra.mxu0 0.0
  %516 = vmatprep.subr.mxu0 0.0
  %517 = vmatpush1.msra.mxu0 0.0
  %518 = vmatprep.subr.mxu0 0.0
  %519 = vmatpush1.msra.mxu0 0.0
  %520 = vmatprep.subr.mxu0 0.0
  %521 = vmatpush1.msra.mxu0 0.0
  %522 = vmatprep.subr.mxu0 0.0
  %523 = vmatpush1.msra.mxu0 0.0
  %524 = vmatprep.subr.mxu0 0.0
  %525 = vmatpush1.msra.mxu0 0.0
  %526 = vmatprep.subr.mxu0 0.0
  %527 = vmatpush1.msra.mxu0 0.0
  %528 = vmatprep.subr.mxu0 0.0
  %529 = vmatpush1.msra.mxu0 0.0
  %530 = vmatprep.subr.mxu0 0.0
  %531 = vmatpush1.msra.mxu0 0.0
  %532 = vmatprep.subr.mxu0 0.0
  %533 = vmatpush1.msra.mxu0 0.0
  %534 = vmatprep.subr.mxu0 0.0
  %535 = vmatpush1.msra.mxu0 0.0
  %536 = vmatprep.subr.mxu0 0.0
  %537 = vmatpush1.msra.mxu0 0.0
  %538 = vmatprep.subr.mxu0 0.0
  %539 = vmatpush1.msra.mxu0 %v505
  %540 = vmatprep.subr.mxu0 0.0
  %541 = vmatpush1.msra.mxu0 %v504
  %542 = vmatprep.subr.mxu0 0.0
  %543 = vmatpush1.msra.mxu0 %v503
  %544 = vmatprep.subr.mxu0 0.0
  %545 = vmatpush1.msra.mxu0 %v502
  %546 = vmatprep.subr.mxu0 0.0
  %547 = vmatpush2.msra.mxu0 0.0
  %548 = vmatprep.subr.mxu0 0.0
  %549 = vmatpush2.msra.mxu0 0.0
  %550 = vmatprep.subr.mxu0 0.0
  %551 = vmatpush2.msra.mxu0 0.0
  %552 = vmatprep.subr.mxu0 0.0
  %553 = vmatpush2.msra.mxu0 0.0
  %554 = vmatprep.subr.mxu0 0.0
  %555 = vmatpush2.msra.mxu0 0.0
  %556 = vmatprep.subr.mxu0 0.0
  %557 = vmatpush2.msra.mxu0 0.0
  %558 = vmatprep.subr.mxu0 0.0
  %559 = vmatpush2.msra.mxu0 0.0
  %560 = vmatprep.subr.mxu0 0.0
  %561 = vmatpush2.msra.mxu0 0.0
  %562 = vmatprep.subr.mxu0 0.0
  %563 = vmatpush2.msra.mxu0 0.0
  %564 = vmatprep.subr.mxu0 0.0
  %565 = vmatpush2.msra.mxu0 0.0
  %566 = vmatprep.subr.mxu0 0.0
  %567 = vmatpush2.msra.mxu0 0.0
  %568 = vmatprep.subr.mxu0 0.0
  %569 = vmatpush2.msra.mxu0 0.0
  %570 = vmatprep.subr.mxu0 0.0
  %571 = vmatpush2.msra.mxu0 0.0
  %572 = vmatprep.subr.mxu0 0.0
  %573 = vmatpush2.msra.mxu0 0.0
  %574 = vmatprep.subr.mxu0 0.0
  %575 = vmatpush2.msra.mxu0 0.0
  %576 = vmatprep.subr.mxu0 0.0
  %577 = vmatpush2.msra.mxu0 0.0
  %578 = vmatprep.mubr.f32.mxu0 0.0
  %579 = vmatmul.mubr.f32.gmra.mxu0 %v506
  %v580 = vpop.f32.mrf.mxu0
  %v581 = vadd.f32 0.0, %v580
  %v582 = vpop.f32.mrf.mxu0
  %583 = vmatprep.mubr.f32.mxu0 0.0
  %584 = vmatmul.mubr.f32.gmra.mxu0 %v508
  %v585 = vpop.f32.mrf.mxu0
  %v586 = vadd.f32 0.0, %v585
  %v587 = vpop.f32.mrf.mxu0
  %588 = vmatprep.mubr.f32.mxu0 0.0
  %589 = vmatmul.mubr.f32.gmra.mxu0 %v510
  %v590 = vpop.f32.mrf.mxu0
  %v591 = vadd.f32 0.0, %v590
  %v592 = vpop.f32.mrf.mxu0
  %593 = vmatprep.mubr.f32.mxu0 0.0
  %594 = vmatmul.mubr.f32.gmra.mxu0 %v512
  %v595 = vpop.f32.mrf.mxu0
  %v596 = vadd.f32 0.0, %v595
  %v597 = vpop.f32.mrf.mxu0
  %598 = vdwg.mxu0
  %v600 = vsel %vm90, %v490, 0
  %v603 = vsel %vm90, %v491, 0
  %v606 = vsel %vm90, %v492, 0
  %v609 = vsel %vm90, %v493, 0
  %611 = vmatprep.subr.mxu0 0.0
  %612 = vmatpush1.msra.mxu0 0.0
  %613 = vmatprep.subr.mxu0 0.0
  %614 = vmatpush1.msra.mxu0 0.0
  %615 = vmatprep.subr.mxu0 0.0
  %616 = vmatpush1.msra.mxu0 0.0
  %617 = vmatprep.subr.mxu0 0.0
  %618 = vmatpush1.msra.mxu0 0.0
  %619 = vmatprep.subr.mxu0 0.0
  %620 = vmatpush1.msra.mxu0 0.0
  %621 = vmatprep.subr.mxu0 0.0
  %622 = vmatpush1.msra.mxu0 0.0
  %623 = vmatprep.subr.mxu0 0.0
  %624 = vmatpush1.msra.mxu0 0.0
  %625 = vmatprep.subr.mxu0 0.0
  %626 = vmatpush1.msra.mxu0 0.0
  %627 = vmatprep.subr.mxu0 0.0
  %628 = vmatpush1.msra.mxu0 0.0
  %629 = vmatprep.subr.mxu0 0.0
  %630 = vmatpush1.msra.mxu0 0.0
  %631 = vmatprep.subr.mxu0 0.0
  %632 = vmatpush1.msra.mxu0 0.0
  %633 = vmatprep.subr.mxu0 0.0
  %634 = vmatpush1.msra.mxu0 0.0
  %635 = vmatprep.subr.mxu0 0.0
  %636 = vmatpush1.msra.mxu0 %v501
  %637 = vmatprep.subr.mxu0 0.0
  %638 = vmatpush1.msra.mxu0 %v500
  %639 = vmatprep.subr.mxu0 0.0
  %640 = vmatpush1.msra.mxu0 %v499
  %641 = vmatprep.subr.mxu0 0.0
  %642 = vmatpush1.msra.mxu0 %v498
  %643 = vmatprep.subr.mxu0 0.0
  %644 = vmatpush2.msra.mxu0 0.0
  %645 = vmatprep.subr.mxu0 0.0
  %646 = vmatpush2.msra.mxu0 0.0
  %647 = vmatprep.subr.mxu0 0.0
  %648 = vmatpush2.msra.mxu0 0.0
  %649 = vmatprep.subr.mxu0 0.0
  %650 = vmatpush2.msra.mxu0 0.0
  %651 = vmatprep.subr.mxu0 0.0
  %652 = vmatpush2.msra.mxu0 0.0
  %653 = vmatprep.subr.mxu0 0.0
  %654 = vmatpush2.msra.mxu0 0.0
  %655 = vmatprep.subr.mxu0 0.0
  %656 = vmatpush2.msra.mxu0 0.0
  %657 = vmatprep.subr.mxu0 0.0
  %658 = vmatpush2.msra.mxu0 0.0
  %659 = vmatprep.subr.mxu0 0.0
  %660 = vmatpush2.msra.mxu0 0.0
  %661 = vmatprep.subr.mxu0 0.0
  %662 = vmatpush2.msra.mxu0 0.0
  %663 = vmatprep.subr.mxu0 0.0
  %664 = vmatpush2.msra.mxu0 0.0
  %665 = vmatprep.subr.mxu0 0.0
  %666 = vmatpush2.msra.mxu0 0.0
  %667 = vmatprep.subr.mxu0 0.0
  %668 = vmatpush2.msra.mxu0 0.0
  %669 = vmatprep.subr.mxu0 0.0
  %670 = vmatpush2.msra.mxu0 0.0
  %671 = vmatprep.subr.mxu0 0.0
  %672 = vmatpush2.msra.mxu0 0.0
  %673 = vmatprep.subr.mxu0 0.0
  %674 = vmatpush2.msra.mxu0 0.0
  %675 = vmatprep.mubr.f32.mxu0 0.0
  %676 = vmatmul.mubr.f32.gmra.mxu0 %v600
  %v677 = vpop.f32.mrf.mxu0
  %v678 = vadd.f32 %v581, %v677
  %v679 = vpop.f32.mrf.mxu0
  %680 = vmatprep.mubr.f32.mxu0 0.0
  %681 = vmatmul.mubr.f32.gmra.mxu0 %v603
  %v682 = vpop.f32.mrf.mxu0
  %v683 = vadd.f32 %v586, %v682
  %v684 = vpop.f32.mrf.mxu0
  %685 = vmatprep.mubr.f32.mxu0 0.0
  %686 = vmatmul.mubr.f32.gmra.mxu0 %v606
  %v687 = vpop.f32.mrf.mxu0
  %v688 = vadd.f32 %v591, %v687
  %v689 = vpop.f32.mrf.mxu0
  %690 = vmatprep.mubr.f32.mxu0 0.0
  %691 = vmatmul.mubr.f32.gmra.mxu0 %v609
  %v692 = vpop.f32.mrf.mxu0
  %v693 = vadd.f32 %v596, %v692
  %v694 = vpop.f32.mrf.mxu0
  %695 = vdwg.mxu0
  %v696 = vld [vmem:[%s1 + $0xa8] sm:$0xff]
  %v697 = vld [vmem:[%s1 + $0xb0] sm:$0xff]
  %v698 = vld [vmem:[%s1 + $0xb8] sm:$0xff]
  %v699 = vld [vmem:[%s1 + $0xc0] sm:$0xff]
  %v701 = vsel %vm90, %v494, 0
  %v704 = vsel %vm90, %v495, 0
  %v707 = vsel %vm90, %v496, 0
  %v710 = vsel %vm90, %v497, 0
  %712 = vmatprep.subr.mxu0 0.0
  %713 = vmatpush1.msra.mxu0 0.0
  %714 = vmatprep.subr.mxu0 0.0
  %715 = vmatpush1.msra.mxu0 0.0
  %716 = vmatprep.subr.mxu0 0.0
  %717 = vmatpush1.msra.mxu0 0.0
  %718 = vmatprep.subr.mxu0 0.0
  %719 = vmatpush1.msra.mxu0 0.0
  %720 = vmatprep.subr.mxu0 0.0
  %721 = vmatpush1.msra.mxu0 0.0
  %722 = vmatprep.subr.mxu0 0.0
  %723 = vmatpush1.msra.mxu0 0.0
  %724 = vmatprep.subr.mxu0 0.0
  %725 = vmatpush1.msra.mxu0 0.0
  %726 = vmatprep.subr.mxu0 0.0
  %727 = vmatpush1.msra.mxu0 0.0
  %728 = vmatprep.subr.mxu0 0.0
  %729 = vmatpush1.msra.mxu0 0.0
  %730 = vmatprep.subr.mxu0 0.0
  %731 = vmatpush1.msra.mxu0 0.0
  %732 = vmatprep.subr.mxu0 0.0
  %733 = vmatpush1.msra.mxu0 0.0
  %734 = vmatprep.subr.mxu0 0.0
  %735 = vmatpush1.msra.mxu0 0.0
  %736 = vmatprep.subr.mxu0 0.0
  %737 = vmatpush1.msra.mxu0 %v699
  %738 = vmatprep.subr.mxu0 0.0
  %739 = vmatpush1.msra.mxu0 %v698
  %740 = vmatprep.subr.mxu0 0.0
  %741 = vmatpush1.msra.mxu0 %v697
  %742 = vmatprep.subr.mxu0 0.0
  %743 = vmatpush1.msra.mxu0 %v696
  %744 = vmatprep.subr.mxu0 0.0
  %745 = vmatpush2.msra.mxu0 0.0
  %746 = vmatprep.subr.mxu0 0.0
  %747 = vmatpush2.msra.mxu0 0.0
  %748 = vmatprep.subr.mxu0 0.0
  %749 = vmatpush2.msra.mxu0 0.0
  %750 = vmatprep.subr.mxu0 0.0
  %751 = vmatpush2.msra.mxu0 0.0
  %752 = vmatprep.subr.mxu0 0.0
  %753 = vmatpush2.msra.mxu0 0.0
  %754 = vmatprep.subr.mxu0 0.0
  %755 = vmatpush2.msra.mxu0 0.0
  %756 = vmatprep.subr.mxu0 0.0
  %757 = vmatpush2.msra.mxu0 0.0
  %758 = vmatprep.subr.mxu0 0.0
  %759 = vmatpush2.msra.mxu0 0.0
  %760 = vmatprep.subr.mxu0 0.0
  %761 = vmatpush2.msra.mxu0 0.0
  %762 = vmatprep.subr.mxu0 0.0
  %763 = vmatpush2.msra.mxu0 0.0
  %764 = vmatprep.subr.mxu0 0.0
  %765 = vmatpush2.msra.mxu0 0.0
  %766 = vmatprep.subr.mxu0 0.0
  %767 = vmatpush2.msra.mxu0 0.0
  %768 = vmatprep.subr.mxu0 0.0
  %769 = vmatpush2.msra.mxu0 0.0
  %770 = vmatprep.subr.mxu0 0.0
  %771 = vmatpush2.msra.mxu0 0.0
  %772 = vmatprep.subr.mxu0 0.0
  %773 = vmatpush2.msra.mxu0 0.0
  %774 = vmatprep.subr.mxu0 0.0
  %775 = vmatpush2.msra.mxu0 0.0
  %776 = vmatprep.mubr.f32.mxu0 0.0
  %777 = vmatmul.mubr.f32.gmra.mxu0 %v701
  %v778 = vpop.f32.mrf.mxu0
  %v779 = vadd.f32 0.0, %v778
  %v780 = vpop.f32.mrf.mxu0
  %781 = vmatprep.mubr.f32.mxu0 0.0
  %782 = vmatmul.mubr.f32.gmra.mxu0 %v704
  %v783 = vpop.f32.mrf.mxu0
  %v784 = vadd.f32 0.0, %v783
  %v785 = vpop.f32.mrf.mxu0
  %786 = vmatprep.mubr.f32.mxu0 0.0
  %787 = vmatmul.mubr.f32.gmra.mxu0 %v707
  %v788 = vpop.f32.mrf.mxu0
  %v789 = vadd.f32 0.0, %v788
  %v790 = vpop.f32.mrf.mxu0
  %791 = vmatprep.mubr.f32.mxu0 0.0
  %792 = vmatmul.mubr.f32.gmra.mxu0 %v710
  %v793 = vpop.f32.mrf.mxu0
  %v794 = vadd.f32 0.0, %v793
  %v795 = vpop.f32.mrf.mxu0
  %796 = vdwg.mxu0
  %v797 = vadd.f32 %v678, %v779
  %v798 = vadd.f32 %v683, %v784
  %v799 = vadd.f32 %v688, %v789
  %v800 = vadd.f32 %v693, %v794
  %v801 = vld [vmem:[%s1 + $0x128] sm:$0x1]
  %v802 = vlaneseq
  %v803 = vshrl.u32 %v802, 7
  %v804 = vsub.s32 0, %v803
  %v805 = vrot.slane %v801, %v804
  %v806 = vadd.f32 %v797, %v805
  %v807 = vadd.f32 %v798, %v805
  %v808 = vadd.f32 %v799, %v805
  %v809 = vadd.f32 %v800, %v805
  %v810 = vld [vmem:[%s1 + $0xc8] sm:$0xff]
  %v811 = vld [vmem:[%s1 + $0xd0] sm:$0xff]
  %v812 = vld [vmem:[%s1 + $0xd8] sm:$0xff]
  %v813 = vld [vmem:[%s1 + $0xe0] sm:$0xff]
  %v814 = vld [vmem:[%s1 + $0xe8] sm:$0xff]
  %v815 = vld [vmem:[%s1 + $0xf0] sm:$0xff]
  %v816 = vld [vmem:[%s1 + $0xf8] sm:$0xff]
  %v817 = vld [vmem:[%s1 + $0x100] sm:$0xff]
  %818 = vmatprep.subr.mxu0 0.0
  %819 = vmatpush1.msra.mxu0 0.0
  %820 = vmatprep.subr.mxu0 0.0
  %821 = vmatpush1.msra.mxu0 0.0
  %822 = vmatprep.subr.mxu0 0.0
  %823 = vmatpush1.msra.mxu0 0.0
  %824 = vmatprep.subr.mxu0 0.0
  %825 = vmatpush1.msra.mxu0 0.0
  %826 = vmatprep.subr.mxu0 0.0
  %827 = vmatpush1.msra.mxu0 0.0
  %828 = vmatprep.subr.mxu0 0.0
  %829 = vmatpush1.msra.mxu0 0.0
  %830 = vmatprep.subr.mxu0 0.0
  %831 = vmatpush1.msra.mxu0 0.0
  %832 = vmatprep.subr.mxu0 0.0
  %833 = vmatpush1.msra.mxu0 0.0
  %834 = vmatprep.subr.mxu0 0.0
  %835 = vmatpush1.msra.mxu0 0.0
  %836 = vmatprep.subr.mxu0 0.0
  %837 = vmatpush1.msra.mxu0 0.0
  %838 = vmatprep.subr.mxu0 0.0
  %839 = vmatpush1.msra.mxu0 0.0
  %840 = vmatprep.subr.mxu0 0.0
  %841 = vmatpush1.msra.mxu0 0.0
  %842 = vmatprep.subr.mxu0 0.0
  %843 = vmatpush1.msra.mxu0 %v817
  %844 = vmatprep.subr.mxu0 0.0
  %845 = vmatpush1.msra.mxu0 %v816
  %846 = vmatprep.subr.mxu0 0.0
  %847 = vmatpush1.msra.mxu0 %v815
  %848 = vmatprep.subr.mxu0 0.0
  %849 = vmatpush1.msra.mxu0 %v814
  %850 = vmatprep.subr.mxu0 0.0
  %851 = vmatpush2.msra.mxu0 0.0
  %852 = vmatprep.subr.mxu0 0.0
  %853 = vmatpush2.msra.mxu0 0.0
  %854 = vmatprep.subr.mxu0 0.0
  %855 = vmatpush2.msra.mxu0 0.0
  %856 = vmatprep.subr.mxu0 0.0
  %857 = vmatpush2.msra.mxu0 0.0
  %858 = vmatprep.subr.mxu0 0.0
  %859 = vmatpush2.msra.mxu0 0.0
  %860 = vmatprep.subr.mxu0 0.0
  %861 = vmatpush2.msra.mxu0 0.0
  %862 = vmatprep.subr.mxu0 0.0
  %863 = vmatpush2.msra.mxu0 0.0
  %864 = vmatprep.subr.mxu0 0.0
  %865 = vmatpush2.msra.mxu0 0.0
  %866 = vmatprep.subr.mxu0 0.0
  %867 = vmatpush2.msra.mxu0 0.0
  %868 = vmatprep.subr.mxu0 0.0
  %869 = vmatpush2.msra.mxu0 0.0
  %870 = vmatprep.subr.mxu0 0.0
  %871 = vmatpush2.msra.mxu0 0.0
  %872 = vmatprep.subr.mxu0 0.0
  %873 = vmatpush2.msra.mxu0 0.0
  %874 = vmatprep.subr.mxu0 0.0
  %875 = vmatpush2.msra.mxu0 0.0
  %876 = vmatprep.subr.mxu0 0.0
  %877 = vmatpush2.msra.mxu0 0.0
  %878 = vmatprep.subr.mxu0 0.0
  %879 = vmatpush2.msra.mxu0 0.0
  %880 = vmatprep.subr.mxu0 0.0
  %881 = vmatpush2.msra.mxu0 0.0
  %882 = vmatprep.mubr.f32.mxu0 0.0
  %883 = vmatmul.mubr.f32.gmra.mxu0 %v506
  %v884 = vpop.f32.mrf.mxu0
  %v885 = vadd.f32 0.0, %v884
  %v886 = vpop.f32.mrf.mxu0
  %887 = vmatprep.mubr.f32.mxu0 0.0
  %888 = vmatmul.mubr.f32.gmra.mxu0 %v508
  %v889 = vpop.f32.mrf.mxu0
  %v890 = vadd.f32 0.0, %v889
  %v891 = vpop.f32.mrf.mxu0
  %892 = vmatprep.mubr.f32.mxu0 0.0
  %893 = vmatmul.mubr.f32.gmra.mxu0 %v510
  %v894 = vpop.f32.mrf.mxu0
  %v895 = vadd.f32 0.0, %v894
  %v896 = vpop.f32.mrf.mxu0
  %897 = vmatprep.mubr.f32.mxu0 0.0
  %898 = vmatmul.mubr.f32.gmra.mxu0 %v512
  %v899 = vpop.f32.mrf.mxu0
  %v900 = vadd.f32 0.0, %v899
  %v901 = vpop.f32.mrf.mxu0
  %902 = vdwg.mxu0
  %903 = vmatprep.subr.mxu0 0.0
  %904 = vmatpush1.msra.mxu0 0.0
  %905 = vmatprep.subr.mxu0 0.0
  %906 = vmatpush1.msra.mxu0 0.0
  %907 = vmatprep.subr.mxu0 0.0
  %908 = vmatpush1.msra.mxu0 0.0
  %909 = vmatprep.subr.mxu0 0.0
  %910 = vmatpush1.msra.mxu0 0.0
  %911 = vmatprep.subr.mxu0 0.0
  %912 = vmatpush1.msra.mxu0 0.0
  %913 = vmatprep.subr.mxu0 0.0
  %914 = vmatpush1.msra.mxu0 0.0
  %915 = vmatprep.subr.mxu0 0.0
  %916 = vmatpush1.msra.mxu0 0.0
  %917 = vmatprep.subr.mxu0 0.0
  %918 = vmatpush1.msra.mxu0 0.0
  %919 = vmatprep.subr.mxu0 0.0
  %920 = vmatpush1.msra.mxu0 0.0
  %921 = vmatprep.subr.mxu0 0.0
  %922 = vmatpush1.msra.mxu0 0.0
  %923 = vmatprep.subr.mxu0 0.0
  %924 = vmatpush1.msra.mxu0 0.0
  %925 = vmatprep.subr.mxu0 0.0
  %926 = vmatpush1.msra.mxu0 0.0
  %927 = vmatprep.subr.mxu0 0.0
  %928 = vmatpush1.msra.mxu0 %v813
  %929 = vmatprep.subr.mxu0 0.0
  %930 = vmatpush1.msra.mxu0 %v812
  %931 = vmatprep.subr.mxu0 0.0
  %932 = vmatpush1.msra.mxu0 %v811
  %933 = vmatprep.subr.mxu0 0.0
  %934 = vmatpush1.msra.mxu0 %v810
  %935 = vmatprep.subr.mxu0 0.0
  %936 = vmatpush2.msra.mxu0 0.0
  %937 = vmatprep.subr.mxu0 0.0
  %938 = vmatpush2.msra.mxu0 0.0
  %939 = vmatprep.subr.mxu0 0.0
  %940 = vmatpush2.msra.mxu0 0.0
  %941 = vmatprep.subr.mxu0 0.0
  %942 = vmatpush2.msra.mxu0 0.0
  %943 = vmatprep.subr.mxu0 0.0
  %944 = vmatpush2.msra.mxu0 0.0
  %945 = vmatprep.subr.mxu0 0.0
  %946 = vmatpush2.msra.mxu0 0.0
  %947 = vmatprep.subr.mxu0 0.0
  %948 = vmatpush2.msra.mxu0 0.0
  %949 = vmatprep.subr.mxu0 0.0
  %950 = vmatpush2.msra.mxu0 0.0
  %951 = vmatprep.subr.mxu0 0.0
  %952 = vmatpush2.msra.mxu0 0.0
  %953 = vmatprep.subr.mxu0 0.0
  %954 = vmatpush2.msra.mxu0 0.0
  %955 = vmatprep.subr.mxu0 0.0
  %956 = vmatpush2.msra.mxu0 0.0
  %957 = vmatprep.subr.mxu0 0.0
  %958 = vmatpush2.msra.mxu0 0.0
  %959 = vmatprep.subr.mxu0 0.0
  %960 = vmatpush2.msra.mxu0 0.0
  %961 = vmatprep.subr.mxu0 0.0
  %962 = vmatpush2.msra.mxu0 0.0
  %963 = vmatprep.subr.mxu0 0.0
  %964 = vmatpush2.msra.mxu0 0.0
  %965 = vmatprep.subr.mxu0 0.0
  %966 = vmatpush2.msra.mxu0 0.0
  %967 = vmatprep.mubr.f32.mxu0 0.0
  %968 = vmatmul.mubr.f32.gmra.mxu0 %v600
  %v969 = vpop.f32.mrf.mxu0
  %v970 = vadd.f32 %v885, %v969
  %v971 = vpop.f32.mrf.mxu0
  %972 = vmatprep.mubr.f32.mxu0 0.0
  %973 = vmatmul.mubr.f32.gmra.mxu0 %v603
  %v974 = vpop.f32.mrf.mxu0
  %v975 = vadd.f32 %v890, %v974
  %v976 = vpop.f32.mrf.mxu0
  %977 = vmatprep.mubr.f32.mxu0 0.0
  %978 = vmatmul.mubr.f32.gmra.mxu0 %v606
  %v979 = vpop.f32.mrf.mxu0
  %v980 = vadd.f32 %v895, %v979
  %v981 = vpop.f32.mrf.mxu0
  %982 = vmatprep.mubr.f32.mxu0 0.0
  %983 = vmatmul.mubr.f32.gmra.mxu0 %v609
  %v984 = vpop.f32.mrf.mxu0
  %v985 = vadd.f32 %v900, %v984
  %v986 = vpop.f32.mrf.mxu0
  %987 = vdwg.mxu0
  %v988 = vld [vmem:[%s1 + $0x108] sm:$0xff]
  %v989 = vld [vmem:[%s1 + $0x110] sm:$0xff]
  %v990 = vld [vmem:[%s1 + $0x118] sm:$0xff]
  %v991 = vld [vmem:[%s1 + $0x120] sm:$0xff]
  %992 = vmatprep.subr.mxu0 0.0
  %993 = vmatpush1.msra.mxu0 0.0
  %994 = vmatprep.subr.mxu0 0.0
  %995 = vmatpush1.msra.mxu0 0.0
  %996 = vmatprep.subr.mxu0 0.0
  %997 = vmatpush1.msra.mxu0 0.0
  %998 = vmatprep.subr.mxu0 0.0
  %999 = vmatpush1.msra.mxu0 0.0
  %1000 = vmatprep.subr.mxu0 0.0
  %1001 = vmatpush1.msra.mxu0 0.0
  %1002 = vmatprep.subr.mxu0 0.0
  %1003 = vmatpush1.msra.mxu0 0.0
  %1004 = vmatprep.subr.mxu0 0.0
  %1005 = vmatpush1.msra.mxu0 0.0
  %1006 = vmatprep.subr.mxu0 0.0
  %1007 = vmatpush1.msra.mxu0 0.0
  %1008 = vmatprep.subr.mxu0 0.0
  %1009 = vmatpush1.msra.mxu0 0.0
  %1010 = vmatprep.subr.mxu0 0.0
  %1011 = vmatpush1.msra.mxu0 0.0
  %1012 = vmatprep.subr.mxu0 0.0
  %1013 = vmatpush1.msra.mxu0 0.0
  %1014 = vmatprep.subr.mxu0 0.0
  %1015 = vmatpush1.msra.mxu0 0.0
  %1016 = vmatprep.subr.mxu0 0.0
  %1017 = vmatpush1.msra.mxu0 %v991
  %1018 = vmatprep.subr.mxu0 0.0
  %1019 = vmatpush1.msra.mxu0 %v990
  %1020 = vmatprep.subr.mxu0 0.0
  %1021 = vmatpush1.msra.mxu0 %v989
  %1022 = vmatprep.subr.mxu0 0.0
  %1023 = vmatpush1.msra.mxu0 %v988
  %1024 = vmatprep.subr.mxu0 0.0
  %1025 = vmatpush2.msra.mxu0 0.0
  %1026 = vmatprep.subr.mxu0 0.0
  %1027 = vmatpush2.msra.mxu0 0.0
  %1028 = vmatprep.subr.mxu0 0.0
  %1029 = vmatpush2.msra.mxu0 0.0
  %1030 = vmatprep.subr.mxu0 0.0
  %1031 = vmatpush2.msra.mxu0 0.0
  %1032 = vmatprep.subr.mxu0 0.0
  %1033 = vmatpush2.msra.mxu0 0.0
  %1034 = vmatprep.subr.mxu0 0.0
  %1035 = vmatpush2.msra.mxu0 0.0
  %1036 = vmatprep.subr.mxu0 0.0
  %1037 = vmatpush2.msra.mxu0 0.0
  %1038 = vmatprep.subr.mxu0 0.0
  %1039 = vmatpush2.msra.mxu0 0.0
  %1040 = vmatprep.subr.mxu0 0.0
  %1041 = vmatpush2.msra.mxu0 0.0
  %1042 = vmatprep.subr.mxu0 0.0
  %1043 = vmatpush2.msra.mxu0 0.0
  %1044 = vmatprep.subr.mxu0 0.0
  %1045 = vmatpush2.msra.mxu0 0.0
  %1046 = vmatprep.subr.mxu0 0.0
  %1047 = vmatpush2.msra.mxu0 0.0
  %1048 = vmatprep.subr.mxu0 0.0
  %1049 = vmatpush2.msra.mxu0 0.0
  %1050 = vmatprep.subr.mxu0 0.0
  %1051 = vmatpush2.msra.mxu0 0.0
  %1052 = vmatprep.subr.mxu0 0.0
  %1053 = vmatpush2.msra.mxu0 0.0
  %1054 = vmatprep.subr.mxu0 0.0
  %1055 = vmatpush2.msra.mxu0 0.0
  %1056 = vmatprep.mubr.f32.mxu0 0.0
  %1057 = vmatmul.mubr.f32.gmra.mxu0 %v701
  %v1058 = vpop.f32.mrf.mxu0
  %v1059 = vadd.f32 0.0, %v1058
  %v1060 = vpop.f32.mrf.mxu0
  %1061 = vmatprep.mubr.f32.mxu0 0.0
  %1062 = vmatmul.mubr.f32.gmra.mxu0 %v704
  %v1063 = vpop.f32.mrf.mxu0
  %v1064 = vadd.f32 0.0, %v1063
  %v1065 = vpop.f32.mrf.mxu0
  %1066 = vmatprep.mubr.f32.mxu0 0.0
  %1067 = vmatmul.mubr.f32.gmra.mxu0 %v707
  %v1068 = vpop.f32.mrf.mxu0
  %v1069 = vadd.f32 0.0, %v1068
  %v1070 = vpop.f32.mrf.mxu0
  %1071 = vmatprep.mubr.f32.mxu0 0.0
  %1072 = vmatmul.mubr.f32.gmra.mxu0 %v710
  %v1073 = vpop.f32.mrf.mxu0
  %v1074 = vadd.f32 0.0, %v1073
  %v1075 = vpop.f32.mrf.mxu0
  %1076 = vdwg.mxu0
  %v1077 = vadd.f32 %v970, %v1059
  %v1078 = vadd.f32 %v975, %v1064
  %v1079 = vadd.f32 %v980, %v1069
  %v1080 = vadd.f32 %v985, %v1074
  %v1081 = vld [vmem:[%s1 + $0x130] sm:$0x1]
  %v1082 = vlaneseq
  %v1083 = vshrl.u32 %v1082, 7
  %v1084 = vsub.s32 0, %v1083
  %v1085 = vrot.slane %v1081, %v1084
  %v1086 = vadd.f32 %v1077, %v1085
  %v1087 = vadd.f32 %v1078, %v1085
  %v1088 = vadd.f32 %v1079, %v1085
  %v1089 = vadd.f32 %v1080, %v1085
  %v1090 = vmul.f32 %v1086, 0.5
  %v1091 = vmul.f32 %v1087, 0.5
  %v1092 = vmul.f32 %v1088, 0.5
  %v1093 = vmul.f32 %v1089, 0.5
  %v1094 = vtanh.pop %v1090
  %v1095 = vtanh.pop %v1091
  %v1096 = vtanh.pop %v1092
  %v1097 = vtanh.pop %v1093
  %v1098 = vmul.f32 %v1094, 0.5
  %v1099 = vmul.f32 %v1095, 0.5
  %v1100 = vmul.f32 %v1096, 0.5
  %v1101 = vmul.f32 %v1097, 0.5
  %v1102 = vadd.f32 %v1098, 0.5
  %v1103 = vadd.f32 %v1099, 0.5
  %v1104 = vadd.f32 %v1100, 0.5
  %v1105 = vadd.f32 %v1101, 0.5
  %v1106 = vmul.f32 %v806, %v1102
  %v1107 = vmul.f32 %v807, %v1103
  %v1108 = vmul.f32 %v808, %v1104
  %v1109 = vmul.f32 %v809, %v1105
  %v1110 = vsel %vm90, %v1106, 0.0
  %v1111 = vsel %vm90, %v1107, 0.0
  %v1112 = vadd.f32 %v1110, %v1111
  %v1113 = vsel %vm90, %v1108, 0.0
  %v1114 = vadd.f32 %v1112, %v1113
  %v1115 = vsel %vm90, %v1109, 0.0
  %v1116 = vadd.f32 %v1114, %v1115
  %v1117 = vrot.slane %v1116, 4
  %v1118 = vadd.f32 %v1116, %v1117
  %v1119 = vrot.slane %v1118, 2
  %v1120 = vadd.f32 %v1118, %v1119
  %v1121 = vrot.slane %v1120, 1
  %v1122 = vadd.f32 %v1120, %v1121
  %v1123 = vmul.f32 %v1122, %v432
  %v1124 = vsub.f32 %v1106, %v1123
  %v1125 = vsub.f32 %v1107, %v1123
  %v1126 = vsub.f32 %v1108, %v1123
  %v1127 = vsub.f32 %v1109, %v1123
  %v1128 = vmul.f32 %v1124, %v1124
  %v1129 = vmul.f32 %v1125, %v1125
  %v1130 = vmul.f32 %v1126, %v1126
  %v1131 = vmul.f32 %v1127, %v1127
  %v1132 = vsel %vm90, %v1128, 0.0
  %v1133 = vsel %vm90, %v1129, 0.0
  %v1134 = vadd.f32 %v1132, %v1133
  %v1135 = vsel %vm90, %v1130, 0.0
  %v1136 = vadd.f32 %v1134, %v1135
  %v1137 = vsel %vm90, %v1131, 0.0
  %v1138 = vadd.f32 %v1136, %v1137
  %v1139 = vrot.slane %v1138, 4
  %v1140 = vadd.f32 %v1138, %v1139
  %v1141 = vrot.slane %v1140, 2
  %v1142 = vadd.f32 %v1140, %v1141
  %v1143 = vrot.slane %v1142, 1
  %v1144 = vadd.f32 %v1142, %v1143
  %v1145 = vmul.f32 %v1144, %v432
  %v1146 = vadd.f32 %v1145, 1e-05
  %v1147 = vrsqrt.pop %v1146
  %v1148 = vmul.f32 %v1124, %v1147
  %v1149 = vmul.f32 %v1125, %v1147
  %v1150 = vmul.f32 %v1126, %v1147
  %v1151 = vmul.f32 %v1127, %v1147
  %v1156 = vrot.slane %v1148, 7
  %v1157 = vrot.slane %v1149, 7
  %v1158 = vsel %vm48, %v1156, %v1157
  %v1159 = vrot.slane %v1150, 7
  %v1160 = vsel %vm48, %v1157, %v1159
  %v1161 = vrot.slane %v1151, 7
  %v1162 = vsel %vm48, %v1159, %v1161
  %v1167 = vsel %vm48, 0.0, %v1156
  %v1168 = vrot.slane %v1148, 1
  %v1169 = vrot.slane %v1149, 1
  %v1170 = vsel %vm61, %v1168, %v1169
  %v1171 = vrot.slane %v1150, 1
  %v1172 = vsel %vm61, %v1169, %v1171
  %v1173 = vrot.slane %v1151, 1
  %v1174 = vsel %vm61, %v1171, %v1173
  %v1179 = vsel %vm61, %v1173, 0.0
  %v1180 = vsel %vm32, 0.0, %v1167
  %v1181 = vsel %vm33, 0.0, %v1158
  %v1182 = vsel %vm34, 0.0, %v1160
  %v1183 = vsel %vm35, 0.0, %v1162
  %v1184 = vsel %vm40, 0.0, %v1170
  %v1185 = vsel %vm41, 0.0, %v1172
  %v1186 = vsel %vm42, 0.0, %v1174
  %v1187 = vsel %vm43, 0.0, %v1179
  %v1188 = vld [vmem:[%s1 + $0x138] sm:$0xff]
  %v1189 = vld [vmem:[%s1 + $0x140] sm:$0xff]
  %v1190 = vld [vmem:[%s1 + $0x148] sm:$0xff]
  %v1191 = vld [vmem:[%s1 + $0x150] sm:$0xff]
  %v1192 = vld [vmem:[%s1 + $0x158] sm:$0xff]
  %v1193 = vld [vmem:[%s1 + $0x160] sm:$0xff]
  %v1194 = vld [vmem:[%s1 + $0x168] sm:$0xff]
  %v1195 = vld [vmem:[%s1 + $0x170] sm:$0xff]
  %v1196 = vsel %vm90, %v1148, 0
  %v1198 = vsel %vm90, %v1149, 0
  %v1200 = vsel %vm90, %v1150, 0
  %v1202 = vsel %vm90, %v1151, 0
  %1204 = vmatprep.subr.mxu0 0.0
  %1205 = vmatpush1.msra.mxu0 0.0
  %1206 = vmatprep.subr.mxu0 0.0
  %1207 = vmatpush1.msra.mxu0 0.0
  %1208 = vmatprep.subr.mxu0 0.0
  %1209 = vmatpush1.msra.mxu0 0.0
  %1210 = vmatprep.subr.mxu0 0.0
  %1211 = vmatpush1.msra.mxu0 0.0
  %1212 = vmatprep.subr.mxu0 0.0
  %1213 = vmatpush1.msra.mxu0 0.0
  %1214 = vmatprep.subr.mxu0 0.0
  %1215 = vmatpush1.msra.mxu0 0.0
  %1216 = vmatprep.subr.mxu0 0.0
  %1217 = vmatpush1.msra.mxu0 0.0
  %1218 = vmatprep.subr.mxu0 0.0
  %1219 = vmatpush1.msra.mxu0 0.0
  %1220 = vmatprep.subr.mxu0 0.0
  %1221 = vmatpush1.msra.mxu0 0.0
  %1222 = vmatprep.subr.mxu0 0.0
  %1223 = vmatpush1.msra.mxu0 0.0
  %1224 = vmatprep.subr.mxu0 0.0
  %1225 = vmatpush1.msra.mxu0 0.0
  %1226 = vmatprep.subr.mxu0 0.0
  %1227 = vmatpush1.msra.mxu0 0.0
  %1228 = vmatprep.subr.mxu0 0.0
  %1229 = vmatpush1.msra.mxu0 %v1195
  %1230 = vmatprep.subr.mxu0 0.0
  %1231 = vmatpush1.msra.mxu0 %v1194
  %1232 = vmatprep.subr.mxu0 0.0
  %1233 = vmatpush1.msra.mxu0 %v1193
  %1234 = vmatprep.subr.mxu0 0.0
  %1235 = vmatpush1.msra.mxu0 %v1192
  %1236 = vmatprep.subr.mxu0 0.0
  %1237 = vmatpush2.msra.mxu0 0.0
  %1238 = vmatprep.subr.mxu0 0.0
  %1239 = vmatpush2.msra.mxu0 0.0
  %1240 = vmatprep.subr.mxu0 0.0
  %1241 = vmatpush2.msra.mxu0 0.0
  %1242 = vmatprep.subr.mxu0 0.0
  %1243 = vmatpush2.msra.mxu0 0.0
  %1244 = vmatprep.subr.mxu0 0.0
  %1245 = vmatpush2.msra.mxu0 0.0
  %1246 = vmatprep.subr.mxu0 0.0
  %1247 = vmatpush2.msra.mxu0 0.0
  %1248 = vmatprep.subr.mxu0 0.0
  %1249 = vmatpush2.msra.mxu0 0.0
  %1250 = vmatprep.subr.mxu0 0.0
  %1251 = vmatpush2.msra.mxu0 0.0
  %1252 = vmatprep.subr.mxu0 0.0
  %1253 = vmatpush2.msra.mxu0 0.0
  %1254 = vmatprep.subr.mxu0 0.0
  %1255 = vmatpush2.msra.mxu0 0.0
  %1256 = vmatprep.subr.mxu0 0.0
  %1257 = vmatpush2.msra.mxu0 0.0
  %1258 = vmatprep.subr.mxu0 0.0
  %1259 = vmatpush2.msra.mxu0 0.0
  %1260 = vmatprep.subr.mxu0 0.0
  %1261 = vmatpush2.msra.mxu0 0.0
  %1262 = vmatprep.subr.mxu0 0.0
  %1263 = vmatpush2.msra.mxu0 0.0
  %1264 = vmatprep.subr.mxu0 0.0
  %1265 = vmatpush2.msra.mxu0 0.0
  %1266 = vmatprep.subr.mxu0 0.0
  %1267 = vmatpush2.msra.mxu0 0.0
  %1268 = vmatprep.mubr.f32.mxu0 0.0
  %1269 = vmatmul.mubr.f32.gmra.mxu0 %v1196
  %v1270 = vpop.f32.mrf.mxu0
  %v1271 = vadd.f32 0.0, %v1270
  %v1272 = vpop.f32.mrf.mxu0
  %1273 = vmatprep.mubr.f32.mxu0 0.0
  %1274 = vmatmul.mubr.f32.gmra.mxu0 %v1198
  %v1275 = vpop.f32.mrf.mxu0
  %v1276 = vadd.f32 0.0, %v1275
  %v1277 = vpop.f32.mrf.mxu0
  %1278 = vmatprep.mubr.f32.mxu0 0.0
  %1279 = vmatmul.mubr.f32.gmra.mxu0 %v1200
  %v1280 = vpop.f32.mrf.mxu0
  %v1281 = vadd.f32 0.0, %v1280
  %v1282 = vpop.f32.mrf.mxu0
  %1283 = vmatprep.mubr.f32.mxu0 0.0
  %1284 = vmatmul.mubr.f32.gmra.mxu0 %v1202
  %v1285 = vpop.f32.mrf.mxu0
  %v1286 = vadd.f32 0.0, %v1285
  %v1287 = vpop.f32.mrf.mxu0
  %1288 = vdwg.mxu0
  %v1290 = vsel %vm90, %v1180, 0
  %v1293 = vsel %vm90, %v1181, 0
  %v1296 = vsel %vm90, %v1182, 0
  %v1299 = vsel %vm90, %v1183, 0
  %1301 = vmatprep.subr.mxu0 0.0
  %1302 = vmatpush1.msra.mxu0 0.0
  %1303 = vmatprep.subr.mxu0 0.0
  %1304 = vmatpush1.msra.mxu0 0.0
  %1305 = vmatprep.subr.mxu0 0.0
  %1306 = vmatpush1.msra.mxu0 0.0
  %1307 = vmatprep.subr.mxu0 0.0
  %1308 = vmatpush1.msra.mxu0 0.0
  %1309 = vmatprep.subr.mxu0 0.0
  %1310 = vmatpush1.msra.mxu0 0.0
  %1311 = vmatprep.subr.mxu0 0.0
  %1312 = vmatpush1.msra.mxu0 0.0
  %1313 = vmatprep.subr.mxu0 0.0
  %1314 = vmatpush1.msra.mxu0 0.0
  %1315 = vmatprep.subr.mxu0 0.0
  %1316 = vmatpush1.msra.mxu0 0.0
  %1317 = vmatprep.subr.mxu0 0.0
  %1318 = vmatpush1.msra.mxu0 0.0
  %1319 = vmatprep.subr.mxu0 0.0
  %1320 = vmatpush1.msra.mxu0 0.0
  %1321 = vmatprep.subr.mxu0 0.0
  %1322 = vmatpush1.msra.mxu0 0.0
  %1323 = vmatprep.subr.mxu0 0.0
  %1324 = vmatpush1.msra.mxu0 0.0
  %1325 = vmatprep.subr.mxu0 0.0
  %1326 = vmatpush1.msra.mxu0 %v1191
  %1327 = vmatprep.subr.mxu0 0.0
  %1328 = vmatpush1.msra.mxu0 %v1190
  %1329 = vmatprep.subr.mxu0 0.0
  %1330 = vmatpush1.msra.mxu0 %v1189
  %1331 = vmatprep.subr.mxu0 0.0
  %1332 = vmatpush1.msra.mxu0 %v1188
  %1333 = vmatprep.subr.mxu0 0.0
  %1334 = vmatpush2.msra.mxu0 0.0
  %1335 = vmatprep.subr.mxu0 0.0
  %1336 = vmatpush2.msra.mxu0 0.0
  %1337 = vmatprep.subr.mxu0 0.0
  %1338 = vmatpush2.msra.mxu0 0.0
  %1339 = vmatprep.subr.mxu0 0.0
  %1340 = vmatpush2.msra.mxu0 0.0
  %1341 = vmatprep.subr.mxu0 0.0
  %1342 = vmatpush2.msra.mxu0 0.0
  %1343 = vmatprep.subr.mxu0 0.0
  %1344 = vmatpush2.msra.mxu0 0.0
  %1345 = vmatprep.subr.mxu0 0.0
  %1346 = vmatpush2.msra.mxu0 0.0
  %1347 = vmatprep.subr.mxu0 0.0
  %1348 = vmatpush2.msra.mxu0 0.0
  %1349 = vmatprep.subr.mxu0 0.0
  %1350 = vmatpush2.msra.mxu0 0.0
  %1351 = vmatprep.subr.mxu0 0.0
  %1352 = vmatpush2.msra.mxu0 0.0
  %1353 = vmatprep.subr.mxu0 0.0
  %1354 = vmatpush2.msra.mxu0 0.0
  %1355 = vmatprep.subr.mxu0 0.0
  %1356 = vmatpush2.msra.mxu0 0.0
  %1357 = vmatprep.subr.mxu0 0.0
  %1358 = vmatpush2.msra.mxu0 0.0
  %1359 = vmatprep.subr.mxu0 0.0
  %1360 = vmatpush2.msra.mxu0 0.0
  %1361 = vmatprep.subr.mxu0 0.0
  %1362 = vmatpush2.msra.mxu0 0.0
  %1363 = vmatprep.subr.mxu0 0.0
  %1364 = vmatpush2.msra.mxu0 0.0
  %1365 = vmatprep.mubr.f32.mxu0 0.0
  %1366 = vmatmul.mubr.f32.gmra.mxu0 %v1290
  %v1367 = vpop.f32.mrf.mxu0
  %v1368 = vadd.f32 %v1271, %v1367
  %v1369 = vpop.f32.mrf.mxu0
  %1370 = vmatprep.mubr.f32.mxu0 0.0
  %1371 = vmatmul.mubr.f32.gmra.mxu0 %v1293
  %v1372 = vpop.f32.mrf.mxu0
  %v1373 = vadd.f32 %v1276, %v1372
  %v1374 = vpop.f32.mrf.mxu0
  %1375 = vmatprep.mubr.f32.mxu0 0.0
  %1376 = vmatmul.mubr.f32.gmra.mxu0 %v1296
  %v1377 = vpop.f32.mrf.mxu0
  %v1378 = vadd.f32 %v1281, %v1377
  %v1379 = vpop.f32.mrf.mxu0
  %1380 = vmatprep.mubr.f32.mxu0 0.0
  %1381 = vmatmul.mubr.f32.gmra.mxu0 %v1299
  %v1382 = vpop.f32.mrf.mxu0
  %v1383 = vadd.f32 %v1286, %v1382
  %v1384 = vpop.f32.mrf.mxu0
  %1385 = vdwg.mxu0
  %v1386 = vld [vmem:[%s1 + $0x178] sm:$0xff]
  %v1387 = vld [vmem:[%s1 + $0x180] sm:$0xff]
  %v1388 = vld [vmem:[%s1 + $0x188] sm:$0xff]
  %v1389 = vld [vmem:[%s1 + $0x190] sm:$0xff]
  %v1391 = vsel %vm90, %v1184, 0
  %v1394 = vsel %vm90, %v1185, 0
  %v1397 = vsel %vm90, %v1186, 0
  %v1400 = vsel %vm90, %v1187, 0
  %1402 = vmatprep.subr.mxu0 0.0
  %1403 = vmatpush1.msra.mxu0 0.0
  %1404 = vmatprep.subr.mxu0 0.0
  %1405 = vmatpush1.msra.mxu0 0.0
  %1406 = vmatprep.subr.mxu0 0.0
  %1407 = vmatpush1.msra.mxu0 0.0
  %1408 = vmatprep.subr.mxu0 0.0
  %1409 = vmatpush1.msra.mxu0 0.0
  %1410 = vmatprep.subr.mxu0 0.0
  %1411 = vmatpush1.msra.mxu0 0.0
  %1412 = vmatprep.subr.mxu0 0.0
  %1413 = vmatpush1.msra.mxu0 0.0
  %1414 = vmatprep.subr.mxu0 0.0
  %1415 = vmatpush1.msra.mxu0 0.0
  %1416 = vmatprep.subr.mxu0 0.0
  %1417 = vmatpush1.msra.mxu0 0.0
  %1418 = vmatprep.subr.mxu0 0.0
  %1419 = vmatpush1.msra.mxu0 0.0
  %1420 = vmatprep.subr.mxu0 0.0
  %1421 = vmatpush1.msra.mxu0 0.0
  %1422 = vmatprep.subr.mxu0 0.0
  %1423 = vmatpush1.msra.mxu0 0.0
  %1424 = vmatprep.subr.mxu0 0.0
  %1425 = vmatpush1.msra.mxu0 0.0
  %1426 = vmatprep.subr.mxu0 0.0
  %1427 = vmatpush1.msra.mxu0 %v1389
  %1428 = vmatprep.subr.mxu0 0.0
  %1429 = vmatpush1.msra.mxu0 %v1388
  %1430 = vmatprep.subr.mxu0 0.0
  %1431 = vmatpush1.msra.mxu0 %v1387
  %1432 = vmatprep.subr.mxu0 0.0
  %1433 = vmatpush1.msra.mxu0 %v1386
  %1434 = vmatprep.subr.mxu0 0.0
  %1435 = vmatpush2.msra.mxu0 0.0
  %1436 = vmatprep.subr.mxu0 0.0
  %1437 = vmatpush2.msra.mxu0 0.0
  %1438 = vmatprep.subr.mxu0 0.0
  %1439 = vmatpush2.msra.mxu0 0.0
  %1440 = vmatprep.subr.mxu0 0.0
  %1441 = vmatpush2.msra.mxu0 0.0
  %1442 = vmatprep.subr.mxu0 0.0
  %1443 = vmatpush2.msra.mxu0 0.0
  %1444 = vmatprep.subr.mxu0 0.0
  %1445 = vmatpush2.msra.mxu0 0.0
  %1446 = vmatprep.subr.mxu0 0.0
  %1447 = vmatpush2.msra.mxu0 0.0
  %1448 = vmatprep.subr.mxu0 0.0
  %1449 = vmatpush2.msra.mxu0 0.0
  %1450 = vmatprep.subr.mxu0 0.0
  %1451 = vmatpush2.msra.mxu0 0.0
  %1452 = vmatprep.subr.mxu0 0.0
  %1453 = vmatpush2.msra.mxu0 0.0
  %1454 = vmatprep.subr.mxu0 0.0
  %1455 = vmatpush2.msra.mxu0 0.0
  %1456 = vmatprep.subr.mxu0 0.0
  %1457 = vmatpush2.msra.mxu0 0.0
  %1458 = vmatprep.subr.mxu0 0.0
  %1459 = vmatpush2.msra.mxu0 0.0
  %1460 = vmatprep.subr.mxu0 0.0
  %1461 = vmatpush2.msra.mxu0 0.0
  %1462 = vmatprep.subr.mxu0 0.0
  %1463 = vmatpush2.msra.mxu0 0.0
  %1464 = vmatprep.subr.mxu0 0.0
  %1465 = vmatpush2.msra.mxu0 0.0
  %1466 = vmatprep.mubr.f32.mxu0 0.0
  %1467 = vmatmul.mubr.f32.gmra.mxu0 %v1391
  %v1468 = vpop.f32.mrf.mxu0
  %v1469 = vadd.f32 0.0, %v1468
  %v1470 = vpop.f32.mrf.mxu0
  %1471 = vmatprep.mubr.f32.mxu0 0.0
  %1472 = vmatmul.mubr.f32.gmra.mxu0 %v1394
  %v1473 = vpop.f32.mrf.mxu0
  %v1474 = vadd.f32 0.0, %v1473
  %v1475 = vpop.f32.mrf.mxu0
  %1476 = vmatprep.mubr.f32.mxu0 0.0
  %1477 = vmatmul.mubr.f32.gmra.mxu0 %v1397
  %v1478 = vpop.f32.mrf.mxu0
  %v1479 = vadd.f32 0.0, %v1478
  %v1480 = vpop.f32.mrf.mxu0
  %1481 = vmatprep.mubr.f32.mxu0 0.0
  %1482 = vmatmul.mubr.f32.gmra.mxu0 %v1400
  %v1483 = vpop.f32.mrf.mxu0
  %v1484 = vadd.f32 0.0, %v1483
  %v1485 = vpop.f32.mrf.mxu0
  %1486 = vdwg.mxu0
  %v1487 = vadd.f32 %v1368, %v1469
  %v1488 = vadd.f32 %v1373, %v1474
  %v1489 = vadd.f32 %v1378, %v1479
  %v1490 = vadd.f32 %v1383, %v1484
  %v1491 = vld [vmem:[%s1 + $0x1f8] sm:$0x1]
  %v1492 = vlaneseq
  %v1493 = vshrl.u32 %v1492, 7
  %v1494 = vsub.s32 0, %v1493
  %v1495 = vrot.slane %v1491, %v1494
  %v1496 = vadd.f32 %v1487, %v1495
  %v1497 = vadd.f32 %v1488, %v1495
  %v1498 = vadd.f32 %v1489, %v1495
  %v1499 = vadd.f32 %v1490, %v1495
  %v1500 = vld [vmem:[%s1 + $0x198] sm:$0xff]
  %v1501 = vld [vmem:[%s1 + $0x1a0] sm:$0xff]
  %v1502 = vld [vmem:[%s1 + $0x1a8] sm:$0xff]
  %v1503 = vld [vmem:[%s1 + $0x1b0] sm:$0xff]
  %v1504 = vld [vmem:[%s1 + $0x1b8] sm:$0xff]
  %v1505 = vld [vmem:[%s1 + $0x1c0] sm:$0xff]
  %v1506 = vld [vmem:[%s1 + $0x1c8] sm:$0xff]
  %v1507 = vld [vmem:[%s1 + $0x1d0] sm:$0xff]
  %1508 = vmatprep.subr.mxu0 0.0
  %1509 = vmatpush1.msra.mxu0 0.0
  %1510 = vmatprep.subr.mxu0 0.0
  %1511 = vmatpush1.msra.mxu0 0.0
  %1512 = vmatprep.subr.mxu0 0.0
  %1513 = vmatpush1.msra.mxu0 0.0
  %1514 = vmatprep.subr.mxu0 0.0
  %1515 = vmatpush1.msra.mxu0 0.0
  %1516 = vmatprep.subr.mxu0 0.0
  %1517 = vmatpush1.msra.mxu0 0.0
  %1518 = vmatprep.subr.mxu0 0.0
  %1519 = vmatpush1.msra.mxu0 0.0
  %1520 = vmatprep.subr.mxu0 0.0
  %1521 = vmatpush1.msra.mxu0 0.0
  %1522 = vmatprep.subr.mxu0 0.0
  %1523 = vmatpush1.msra.mxu0 0.0
  %1524 = vmatprep.subr.mxu0 0.0
  %1525 = vmatpush1.msra.mxu0 0.0
  %1526 = vmatprep.subr.mxu0 0.0
  %1527 = vmatpush1.msra.mxu0 0.0
  %1528 = vmatprep.subr.mxu0 0.0
  %1529 = vmatpush1.msra.mxu0 0.0
  %1530 = vmatprep.subr.mxu0 0.0
  %1531 = vmatpush1.msra.mxu0 0.0
  %1532 = vmatprep.subr.mxu0 0.0
  %1533 = vmatpush1.msra.mxu0 %v1507
  %1534 = vmatprep.subr.mxu0 0.0
  %1535 = vmatpush1.msra.mxu0 %v1506
  %1536 = vmatprep.subr.mxu0 0.0
  %1537 = vmatpush1.msra.mxu0 %v1505
  %1538 = vmatprep.subr.mxu0 0.0
  %1539 = vmatpush1.msra.mxu0 %v1504
  %1540 = vmatprep.subr.mxu0 0.0
  %1541 = vmatpush2.msra.mxu0 0.0
  %1542 = vmatprep.subr.mxu0 0.0
  %1543 = vmatpush2.msra.mxu0 0.0
  %1544 = vmatprep.subr.mxu0 0.0
  %1545 = vmatpush2.msra.mxu0 0.0
  %1546 = vmatprep.subr.mxu0 0.0
  %1547 = vmatpush2.msra.mxu0 0.0
  %1548 = vmatprep.subr.mxu0 0.0
  %1549 = vmatpush2.msra.mxu0 0.0
  %1550 = vmatprep.subr.mxu0 0.0
  %1551 = vmatpush2.msra.mxu0 0.0
  %1552 = vmatprep.subr.mxu0 0.0
  %1553 = vmatpush2.msra.mxu0 0.0
  %1554 = vmatprep.subr.mxu0 0.0
  %1555 = vmatpush2.msra.mxu0 0.0
  %1556 = vmatprep.subr.mxu0 0.0
  %1557 = vmatpush2.msra.mxu0 0.0
  %1558 = vmatprep.subr.mxu0 0.0
  %1559 = vmatpush2.msra.mxu0 0.0
  %1560 = vmatprep.subr.mxu0 0.0
  %1561 = vmatpush2.msra.mxu0 0.0
  %1562 = vmatprep.subr.mxu0 0.0
  %1563 = vmatpush2.msra.mxu0 0.0
  %1564 = vmatprep.subr.mxu0 0.0
  %1565 = vmatpush2.msra.mxu0 0.0
  %1566 = vmatprep.subr.mxu0 0.0
  %1567 = vmatpush2.msra.mxu0 0.0
  %1568 = vmatprep.subr.mxu0 0.0
  %1569 = vmatpush2.msra.mxu0 0.0
  %1570 = vmatprep.subr.mxu0 0.0
  %1571 = vmatpush2.msra.mxu0 0.0
  %1572 = vmatprep.mubr.f32.mxu0 0.0
  %1573 = vmatmul.mubr.f32.gmra.mxu0 %v1196
  %v1574 = vpop.f32.mrf.mxu0
  %v1575 = vadd.f32 0.0, %v1574
  %v1576 = vpop.f32.mrf.mxu0
  %1577 = vmatprep.mubr.f32.mxu0 0.0
  %1578 = vmatmul.mubr.f32.gmra.mxu0 %v1198
  %v1579 = vpop.f32.mrf.mxu0
  %v1580 = vadd.f32 0.0, %v1579
  %v1581 = vpop.f32.mrf.mxu0
  %1582 = vmatprep.mubr.f32.mxu0 0.0
  %1583 = vmatmul.mubr.f32.gmra.mxu0 %v1200
  %v1584 = vpop.f32.mrf.mxu0
  %v1585 = vadd.f32 0.0, %v1584
  %v1586 = vpop.f32.mrf.mxu0
  %1587 = vmatprep.mubr.f32.mxu0 0.0
  %1588 = vmatmul.mubr.f32.gmra.mxu0 %v1202
  %v1589 = vpop.f32.mrf.mxu0
  %v1590 = vadd.f32 0.0, %v1589
  %v1591 = vpop.f32.mrf.mxu0
  %1592 = vdwg.mxu0
  %1593 = vmatprep.subr.mxu0 0.0
  %1594 = vmatpush1.msra.mxu0 0.0
  %1595 = vmatprep.subr.mxu0 0.0
  %1596 = vmatpush1.msra.mxu0 0.0
  %1597 = vmatprep.subr.mxu0 0.0
  %1598 = vmatpush1.msra.mxu0 0.0
  %1599 = vmatprep.subr.mxu0 0.0
  %1600 = vmatpush1.msra.mxu0 0.0
  %1601 = vmatprep.subr.mxu0 0.0
  %1602 = vmatpush1.msra.mxu0 0.0
  %1603 = vmatprep.subr.mxu0 0.0
  %1604 = vmatpush1.msra.mxu0 0.0
  %1605 = vmatprep.subr.mxu0 0.0
  %1606 = vmatpush1.msra.mxu0 0.0
  %1607 = vmatprep.subr.mxu0 0.0
  %1608 = vmatpush1.msra.mxu0 0.0
  %1609 = vmatprep.subr.mxu0 0.0
  %1610 = vmatpush1.msra.mxu0 0.0
  %1611 = vmatprep.subr.mxu0 0.0
  %1612 = vmatpush1.msra.mxu0 0.0
  %1613 = vmatprep.subr.mxu0 0.0
  %1614 = vmatpush1.msra.mxu0 0.0
  %1615 = vmatprep.subr.mxu0 0.0
  %1616 = vmatpush1.msra.mxu0 0.0
  %1617 = vmatprep.subr.mxu0 0.0
  %1618 = vmatpush1.msra.mxu0 %v1503
  %1619 = vmatprep.subr.mxu0 0.0
  %1620 = vmatpush1.msra.mxu0 %v1502
  %1621 = vmatprep.subr.mxu0 0.0
  %1622 = vmatpush1.msra.mxu0 %v1501
  %1623 = vmatprep.subr.mxu0 0.0
  %1624 = vmatpush1.msra.mxu0 %v1500
  %1625 = vmatprep.subr.mxu0 0.0
  %1626 = vmatpush2.msra.mxu0 0.0
  %1627 = vmatprep.subr.mxu0 0.0
  %1628 = vmatpush2.msra.mxu0 0.0
  %1629 = vmatprep.subr.mxu0 0.0
  %1630 = vmatpush2.msra.mxu0 0.0
  %1631 = vmatprep.subr.mxu0 0.0
  %1632 = vmatpush2.msra.mxu0 0.0
  %1633 = vmatprep.subr.mxu0 0.0
  %1634 = vmatpush2.msra.mxu0 0.0
  %1635 = vmatprep.subr.mxu0 0.0
  %1636 = vmatpush2.msra.mxu0 0.0
  %1637 = vmatprep.subr.mxu0 0.0
  %1638 = vmatpush2.msra.mxu0 0.0
  %1639 = vmatprep.subr.mxu0 0.0
  %1640 = vmatpush2.msra.mxu0 0.0
  %1641 = vmatprep.subr.mxu0 0.0
  %1642 = vmatpush2.msra.mxu0 0.0
  %1643 = vmatprep.subr.mxu0 0.0
  %1644 = vmatpush2.msra.mxu0 0.0
  %1645 = vmatprep.subr.mxu0 0.0
  %1646 = vmatpush2.msra.mxu0 0.0
  %1647 = vmatprep.subr.mxu0 0.0
  %1648 = vmatpush2.msra.mxu0 0.0
  %1649 = vmatprep.subr.mxu0 0.0
  %1650 = vmatpush2.msra.mxu0 0.0
  %1651 = vmatprep.subr.mxu0 0.0
  %1652 = vmatpush2.msra.mxu0 0.0
  %1653 = vmatprep.subr.mxu0 0.0
  %1654 = vmatpush2.msra.mxu0 0.0
  %1655 = vmatprep.subr.mxu0 0.0
  %1656 = vmatpush2.msra.mxu0 0.0
  %1657 = vmatprep.mubr.f32.mxu0 0.0
  %1658 = vmatmul.mubr.f32.gmra.mxu0 %v1290
  %v1659 = vpop.f32.mrf.mxu0
  %v1660 = vadd.f32 %v1575, %v1659
  %v1661 = vpop.f32.mrf.mxu0
  %1662 = vmatprep.mubr.f32.mxu0 0.0
  %1663 = vmatmul.mubr.f32.gmra.mxu0 %v1293
  %v1664 = vpop.f32.mrf.mxu0
  %v1665 = vadd.f32 %v1580, %v1664
  %v1666 = vpop.f32.mrf.mxu0
  %1667 = vmatprep.mubr.f32.mxu0 0.0
  %1668 = vmatmul.mubr.f32.gmra.mxu0 %v1296
  %v1669 = vpop.f32.mrf.mxu0
  %v1670 = vadd.f32 %v1585, %v1669
  %v1671 = vpop.f32.mrf.mxu0
  %1672 = vmatprep.mubr.f32.mxu0 0.0
  %1673 = vmatmul.mubr.f32.gmra.mxu0 %v1299
  %v1674 = vpop.f32.mrf.mxu0
  %v1675 = vadd.f32 %v1590, %v1674
  %v1676 = vpop.f32.mrf.mxu0
  %1677 = vdwg.mxu0
  %v1678 = vld [vmem:[%s1 + $0x1d8] sm:$0xff]
  %v1679 = vld [vmem:[%s1 + $0x1e0] sm:$0xff]
  %v1680 = vld [vmem:[%s1 + $0x1e8] sm:$0xff]
  %v1681 = vld [vmem:[%s1 + $0x1f0] sm:$0xff]
  %1682 = vmatprep.subr.mxu0 0.0
  %1683 = vmatpush1.msra.mxu0 0.0
  %1684 = vmatprep.subr.mxu0 0.0
  %1685 = vmatpush1.msra.mxu0 0.0
  %1686 = vmatprep.subr.mxu0 0.0
  %1687 = vmatpush1.msra.mxu0 0.0
  %1688 = vmatprep.subr.mxu0 0.0
  %1689 = vmatpush1.msra.mxu0 0.0
  %1690 = vmatprep.subr.mxu0 0.0
  %1691 = vmatpush1.msra.mxu0 0.0
  %1692 = vmatprep.subr.mxu0 0.0
  %1693 = vmatpush1.msra.mxu0 0.0
  %1694 = vmatprep.subr.mxu0 0.0
  %1695 = vmatpush1.msra.mxu0 0.0
  %1696 = vmatprep.subr.mxu0 0.0
  %1697 = vmatpush1.msra.mxu0 0.0
  %1698 = vmatprep.subr.mxu0 0.0
  %1699 = vmatpush1.msra.mxu0 0.0
  %1700 = vmatprep.subr.mxu0 0.0
  %1701 = vmatpush1.msra.mxu0 0.0
  %1702 = vmatprep.subr.mxu0 0.0
  %1703 = vmatpush1.msra.mxu0 0.0
  %1704 = vmatprep.subr.mxu0 0.0
  %1705 = vmatpush1.msra.mxu0 0.0
  %1706 = vmatprep.subr.mxu0 0.0
  %1707 = vmatpush1.msra.mxu0 %v1681
  %1708 = vmatprep.subr.mxu0 0.0
  %1709 = vmatpush1.msra.mxu0 %v1680
  %1710 = vmatprep.subr.mxu0 0.0
  %1711 = vmatpush1.msra.mxu0 %v1679
  %1712 = vmatprep.subr.mxu0 0.0
  %1713 = vmatpush1.msra.mxu0 %v1678
  %1714 = vmatprep.subr.mxu0 0.0
  %1715 = vmatpush2.msra.mxu0 0.0
  %1716 = vmatprep.subr.mxu0 0.0
  %1717 = vmatpush2.msra.mxu0 0.0
  %1718 = vmatprep.subr.mxu0 0.0
  %1719 = vmatpush2.msra.mxu0 0.0
  %1720 = vmatprep.subr.mxu0 0.0
  %1721 = vmatpush2.msra.mxu0 0.0
  %1722 = vmatprep.subr.mxu0 0.0
  %1723 = vmatpush2.msra.mxu0 0.0
  %1724 = vmatprep.subr.mxu0 0.0
  %1725 = vmatpush2.msra.mxu0 0.0
  %1726 = vmatprep.subr.mxu0 0.0
  %1727 = vmatpush2.msra.mxu0 0.0
  %1728 = vmatprep.subr.mxu0 0.0
  %1729 = vmatpush2.msra.mxu0 0.0
  %1730 = vmatprep.subr.mxu0 0.0
  %1731 = vmatpush2.msra.mxu0 0.0
  %1732 = vmatprep.subr.mxu0 0.0
  %1733 = vmatpush2.msra.mxu0 0.0
  %1734 = vmatprep.subr.mxu0 0.0
  %1735 = vmatpush2.msra.mxu0 0.0
  %1736 = vmatprep.subr.mxu0 0.0
  %1737 = vmatpush2.msra.mxu0 0.0
  %1738 = vmatprep.subr.mxu0 0.0
  %1739 = vmatpush2.msra.mxu0 0.0
  %1740 = vmatprep.subr.mxu0 0.0
  %1741 = vmatpush2.msra.mxu0 0.0
  %1742 = vmatprep.subr.mxu0 0.0
  %1743 = vmatpush2.msra.mxu0 0.0
  %1744 = vmatprep.subr.mxu0 0.0
  %1745 = vmatpush2.msra.mxu0 0.0
  %1746 = vmatprep.mubr.f32.mxu0 0.0
  %1747 = vmatmul.mubr.f32.gmra.mxu0 %v1391
  %v1748 = vpop.f32.mrf.mxu0
  %v1749 = vadd.f32 0.0, %v1748
  %v1750 = vpop.f32.mrf.mxu0
  %1751 = vmatprep.mubr.f32.mxu0 0.0
  %1752 = vmatmul.mubr.f32.gmra.mxu0 %v1394
  %v1753 = vpop.f32.mrf.mxu0
  %v1754 = vadd.f32 0.0, %v1753
  %v1755 = vpop.f32.mrf.mxu0
  %1756 = vmatprep.mubr.f32.mxu0 0.0
  %1757 = vmatmul.mubr.f32.gmra.mxu0 %v1397
  %v1758 = vpop.f32.mrf.mxu0
  %v1759 = vadd.f32 0.0, %v1758
  %v1760 = vpop.f32.mrf.mxu0
  %1761 = vmatprep.mubr.f32.mxu0 0.0
  %1762 = vmatmul.mubr.f32.gmra.mxu0 %v1400
  %v1763 = vpop.f32.mrf.mxu0
  %v1764 = vadd.f32 0.0, %v1763
  %v1765 = vpop.f32.mrf.mxu0
  %1766 = vdwg.mxu0
  %v1767 = vadd.f32 %v1660, %v1749
  %v1768 = vadd.f32 %v1665, %v1754
  %v1769 = vadd.f32 %v1670, %v1759
  %v1770 = vadd.f32 %v1675, %v1764
  %v1771 = vld [vmem:[%s1 + $0x200] sm:$0x1]
  %v1772 = vlaneseq
  %v1773 = vshrl.u32 %v1772, 7
  %v1774 = vsub.s32 0, %v1773
  %v1775 = vrot.slane %v1771, %v1774
  %v1776 = vadd.f32 %v1767, %v1775
  %v1777 = vadd.f32 %v1768, %v1775
  %v1778 = vadd.f32 %v1769, %v1775
  %v1779 = vadd.f32 %v1770, %v1775
  %v1780 = vmul.f32 %v1776, 0.5
  %v1781 = vmul.f32 %v1777, 0.5
  %v1782 = vmul.f32 %v1778, 0.5
  %v1783 = vmul.f32 %v1779, 0.5
  %v1784 = vtanh.pop %v1780
  %v1785 = vtanh.pop %v1781
  %v1786 = vtanh.pop %v1782
  %v1787 = vtanh.pop %v1783
  %v1788 = vmul.f32 %v1784, 0.5
  %v1789 = vmul.f32 %v1785, 0.5
  %v1790 = vmul.f32 %v1786, 0.5
  %v1791 = vmul.f32 %v1787, 0.5
  %v1792 = vadd.f32 %v1788, 0.5
  %v1793 = vadd.f32 %v1789, 0.5
  %v1794 = vadd.f32 %v1790, 0.5
  %v1795 = vadd.f32 %v1791, 0.5
  %v1796 = vmul.f32 %v1496, %v1792
  %v1797 = vmul.f32 %v1497, %v1793
  %v1798 = vmul.f32 %v1498, %v1794
  %v1799 = vmul.f32 %v1499, %v1795
  %v1800 = vsel %vm90, %v1796, 0.0
  %v1801 = vsel %vm90, %v1797, 0.0
  %v1802 = vadd.f32 %v1800, %v1801
  %v1803 = vsel %vm90, %v1798, 0.0
  %v1804 = vadd.f32 %v1802, %v1803
  %v1805 = vsel %vm90, %v1799, 0.0
  %v1806 = vadd.f32 %v1804, %v1805
  %v1807 = vrot.slane %v1806, 4
  %v1808 = vadd.f32 %v1806, %v1807
  %v1809 = vrot.slane %v1808, 2
  %v1810 = vadd.f32 %v1808, %v1809
  %v1811 = vrot.slane %v1810, 1
  %v1812 = vadd.f32 %v1810, %v1811
  %v1813 = vmul.f32 %v1812, %v432
  %v1814 = vsub.f32 %v1796, %v1813
  %v1815 = vsub.f32 %v1797, %v1813
  %v1816 = vsub.f32 %v1798, %v1813
  %v1817 = vsub.f32 %v1799, %v1813
  %v1818 = vmul.f32 %v1814, %v1814
  %v1819 = vmul.f32 %v1815, %v1815
  %v1820 = vmul.f32 %v1816, %v1816
  %v1821 = vmul.f32 %v1817, %v1817
  %v1822 = vsel %vm90, %v1818, 0.0
  %v1823 = vsel %vm90, %v1819, 0.0
  %v1824 = vadd.f32 %v1822, %v1823
  %v1825 = vsel %vm90, %v1820, 0.0
  %v1826 = vadd.f32 %v1824, %v1825
  %v1827 = vsel %vm90, %v1821, 0.0
  %v1828 = vadd.f32 %v1826, %v1827
  %v1829 = vrot.slane %v1828, 4
  %v1830 = vadd.f32 %v1828, %v1829
  %v1831 = vrot.slane %v1830, 2
  %v1832 = vadd.f32 %v1830, %v1831
  %v1833 = vrot.slane %v1832, 1
  %v1834 = vadd.f32 %v1832, %v1833
  %v1835 = vmul.f32 %v1834, %v432
  %v1836 = vadd.f32 %v1835, 1e-05
  %v1837 = vrsqrt.pop %v1836
  %v1838 = vmul.f32 %v1814, %v1837
  %v1839 = vmul.f32 %v1815, %v1837
  %v1840 = vmul.f32 %v1816, %v1837
  %v1841 = vmul.f32 %v1817, %v1837
  %v1846 = vrot.slane %v1838, 7
  %v1847 = vrot.slane %v1839, 7
  %v1848 = vsel %vm48, %v1846, %v1847
  %v1849 = vrot.slane %v1840, 7
  %v1850 = vsel %vm48, %v1847, %v1849
  %v1851 = vrot.slane %v1841, 7
  %v1852 = vsel %vm48, %v1849, %v1851
  %v1857 = vsel %vm48, 0.0, %v1846
  %v1858 = vrot.slane %v1838, 1
  %v1859 = vrot.slane %v1839, 1
  %v1860 = vsel %vm61, %v1858, %v1859
  %v1861 = vrot.slane %v1840, 1
  %v1862 = vsel %vm61, %v1859, %v1861
  %v1863 = vrot.slane %v1841, 1
  %v1864 = vsel %vm61, %v1861, %v1863
  %v1869 = vsel %vm61, %v1863, 0.0
  %v1870 = vsel %vm32, 0.0, %v1857
  %v1871 = vsel %vm33, 0.0, %v1848
  %v1872 = vsel %vm34, 0.0, %v1850
  %v1873 = vsel %vm35, 0.0, %v1852
  %v1874 = vsel %vm40, 0.0, %v1860
  %v1875 = vsel %vm41, 0.0, %v1862
  %v1876 = vsel %vm42, 0.0, %v1864
  %v1877 = vsel %vm43, 0.0, %v1869
  %v1878 = vld [vmem:[%s1 + $0x208] sm:$0xff]
  %v1879 = vld [vmem:[%s1 + $0x210] sm:$0xff]
  %v1880 = vld [vmem:[%s1 + $0x218] sm:$0xff]
  %v1881 = vld [vmem:[%s1 + $0x220] sm:$0xff]
  %v1882 = vld [vmem:[%s1 + $0x228] sm:$0xff]
  %v1883 = vld [vmem:[%s1 + $0x230] sm:$0xff]
  %v1884 = vld [vmem:[%s1 + $0x238] sm:$0xff]
  %v1885 = vld [vmem:[%s1 + $0x240] sm:$0xff]
  %v1886 = vsel %vm90, %v1838, 0
  %v1888 = vsel %vm90, %v1839, 0
  %v1890 = vsel %vm90, %v1840, 0
  %v1892 = vsel %vm90, %v1841, 0
  %1894 = vmatprep.subr.mxu0 0.0
  %1895 = vmatpush1.msra.mxu0 0.0
  %1896 = vmatprep.subr.mxu0 0.0
  %1897 = vmatpush1.msra.mxu0 0.0
  %1898 = vmatprep.subr.mxu0 0.0
  %1899 = vmatpush1.msra.mxu0 0.0
  %1900 = vmatprep.subr.mxu0 0.0
  %1901 = vmatpush1.msra.mxu0 0.0
  %1902 = vmatprep.subr.mxu0 0.0
  %1903 = vmatpush1.msra.mxu0 0.0
  %1904 = vmatprep.subr.mxu0 0.0
  %1905 = vmatpush1.msra.mxu0 0.0
  %1906 = vmatprep.subr.mxu0 0.0
  %1907 = vmatpush1.msra.mxu0 0.0
  %1908 = vmatprep.subr.mxu0 0.0
  %1909 = vmatpush1.msra.mxu0 0.0
  %1910 = vmatprep.subr.mxu0 0.0
  %1911 = vmatpush1.msra.mxu0 0.0
  %1912 = vmatprep.subr.mxu0 0.0
  %1913 = vmatpush1.msra.mxu0 0.0
  %1914 = vmatprep.subr.mxu0 0.0
  %1915 = vmatpush1.msra.mxu0 0.0
  %1916 = vmatprep.subr.mxu0 0.0
  %1917 = vmatpush1.msra.mxu0 0.0
  %1918 = vmatprep.subr.mxu0 0.0
  %1919 = vmatpush1.msra.mxu0 %v1885
  %1920 = vmatprep.subr.mxu0 0.0
  %1921 = vmatpush1.msra.mxu0 %v1884
  %1922 = vmatprep.subr.mxu0 0.0
  %1923 = vmatpush1.msra.mxu0 %v1883
  %1924 = vmatprep.subr.mxu0 0.0
  %1925 = vmatpush1.msra.mxu0 %v1882
  %1926 = vmatprep.subr.mxu0 0.0
  %1927 = vmatpush2.msra.mxu0 0.0
  %1928 = vmatprep.subr.mxu0 0.0
  %1929 = vmatpush2.msra.mxu0 0.0
  %1930 = vmatprep.subr.mxu0 0.0
  %1931 = vmatpush2.msra.mxu0 0.0
  %1932 = vmatprep.subr.mxu0 0.0
  %1933 = vmatpush2.msra.mxu0 0.0
  %1934 = vmatprep.subr.mxu0 0.0
  %1935 = vmatpush2.msra.mxu0 0.0
  %1936 = vmatprep.subr.mxu0 0.0
  %1937 = vmatpush2.msra.mxu0 0.0
  %1938 = vmatprep.subr.mxu0 0.0
  %1939 = vmatpush2.msra.mxu0 0.0
  %1940 = vmatprep.subr.mxu0 0.0
  %1941 = vmatpush2.msra.mxu0 0.0
  %1942 = vmatprep.subr.mxu0 0.0
  %1943 = vmatpush2.msra.mxu0 0.0
  %1944 = vmatprep.subr.mxu0 0.0
  %1945 = vmatpush2.msra.mxu0 0.0
  %1946 = vmatprep.subr.mxu0 0.0
  %1947 = vmatpush2.msra.mxu0 0.0
  %1948 = vmatprep.subr.mxu0 0.0
  %1949 = vmatpush2.msra.mxu0 0.0
  %1950 = vmatprep.subr.mxu0 0.0
  %1951 = vmatpush2.msra.mxu0 0.0
  %1952 = vmatprep.subr.mxu0 0.0
  %1953 = vmatpush2.msra.mxu0 0.0
  %1954 = vmatprep.subr.mxu0 0.0
  %1955 = vmatpush2.msra.mxu0 0.0
  %1956 = vmatprep.subr.mxu0 0.0
  %1957 = vmatpush2.msra.mxu0 0.0
  %1958 = vmatprep.mubr.f32.mxu0 0.0
  %1959 = vmatmul.mubr.f32.gmra.mxu0 %v1886
  %v1960 = vpop.f32.mrf.mxu0
  %v1961 = vadd.f32 0.0, %v1960
  %v1962 = vpop.f32.mrf.mxu0
  %1963 = vmatprep.mubr.f32.mxu0 0.0
  %1964 = vmatmul.mubr.f32.gmra.mxu0 %v1888
  %v1965 = vpop.f32.mrf.mxu0
  %v1966 = vadd.f32 0.0, %v1965
  %v1967 = vpop.f32.mrf.mxu0
  %1968 = vmatprep.mubr.f32.mxu0 0.0
  %1969 = vmatmul.mubr.f32.gmra.mxu0 %v1890
  %v1970 = vpop.f32.mrf.mxu0
  %v1971 = vadd.f32 0.0, %v1970
  %v1972 = vpop.f32.mrf.mxu0
  %1973 = vmatprep.mubr.f32.mxu0 0.0
  %1974 = vmatmul.mubr.f32.gmra.mxu0 %v1892
  %v1975 = vpop.f32.mrf.mxu0
  %v1976 = vadd.f32 0.0, %v1975
  %v1977 = vpop.f32.mrf.mxu0
  %1978 = vdwg.mxu0
  %v1980 = vsel %vm90, %v1870, 0
  %v1983 = vsel %vm90, %v1871, 0
  %v1986 = vsel %vm90, %v1872, 0
  %v1989 = vsel %vm90, %v1873, 0
  %1991 = vmatprep.subr.mxu0 0.0
  %1992 = vmatpush1.msra.mxu0 0.0
  %1993 = vmatprep.subr.mxu0 0.0
  %1994 = vmatpush1.msra.mxu0 0.0
  %1995 = vmatprep.subr.mxu0 0.0
  %1996 = vmatpush1.msra.mxu0 0.0
  %1997 = vmatprep.subr.mxu0 0.0
  %1998 = vmatpush1.msra.mxu0 0.0
  %1999 = vmatprep.subr.mxu0 0.0
  %2000 = vmatpush1.msra.mxu0 0.0
  %2001 = vmatprep.subr.mxu0 0.0
  %2002 = vmatpush1.msra.mxu0 0.0
  %2003 = vmatprep.subr.mxu0 0.0
  %2004 = vmatpush1.msra.mxu0 0.0
  %2005 = vmatprep.subr.mxu0 0.0
  %2006 = vmatpush1.msra.mxu0 0.0
  %2007 = vmatprep.subr.mxu0 0.0
  %2008 = vmatpush1.msra.mxu0 0.0
  %2009 = vmatprep.subr.mxu0 0.0
  %2010 = vmatpush1.msra.mxu0 0.0
  %2011 = vmatprep.subr.mxu0 0.0
  %2012 = vmatpush1.msra.mxu0 0.0
  %2013 = vmatprep.subr.mxu0 0.0
  %2014 = vmatpush1.msra.mxu0 0.0
  %2015 = vmatprep.subr.mxu0 0.0
  %2016 = vmatpush1.msra.mxu0 %v1881
  %2017 = vmatprep.subr.mxu0 0.0
  %2018 = vmatpush1.msra.mxu0 %v1880
  %2019 = vmatprep.subr.mxu0 0.0
  %2020 = vmatpush1.msra.mxu0 %v1879
  %2021 = vmatprep.subr.mxu0 0.0
  %2022 = vmatpush1.msra.mxu0 %v1878
  %2023 = vmatprep.subr.mxu0 0.0
  %2024 = vmatpush2.msra.mxu0 0.0
  %2025 = vmatprep.subr.mxu0 0.0
  %2026 = vmatpush2.msra.mxu0 0.0
  %2027 = vmatprep.subr.mxu0 0.0
  %2028 = vmatpush2.msra.mxu0 0.0
  %2029 = vmatprep.subr.mxu0 0.0
  %2030 = vmatpush2.msra.mxu0 0.0
  %2031 = vmatprep.subr.mxu0 0.0
  %2032 = vmatpush2.msra.mxu0 0.0
  %2033 = vmatprep.subr.mxu0 0.0
  %2034 = vmatpush2.msra.mxu0 0.0
  %2035 = vmatprep.subr.mxu0 0.0
  %2036 = vmatpush2.msra.mxu0 0.0
  %2037 = vmatprep.subr.mxu0 0.0
  %2038 = vmatpush2.msra.mxu0 0.0
  %2039 = vmatprep.subr.mxu0 0.0
  %2040 = vmatpush2.msra.mxu0 0.0
  %2041 = vmatprep.subr.mxu0 0.0
  %2042 = vmatpush2.msra.mxu0 0.0
  %2043 = vmatprep.subr.mxu0 0.0
  %2044 = vmatpush2.msra.mxu0 0.0
  %2045 = vmatprep.subr.mxu0 0.0
  %2046 = vmatpush2.msra.mxu0 0.0
  %2047 = vmatprep.subr.mxu0 0.0
  %2048 = vmatpush2.msra.mxu0 0.0
  %2049 = vmatprep.subr.mxu0 0.0
  %2050 = vmatpush2.msra.mxu0 0.0
  %2051 = vmatprep.subr.mxu0 0.0
  %2052 = vmatpush2.msra.mxu0 0.0
  %2053 = vmatprep.subr.mxu0 0.0
  %2054 = vmatpush2.msra.mxu0 0.0
  %2055 = vmatprep.mubr.f32.mxu0 0.0
  %2056 = vmatmul.mubr.f32.gmra.mxu0 %v1980
  %v2057 = vpop.f32.mrf.mxu0
  %v2058 = vadd.f32 %v1961, %v2057
  %v2059 = vpop.f32.mrf.mxu0
  %2060 = vmatprep.mubr.f32.mxu0 0.0
  %2061 = vmatmul.mubr.f32.gmra.mxu0 %v1983
  %v2062 = vpop.f32.mrf.mxu0
  %v2063 = vadd.f32 %v1966, %v2062
  %v2064 = vpop.f32.mrf.mxu0
  %2065 = vmatprep.mubr.f32.mxu0 0.0
  %2066 = vmatmul.mubr.f32.gmra.mxu0 %v1986
  %v2067 = vpop.f32.mrf.mxu0
  %v2068 = vadd.f32 %v1971, %v2067
  %v2069 = vpop.f32.mrf.mxu0
  %2070 = vmatprep.mubr.f32.mxu0 0.0
  %2071 = vmatmul.mubr.f32.gmra.mxu0 %v1989
  %v2072 = vpop.f32.mrf.mxu0
  %v2073 = vadd.f32 %v1976, %v2072
  %v2074 = vpop.f32.mrf.mxu0
  %2075 = vdwg.mxu0
  %v2076 = vld [vmem:[%s1 + $0x248] sm:$0xff]
  %v2077 = vld [vmem:[%s1 + $0x250] sm:$0xff]
  %v2078 = vld [vmem:[%s1 + $0x258] sm:$0xff]
  %v2079 = vld [vmem:[%s1 + $0x260] sm:$0xff]
  %v2081 = vsel %vm90, %v1874, 0
  %v2084 = vsel %vm90, %v1875, 0
  %v2087 = vsel %vm90, %v1876, 0
  %v2090 = vsel %vm90, %v1877, 0
  %2092 = vmatprep.subr.mxu0 0.0
  %2093 = vmatpush1.msra.mxu0 0.0
  %2094 = vmatprep.subr.mxu0 0.0
  %2095 = vmatpush1.msra.mxu0 0.0
  %2096 = vmatprep.subr.mxu0 0.0
  %2097 = vmatpush1.msra.mxu0 0.0
  %2098 = vmatprep.subr.mxu0 0.0
  %2099 = vmatpush1.msra.mxu0 0.0
  %2100 = vmatprep.subr.mxu0 0.0
  %2101 = vmatpush1.msra.mxu0 0.0
  %2102 = vmatprep.subr.mxu0 0.0
  %2103 = vmatpush1.msra.mxu0 0.0
  %2104 = vmatprep.subr.mxu0 0.0
  %2105 = vmatpush1.msra.mxu0 0.0
  %2106 = vmatprep.subr.mxu0 0.0
  %2107 = vmatpush1.msra.mxu0 0.0
  %2108 = vmatprep.subr.mxu0 0.0
  %2109 = vmatpush1.msra.mxu0 0.0
  %2110 = vmatprep.subr.mxu0 0.0
  %2111 = vmatpush1.msra.mxu0 0.0
  %2112 = vmatprep.subr.mxu0 0.0
  %2113 = vmatpush1.msra.mxu0 0.0
  %2114 = vmatprep.subr.mxu0 0.0
  %2115 = vmatpush1.msra.mxu0 0.0
  %2116 = vmatprep.subr.mxu0 0.0
  %2117 = vmatpush1.msra.mxu0 %v2079
  %2118 = vmatprep.subr.mxu0 0.0
  %2119 = vmatpush1.msra.mxu0 %v2078
  %2120 = vmatprep.subr.mxu0 0.0
  %2121 = vmatpush1.msra.mxu0 %v2077
  %2122 = vmatprep.subr.mxu0 0.0
  %2123 = vmatpush1.msra.mxu0 %v2076
  %2124 = vmatprep.subr.mxu0 0.0
  %2125 = vmatpush2.msra.mxu0 0.0
  %2126 = vmatprep.subr.mxu0 0.0
  %2127 = vmatpush2.msra.mxu0 0.0
  %2128 = vmatprep.subr.mxu0 0.0
  %2129 = vmatpush2.msra.mxu0 0.0
  %2130 = vmatprep.subr.mxu0 0.0
  %2131 = vmatpush2.msra.mxu0 0.0
  %2132 = vmatprep.subr.mxu0 0.0
  %2133 = vmatpush2.msra.mxu0 0.0
  %2134 = vmatprep.subr.mxu0 0.0
  %2135 = vmatpush2.msra.mxu0 0.0
  %2136 = vmatprep.subr.mxu0 0.0
  %2137 = vmatpush2.msra.mxu0 0.0
  %2138 = vmatprep.subr.mxu0 0.0
  %2139 = vmatpush2.msra.mxu0 0.0
  %2140 = vmatprep.subr.mxu0 0.0
  %2141 = vmatpush2.msra.mxu0 0.0
  %2142 = vmatprep.subr.mxu0 0.0
  %2143 = vmatpush2.msra.mxu0 0.0
  %2144 = vmatprep.subr.mxu0 0.0
  %2145 = vmatpush2.msra.mxu0 0.0
  %2146 = vmatprep.subr.mxu0 0.0
  %2147 = vmatpush2.msra.mxu0 0.0
  %2148 = vmatprep.subr.mxu0 0.0
  %2149 = vmatpush2.msra.mxu0 0.0
  %2150 = vmatprep.subr.mxu0 0.0
  %2151 = vmatpush2.msra.mxu0 0.0
  %2152 = vmatprep.subr.mxu0 0.0
  %2153 = vmatpush2.msra.mxu0 0.0
  %2154 = vmatprep.subr.mxu0 0.0
  %2155 = vmatpush2.msra.mxu0 0.0
  %2156 = vmatprep.mubr.f32.mxu0 0.0
  %2157 = vmatmul.mubr.f32.gmra.mxu0 %v2081
  %v2158 = vpop.f32.mrf.mxu0
  %v2159 = vadd.f32 0.0, %v2158
  %v2160 = vpop.f32.mrf.mxu0
  %2161 = vmatprep.mubr.f32.mxu0 0.0
  %2162 = vmatmul.mubr.f32.gmra.mxu0 %v2084
  %v2163 = vpop.f32.mrf.mxu0
  %v2164 = vadd.f32 0.0, %v2163
  %v2165 = vpop.f32.mrf.mxu0
  %2166 = vmatprep.mubr.f32.mxu0 0.0
  %2167 = vmatmul.mubr.f32.gmra.mxu0 %v2087
  %v2168 = vpop.f32.mrf.mxu0
  %v2169 = vadd.f32 0.0, %v2168
  %v2170 = vpop.f32.mrf.mxu0
  %2171 = vmatprep.mubr.f32.mxu0 0.0
  %2172 = vmatmul.mubr.f32.gmra.mxu0 %v2090
  %v2173 = vpop.f32.mrf.mxu0
  %v2174 = vadd.f32 0.0, %v2173
  %v2175 = vpop.f32.mrf.mxu0
  %2176 = vdwg.mxu0
  %v2177 = vadd.f32 %v2058, %v2159
  %v2178 = vadd.f32 %v2063, %v2164
  %v2179 = vadd.f32 %v2068, %v2169
  %v2180 = vadd.f32 %v2073, %v2174
  %v2181 = vld [vmem:[%s1 + $0x2c8] sm:$0x1]
  %v2182 = vlaneseq
  %v2183 = vshrl.u32 %v2182, 7
  %v2184 = vsub.s32 0, %v2183
  %v2185 = vrot.slane %v2181, %v2184
  %v2186 = vadd.f32 %v2177, %v2185
  %v2187 = vadd.f32 %v2178, %v2185
  %v2188 = vadd.f32 %v2179, %v2185
  %v2189 = vadd.f32 %v2180, %v2185
  %v2190 = vld [vmem:[%s1 + $0x268] sm:$0xff]
  %v2191 = vld [vmem:[%s1 + $0x270] sm:$0xff]
  %v2192 = vld [vmem:[%s1 + $0x278] sm:$0xff]
  %v2193 = vld [vmem:[%s1 + $0x280] sm:$0xff]
  %v2194 = vld [vmem:[%s1 + $0x288] sm:$0xff]
  %v2195 = vld [vmem:[%s1 + $0x290] sm:$0xff]
  %v2196 = vld [vmem:[%s1 + $0x298] sm:$0xff]
  %v2197 = vld [vmem:[%s1 + $0x2a0] sm:$0xff]
  %2198 = vmatprep.subr.mxu0 0.0
  %2199 = vmatpush1.msra.mxu0 0.0
  %2200 = vmatprep.subr.mxu0 0.0
  %2201 = vmatpush1.msra.mxu0 0.0
  %2202 = vmatprep.subr.mxu0 0.0
  %2203 = vmatpush1.msra.mxu0 0.0
  %2204 = vmatprep.subr.mxu0 0.0
  %2205 = vmatpush1.msra.mxu0 0.0
  %2206 = vmatprep.subr.mxu0 0.0
  %2207 = vmatpush1.msra.mxu0 0.0
  %2208 = vmatprep.subr.mxu0 0.0
  %2209 = vmatpush1.msra.mxu0 0.0
  %2210 = vmatprep.subr.mxu0 0.0
  %2211 = vmatpush1.msra.mxu0 0.0
  %2212 = vmatprep.subr.mxu0 0.0
  %2213 = vmatpush1.msra.mxu0 0.0
  %2214 = vmatprep.subr.mxu0 0.0
  %2215 = vmatpush1.msra.mxu0 0.0
  %2216 = vmatprep.subr.mxu0 0.0
  %2217 = vmatpush1.msra.mxu0 0.0
  %2218 = vmatprep.subr.mxu0 0.0
  %2219 = vmatpush1.msra.mxu0 0.0
  %2220 = vmatprep.subr.mxu0 0.0
  %2221 = vmatpush1.msra.mxu0 0.0
  %2222 = vmatprep.subr.mxu0 0.0
  %2223 = vmatpush1.msra.mxu0 %v2197
  %2224 = vmatprep.subr.mxu0 0.0
  %2225 = vmatpush1.msra.mxu0 %v2196
  %2226 = vmatprep.subr.mxu0 0.0
  %2227 = vmatpush1.msra.mxu0 %v2195
  %2228 = vmatprep.subr.mxu0 0.0
  %2229 = vmatpush1.msra.mxu0 %v2194
  %2230 = vmatprep.subr.mxu0 0.0
  %2231 = vmatpush2.msra.mxu0 0.0
  %2232 = vmatprep.subr.mxu0 0.0
  %2233 = vmatpush2.msra.mxu0 0.0
  %2234 = vmatprep.subr.mxu0 0.0
  %2235 = vmatpush2.msra.mxu0 0.0
  %2236 = vmatprep.subr.mxu0 0.0
  %2237 = vmatpush2.msra.mxu0 0.0
  %2238 = vmatprep.subr.mxu0 0.0
  %2239 = vmatpush2.msra.mxu0 0.0
  %2240 = vmatprep.subr.mxu0 0.0
  %2241 = vmatpush2.msra.mxu0 0.0
  %2242 = vmatprep.subr.mxu0 0.0
  %2243 = vmatpush2.msra.mxu0 0.0
  %2244 = vmatprep.subr.mxu0 0.0
  %2245 = vmatpush2.msra.mxu0 0.0
  %2246 = vmatprep.subr.mxu0 0.0
  %2247 = vmatpush2.msra.mxu0 0.0
  %2248 = vmatprep.subr.mxu0 0.0
  %2249 = vmatpush2.msra.mxu0 0.0
  %2250 = vmatprep.subr.mxu0 0.0
  %2251 = vmatpush2.msra.mxu0 0.0
  %2252 = vmatprep.subr.mxu0 0.0
  %2253 = vmatpush2.msra.mxu0 0.0
  %2254 = vmatprep.subr.mxu0 0.0
  %2255 = vmatpush2.msra.mxu0 0.0
  %2256 = vmatprep.subr.mxu0 0.0
  %2257 = vmatpush2.msra.mxu0 0.0
  %2258 = vmatprep.subr.mxu0 0.0
  %2259 = vmatpush2.msra.mxu0 0.0
  %2260 = vmatprep.subr.mxu0 0.0
  %2261 = vmatpush2.msra.mxu0 0.0
  %2262 = vmatprep.mubr.f32.mxu0 0.0
  %2263 = vmatmul.mubr.f32.gmra.mxu0 %v1886
  %v2264 = vpop.f32.mrf.mxu0
  %v2265 = vadd.f32 0.0, %v2264
  %v2266 = vpop.f32.mrf.mxu0
  %2267 = vmatprep.mubr.f32.mxu0 0.0
  %2268 = vmatmul.mubr.f32.gmra.mxu0 %v1888
  %v2269 = vpop.f32.mrf.mxu0
  %v2270 = vadd.f32 0.0, %v2269
  %v2271 = vpop.f32.mrf.mxu0
  %2272 = vmatprep.mubr.f32.mxu0 0.0
  %2273 = vmatmul.mubr.f32.gmra.mxu0 %v1890
  %v2274 = vpop.f32.mrf.mxu0
  %v2275 = vadd.f32 0.0, %v2274
  %v2276 = vpop.f32.mrf.mxu0
  %2277 = vmatprep.mubr.f32.mxu0 0.0
  %2278 = vmatmul.mubr.f32.gmra.mxu0 %v1892
  %v2279 = vpop.f32.mrf.mxu0
  %v2280 = vadd.f32 0.0, %v2279
  %v2281 = vpop.f32.mrf.mxu0
  %2282 = vdwg.mxu0
  %2283 = vmatprep.subr.mxu0 0.0
  %2284 = vmatpush1.msra.mxu0 0.0
  %2285 = vmatprep.subr.mxu0 0.0
  %2286 = vmatpush1.msra.mxu0 0.0
  %2287 = vmatprep.subr.mxu0 0.0
  %2288 = vmatpush1.msra.mxu0 0.0
  %2289 = vmatprep.subr.mxu0 0.0
  %2290 = vmatpush1.msra.mxu0 0.0
  %2291 = vmatprep.subr.mxu0 0.0
  %2292 = vmatpush1.msra.mxu0 0.0
  %2293 = vmatprep.subr.mxu0 0.0
  %2294 = vmatpush1.msra.mxu0 0.0
  %2295 = vmatprep.subr.mxu0 0.0
  %2296 = vmatpush1.msra.mxu0 0.0
  %2297 = vmatprep.subr.mxu0 0.0
  %2298 = vmatpush1.msra.mxu0 0.0
  %2299 = vmatprep.subr.mxu0 0.0
  %2300 = vmatpush1.msra.mxu0 0.0
  %2301 = vmatprep.subr.mxu0 0.0
  %2302 = vmatpush1.msra.mxu0 0.0
  %2303 = vmatprep.subr.mxu0 0.0
  %2304 = vmatpush1.msra.mxu0 0.0
  %2305 = vmatprep.subr.mxu0 0.0
  %2306 = vmatpush1.msra.mxu0 0.0
  %2307 = vmatprep.subr.mxu0 0.0
  %2308 = vmatpush1.msra.mxu0 %v2193
  %2309 = vmatprep.subr.mxu0 0.0
  %2310 = vmatpush1.msra.mxu0 %v2192
  %2311 = vmatprep.subr.mxu0 0.0
  %2312 = vmatpush1.msra.mxu0 %v2191
  %2313 = vmatprep.subr.mxu0 0.0
  %2314 = vmatpush1.msra.mxu0 %v2190
  %2315 = vmatprep.subr.mxu0 0.0
  %2316 = vmatpush2.msra.mxu0 0.0
  %2317 = vmatprep.subr.mxu0 0.0
  %2318 = vmatpush2.msra.mxu0 0.0
  %2319 = vmatprep.subr.mxu0 0.0
  %2320 = vmatpush2.msra.mxu0 0.0
  %2321 = vmatprep.subr.mxu0 0.0
  %2322 = vmatpush2.msra.mxu0 0.0
  %2323 = vmatprep.subr.mxu0 0.0
  %2324 = vmatpush2.msra.mxu0 0.0
  %2325 = vmatprep.subr.mxu0 0.0
  %2326 = vmatpush2.msra.mxu0 0.0
  %2327 = vmatprep.subr.mxu0 0.0
  %2328 = vmatpush2.msra.mxu0 0.0
  %2329 = vmatprep.subr.mxu0 0.0
  %2330 = vmatpush2.msra.mxu0 0.0
  %2331 = vmatprep.subr.mxu0 0.0
  %2332 = vmatpush2.msra.mxu0 0.0
  %2333 = vmatprep.subr.mxu0 0.0
  %2334 = vmatpush2.msra.mxu0 0.0
  %2335 = vmatprep.subr.mxu0 0.0
  %2336 = vmatpush2.msra.mxu0 0.0
  %2337 = vmatprep.subr.mxu0 0.0
  %2338 = vmatpush2.msra.mxu0 0.0
  %2339 = vmatprep.subr.mxu0 0.0
  %2340 = vmatpush2.msra.mxu0 0.0
  %2341 = vmatprep.subr.mxu0 0.0
  %2342 = vmatpush2.msra.mxu0 0.0
  %2343 = vmatprep.subr.mxu0 0.0
  %2344 = vmatpush2.msra.mxu0 0.0
  %2345 = vmatprep.subr.mxu0 0.0
  %2346 = vmatpush2.msra.mxu0 0.0
  %2347 = vmatprep.mubr.f32.mxu0 0.0
  %2348 = vmatmul.mubr.f32.gmra.mxu0 %v1980
  %v2349 = vpop.f32.mrf.mxu0
  %v2350 = vadd.f32 %v2265, %v2349
  %v2351 = vpop.f32.mrf.mxu0
  %2352 = vmatprep.mubr.f32.mxu0 0.0
  %2353 = vmatmul.mubr.f32.gmra.mxu0 %v1983
  %v2354 = vpop.f32.mrf.mxu0
  %v2355 = vadd.f32 %v2270, %v2354
  %v2356 = vpop.f32.mrf.mxu0
  %2357 = vmatprep.mubr.f32.mxu0 0.0
  %2358 = vmatmul.mubr.f32.gmra.mxu0 %v1986
  %v2359 = vpop.f32.mrf.mxu0
  %v2360 = vadd.f32 %v2275, %v2359
  %v2361 = vpop.f32.mrf.mxu0
  %2362 = vmatprep.mubr.f32.mxu0 0.0
  %2363 = vmatmul.mubr.f32.gmra.mxu0 %v1989
  %v2364 = vpop.f32.mrf.mxu0
  %v2365 = vadd.f32 %v2280, %v2364
  %v2366 = vpop.f32.mrf.mxu0
  %2367 = vdwg.mxu0
  %v2368 = vld [vmem:[%s1 + $0x2a8] sm:$0xff]
  %v2369 = vld [vmem:[%s1 + $0x2b0] sm:$0xff]
  %v2370 = vld [vmem:[%s1 + $0x2b8] sm:$0xff]
  %v2371 = vld [vmem:[%s1 + $0x2c0] sm:$0xff]
  %2372 = vmatprep.subr.mxu0 0.0
  %2373 = vmatpush1.msra.mxu0 0.0
  %2374 = vmatprep.subr.mxu0 0.0
  %2375 = vmatpush1.msra.mxu0 0.0
  %2376 = vmatprep.subr.mxu0 0.0
  %2377 = vmatpush1.msra.mxu0 0.0
  %2378 = vmatprep.subr.mxu0 0.0
  %2379 = vmatpush1.msra.mxu0 0.0
  %2380 = vmatprep.subr.mxu0 0.0
  %2381 = vmatpush1.msra.mxu0 0.0
  %2382 = vmatprep.subr.mxu0 0.0
  %2383 = vmatpush1.msra.mxu0 0.0
  %2384 = vmatprep.subr.mxu0 0.0
  %2385 = vmatpush1.msra.mxu0 0.0
  %2386 = vmatprep.subr.mxu0 0.0
  %2387 = vmatpush1.msra.mxu0 0.0
  %2388 = vmatprep.subr.mxu0 0.0
  %2389 = vmatpush1.msra.mxu0 0.0
  %2390 = vmatprep.subr.mxu0 0.0
  %2391 = vmatpush1.msra.mxu0 0.0
  %2392 = vmatprep.subr.mxu0 0.0
  %2393 = vmatpush1.msra.mxu0 0.0
  %2394 = vmatprep.subr.mxu0 0.0
  %2395 = vmatpush1.msra.mxu0 0.0
  %2396 = vmatprep.subr.mxu0 0.0
  %2397 = vmatpush1.msra.mxu0 %v2371
  %2398 = vmatprep.subr.mxu0 0.0
  %2399 = vmatpush1.msra.mxu0 %v2370
  %2400 = vmatprep.subr.mxu0 0.0
  %2401 = vmatpush1.msra.mxu0 %v2369
  %2402 = vmatprep.subr.mxu0 0.0
  %2403 = vmatpush1.msra.mxu0 %v2368
  %2404 = vmatprep.subr.mxu0 0.0
  %2405 = vmatpush2.msra.mxu0 0.0
  %2406 = vmatprep.subr.mxu0 0.0
  %2407 = vmatpush2.msra.mxu0 0.0
  %2408 = vmatprep.subr.mxu0 0.0
  %2409 = vmatpush2.msra.mxu0 0.0
  %2410 = vmatprep.subr.mxu0 0.0
  %2411 = vmatpush2.msra.mxu0 0.0
  %2412 = vmatprep.subr.mxu0 0.0
  %2413 = vmatpush2.msra.mxu0 0.0
  %2414 = vmatprep.subr.mxu0 0.0
  %2415 = vmatpush2.msra.mxu0 0.0
  %2416 = vmatprep.subr.mxu0 0.0
  %2417 = vmatpush2.msra.mxu0 0.0
  %2418 = vmatprep.subr.mxu0 0.0
  %2419 = vmatpush2.msra.mxu0 0.0
  %2420 = vmatprep.subr.mxu0 0.0
  %2421 = vmatpush2.msra.mxu0 0.0
  %2422 = vmatprep.subr.mxu0 0.0
  %2423 = vmatpush2.msra.mxu0 0.0
  %2424 = vmatprep.subr.mxu0 0.0
  %2425 = vmatpush2.msra.mxu0 0.0
  %2426 = vmatprep.subr.mxu0 0.0
  %2427 = vmatpush2.msra.mxu0 0.0
  %2428 = vmatprep.subr.mxu0 0.0
  %2429 = vmatpush2.msra.mxu0 0.0
  %2430 = vmatprep.subr.mxu0 0.0
  %2431 = vmatpush2.msra.mxu0 0.0
  %2432 = vmatprep.subr.mxu0 0.0
  %2433 = vmatpush2.msra.mxu0 0.0
  %2434 = vmatprep.subr.mxu0 0.0
  %2435 = vmatpush2.msra.mxu0 0.0
  %2436 = vmatprep.mubr.f32.mxu0 0.0
  %2437 = vmatmul.mubr.f32.gmra.mxu0 %v2081
  %v2438 = vpop.f32.mrf.mxu0
  %v2439 = vadd.f32 0.0, %v2438
  %v2440 = vpop.f32.mrf.mxu0
  %2441 = vmatprep.mubr.f32.mxu0 0.0
  %2442 = vmatmul.mubr.f32.gmra.mxu0 %v2084
  %v2443 = vpop.f32.mrf.mxu0
  %v2444 = vadd.f32 0.0, %v2443
  %v2445 = vpop.f32.mrf.mxu0
  %2446 = vmatprep.mubr.f32.mxu0 0.0
  %2447 = vmatmul.mubr.f32.gmra.mxu0 %v2087
  %v2448 = vpop.f32.mrf.mxu0
  %v2449 = vadd.f32 0.0, %v2448
  %v2450 = vpop.f32.mrf.mxu0
  %2451 = vmatprep.mubr.f32.mxu0 0.0
  %2452 = vmatmul.mubr.f32.gmra.mxu0 %v2090
  %v2453 = vpop.f32.mrf.mxu0
  %v2454 = vadd.f32 0.0, %v2453
  %v2455 = vpop.f32.mrf.mxu0
  %2456 = vdwg.mxu0
  %v2457 = vadd.f32 %v2350, %v2439
  %v2458 = vadd.f32 %v2355, %v2444
  %v2459 = vadd.f32 %v2360, %v2449
  %v2460 = vadd.f32 %v2365, %v2454
  %v2461 = vld [vmem:[%s1 + $0x2d0] sm:$0x1]
  %v2462 = vlaneseq
  %v2463 = vshrl.u32 %v2462, 7
  %v2464 = vsub.s32 0, %v2463
  %v2465 = vrot.slane %v2461, %v2464
  %v2466 = vadd.f32 %v2457, %v2465
  %v2467 = vadd.f32 %v2458, %v2465
  %v2468 = vadd.f32 %v2459, %v2465
  %v2469 = vadd.f32 %v2460, %v2465
  %v2470 = vmul.f32 %v2466, 0.5
  %v2471 = vmul.f32 %v2467, 0.5
  %v2472 = vmul.f32 %v2468, 0.5
  %v2473 = vmul.f32 %v2469, 0.5
  %v2474 = vtanh.pop %v2470
  %v2475 = vtanh.pop %v2471
  %v2476 = vtanh.pop %v2472
  %v2477 = vtanh.pop %v2473
  %v2478 = vmul.f32 %v2474, 0.5
  %v2479 = vmul.f32 %v2475, 0.5
  %v2480 = vmul.f32 %v2476, 0.5
  %v2481 = vmul.f32 %v2477, 0.5
  %v2482 = vadd.f32 %v2478, 0.5
  %v2483 = vadd.f32 %v2479, 0.5
  %v2484 = vadd.f32 %v2480, 0.5
  %v2485 = vadd.f32 %v2481, 0.5
  %v2486 = vmul.f32 %v2186, %v2482
  %v2487 = vmul.f32 %v2187, %v2483
  %v2488 = vmul.f32 %v2188, %v2484
  %v2489 = vmul.f32 %v2189, %v2485
  %v2490 = vsel %vm90, %v2486, 0.0
  %v2491 = vsel %vm90, %v2487, 0.0
  %v2492 = vadd.f32 %v2490, %v2491
  %v2493 = vsel %vm90, %v2488, 0.0
  %v2494 = vadd.f32 %v2492, %v2493
  %v2495 = vsel %vm90, %v2489, 0.0
  %v2496 = vadd.f32 %v2494, %v2495
  %v2497 = vrot.slane %v2496, 4
  %v2498 = vadd.f32 %v2496, %v2497
  %v2499 = vrot.slane %v2498, 2
  %v2500 = vadd.f32 %v2498, %v2499
  %v2501 = vrot.slane %v2500, 1
  %v2502 = vadd.f32 %v2500, %v2501
  %v2503 = vmul.f32 %v2502, %v432
  %v2504 = vsub.f32 %v2486, %v2503
  %v2505 = vsub.f32 %v2487, %v2503
  %v2506 = vsub.f32 %v2488, %v2503
  %v2507 = vsub.f32 %v2489, %v2503
  %v2508 = vmul.f32 %v2504, %v2504
  %v2509 = vmul.f32 %v2505, %v2505
  %v2510 = vmul.f32 %v2506, %v2506
  %v2511 = vmul.f32 %v2507, %v2507
  %v2512 = vsel %vm90, %v2508, 0.0
  %v2513 = vsel %vm90, %v2509, 0.0
  %v2514 = vadd.f32 %v2512, %v2513
  %v2515 = vsel %vm90, %v2510, 0.0
  %v2516 = vadd.f32 %v2514, %v2515
  %v2517 = vsel %vm90, %v2511, 0.0
  %v2518 = vadd.f32 %v2516, %v2517
  %v2519 = vrot.slane %v2518, 4
  %v2520 = vadd.f32 %v2518, %v2519
  %v2521 = vrot.slane %v2520, 2
  %v2522 = vadd.f32 %v2520, %v2521
  %v2523 = vrot.slane %v2522, 1
  %v2524 = vadd.f32 %v2522, %v2523
  %v2525 = vmul.f32 %v2524, %v432
  %v2526 = vadd.f32 %v2525, 1e-05
  %v2527 = vrsqrt.pop %v2526
  %v2528 = vmul.f32 %v2504, %v2527
  %v2529 = vmul.f32 %v2505, %v2527
  %v2530 = vmul.f32 %v2506, %v2527
  %v2531 = vmul.f32 %v2507, %v2527
  %v2536 = vrot.slane %v2528, 7
  %v2537 = vrot.slane %v2529, 7
  %v2538 = vsel %vm48, %v2536, %v2537
  %v2539 = vrot.slane %v2530, 7
  %v2540 = vsel %vm48, %v2537, %v2539
  %v2541 = vrot.slane %v2531, 7
  %v2542 = vsel %vm48, %v2539, %v2541
  %v2547 = vsel %vm48, 0.0, %v2536
  %v2548 = vrot.slane %v2528, 1
  %v2549 = vrot.slane %v2529, 1
  %v2550 = vsel %vm61, %v2548, %v2549
  %v2551 = vrot.slane %v2530, 1
  %v2552 = vsel %vm61, %v2549, %v2551
  %v2553 = vrot.slane %v2531, 1
  %v2554 = vsel %vm61, %v2551, %v2553
  %v2559 = vsel %vm61, %v2553, 0.0
  %v2560 = vsel %vm32, 0.0, %v2547
  %v2561 = vsel %vm33, 0.0, %v2538
  %v2562 = vsel %vm34, 0.0, %v2540
  %v2563 = vsel %vm35, 0.0, %v2542
  %v2564 = vsel %vm40, 0.0, %v2550
  %v2565 = vsel %vm41, 0.0, %v2552
  %v2566 = vsel %vm42, 0.0, %v2554
  %v2567 = vsel %vm43, 0.0, %v2559
  %v2568 = vld [vmem:[%s1 + $0x2d8] sm:$0xff]
  %v2569 = vld [vmem:[%s1 + $0x2e0] sm:$0xff]
  %v2570 = vld [vmem:[%s1 + $0x2e8] sm:$0xff]
  %v2571 = vld [vmem:[%s1 + $0x2f0] sm:$0xff]
  %v2572 = vld [vmem:[%s1 + $0x2f8] sm:$0xff]
  %v2573 = vld [vmem:[%s1 + $0x300] sm:$0xff]
  %v2574 = vld [vmem:[%s1 + $0x308] sm:$0xff]
  %v2575 = vld [vmem:[%s1 + $0x310] sm:$0xff]
  %v2576 = vsel %vm90, %v2528, 0
  %v2578 = vsel %vm90, %v2529, 0
  %v2580 = vsel %vm90, %v2530, 0
  %v2582 = vsel %vm90, %v2531, 0
  %2584 = vmatprep.subr.mxu0 0.0
  %2585 = vmatpush1.msra.mxu0 0.0
  %2586 = vmatprep.subr.mxu0 0.0
  %2587 = vmatpush1.msra.mxu0 0.0
  %2588 = vmatprep.subr.mxu0 0.0
  %2589 = vmatpush1.msra.mxu0 0.0
  %2590 = vmatprep.subr.mxu0 0.0
  %2591 = vmatpush1.msra.mxu0 0.0
  %2592 = vmatprep.subr.mxu0 0.0
  %2593 = vmatpush1.msra.mxu0 0.0
  %2594 = vmatprep.subr.mxu0 0.0
  %2595 = vmatpush1.msra.mxu0 0.0
  %2596 = vmatprep.subr.mxu0 0.0
  %2597 = vmatpush1.msra.mxu0 0.0
  %2598 = vmatprep.subr.mxu0 0.0
  %2599 = vmatpush1.msra.mxu0 0.0
  %2600 = vmatprep.subr.mxu0 0.0
  %2601 = vmatpush1.msra.mxu0 0.0
  %2602 = vmatprep.subr.mxu0 0.0
  %2603 = vmatpush1.msra.mxu0 0.0
  %2604 = vmatprep.subr.mxu0 0.0
  %2605 = vmatpush1.msra.mxu0 0.0
  %2606 = vmatprep.subr.mxu0 0.0
  %2607 = vmatpush1.msra.mxu0 0.0
  %2608 = vmatprep.subr.mxu0 0.0
  %2609 = vmatpush1.msra.mxu0 %v2575
  %2610 = vmatprep.subr.mxu0 0.0
  %2611 = vmatpush1.msra.mxu0 %v2574
  %2612 = vmatprep.subr.mxu0 0.0
  %2613 = vmatpush1.msra.mxu0 %v2573
  %2614 = vmatprep.subr.mxu0 0.0
  %2615 = vmatpush1.msra.mxu0 %v2572
  %2616 = vmatprep.subr.mxu0 0.0
  %2617 = vmatpush2.msra.mxu0 0.0
  %2618 = vmatprep.subr.mxu0 0.0
  %2619 = vmatpush2.msra.mxu0 0.0
  %2620 = vmatprep.subr.mxu0 0.0
  %2621 = vmatpush2.msra.mxu0 0.0
  %2622 = vmatprep.subr.mxu0 0.0
  %2623 = vmatpush2.msra.mxu0 0.0
  %2624 = vmatprep.subr.mxu0 0.0
  %2625 = vmatpush2.msra.mxu0 0.0
  %2626 = vmatprep.subr.mxu0 0.0
  %2627 = vmatpush2.msra.mxu0 0.0
  %2628 = vmatprep.subr.mxu0 0.0
  %2629 = vmatpush2.msra.mxu0 0.0
  %2630 = vmatprep.subr.mxu0 0.0
  %2631 = vmatpush2.msra.mxu0 0.0
  %2632 = vmatprep.subr.mxu0 0.0
  %2633 = vmatpush2.msra.mxu0 0.0
  %2634 = vmatprep.subr.mxu0 0.0
  %2635 = vmatpush2.msra.mxu0 0.0
  %2636 = vmatprep.subr.mxu0 0.0
  %2637 = vmatpush2.msra.mxu0 0.0
  %2638 = vmatprep.subr.mxu0 0.0
  %2639 = vmatpush2.msra.mxu0 0.0
  %2640 = vmatprep.subr.mxu0 0.0
  %2641 = vmatpush2.msra.mxu0 0.0
  %2642 = vmatprep.subr.mxu0 0.0
  %2643 = vmatpush2.msra.mxu0 0.0
  %2644 = vmatprep.subr.mxu0 0.0
  %2645 = vmatpush2.msra.mxu0 0.0
  %2646 = vmatprep.subr.mxu0 0.0
  %2647 = vmatpush2.msra.mxu0 0.0
  %2648 = vmatprep.mubr.f32.mxu0 0.0
  %2649 = vmatmul.mubr.f32.gmra.mxu0 %v2576
  %v2650 = vpop.f32.mrf.mxu0
  %v2651 = vadd.f32 0.0, %v2650
  %v2652 = vpop.f32.mrf.mxu0
  %2653 = vmatprep.mubr.f32.mxu0 0.0
  %2654 = vmatmul.mubr.f32.gmra.mxu0 %v2578
  %v2655 = vpop.f32.mrf.mxu0
  %v2656 = vadd.f32 0.0, %v2655
  %v2657 = vpop.f32.mrf.mxu0
  %2658 = vmatprep.mubr.f32.mxu0 0.0
  %2659 = vmatmul.mubr.f32.gmra.mxu0 %v2580
  %v2660 = vpop.f32.mrf.mxu0
  %v2661 = vadd.f32 0.0, %v2660
  %v2662 = vpop.f32.mrf.mxu0
  %2663 = vmatprep.mubr.f32.mxu0 0.0
  %2664 = vmatmul.mubr.f32.gmra.mxu0 %v2582
  %v2665 = vpop.f32.mrf.mxu0
  %v2666 = vadd.f32 0.0, %v2665
  %v2667 = vpop.f32.mrf.mxu0
  %2668 = vdwg.mxu0
  %v2670 = vsel %vm90, %v2560, 0
  %v2673 = vsel %vm90, %v2561, 0
  %v2676 = vsel %vm90, %v2562, 0
  %v2679 = vsel %vm90, %v2563, 0
  %2681 = vmatprep.subr.mxu0 0.0
  %2682 = vmatpush1.msra.mxu0 0.0
  %2683 = vmatprep.subr.mxu0 0.0
  %2684 = vmatpush1.msra.mxu0 0.0
  %2685 = vmatprep.subr.mxu0 0.0
  %2686 = vmatpush1.msra.mxu0 0.0
  %2687 = vmatprep.subr.mxu0 0.0
  %2688 = vmatpush1.msra.mxu0 0.0
  %2689 = vmatprep.subr.mxu0 0.0
  %2690 = vmatpush1.msra.mxu0 0.0
  %2691 = vmatprep.subr.mxu0 0.0
  %2692 = vmatpush1.msra.mxu0 0.0
  %2693 = vmatprep.subr.mxu0 0.0
  %2694 = vmatpush1.msra.mxu0 0.0
  %2695 = vmatprep.subr.mxu0 0.0
  %2696 = vmatpush1.msra.mxu0 0.0
  %2697 = vmatprep.subr.mxu0 0.0
  %2698 = vmatpush1.msra.mxu0 0.0
  %2699 = vmatprep.subr.mxu0 0.0
  %2700 = vmatpush1.msra.mxu0 0.0
  %2701 = vmatprep.subr.mxu0 0.0
  %2702 = vmatpush1.msra.mxu0 0.0
  %2703 = vmatprep.subr.mxu0 0.0
  %2704 = vmatpush1.msra.mxu0 0.0
  %2705 = vmatprep.subr.mxu0 0.0
  %2706 = vmatpush1.msra.mxu0 %v2571
  %2707 = vmatprep.subr.mxu0 0.0
  %2708 = vmatpush1.msra.mxu0 %v2570
  %2709 = vmatprep.subr.mxu0 0.0
  %2710 = vmatpush1.msra.mxu0 %v2569
  %2711 = vmatprep.subr.mxu0 0.0
  %2712 = vmatpush1.msra.mxu0 %v2568
  %2713 = vmatprep.subr.mxu0 0.0
  %2714 = vmatpush2.msra.mxu0 0.0
  %2715 = vmatprep.subr.mxu0 0.0
  %2716 = vmatpush2.msra.mxu0 0.0
  %2717 = vmatprep.subr.mxu0 0.0
  %2718 = vmatpush2.msra.mxu0 0.0
  %2719 = vmatprep.subr.mxu0 0.0
  %2720 = vmatpush2.msra.mxu0 0.0
  %2721 = vmatprep.subr.mxu0 0.0
  %2722 = vmatpush2.msra.mxu0 0.0
  %2723 = vmatprep.subr.mxu0 0.0
  %2724 = vmatpush2.msra.mxu0 0.0
  %2725 = vmatprep.subr.mxu0 0.0
  %2726 = vmatpush2.msra.mxu0 0.0
  %2727 = vmatprep.subr.mxu0 0.0
  %2728 = vmatpush2.msra.mxu0 0.0
  %2729 = vmatprep.subr.mxu0 0.0
  %2730 = vmatpush2.msra.mxu0 0.0
  %2731 = vmatprep.subr.mxu0 0.0
  %2732 = vmatpush2.msra.mxu0 0.0
  %2733 = vmatprep.subr.mxu0 0.0
  %2734 = vmatpush2.msra.mxu0 0.0
  %2735 = vmatprep.subr.mxu0 0.0
  %2736 = vmatpush2.msra.mxu0 0.0
  %2737 = vmatprep.subr.mxu0 0.0
  %2738 = vmatpush2.msra.mxu0 0.0
  %2739 = vmatprep.subr.mxu0 0.0
  %2740 = vmatpush2.msra.mxu0 0.0
  %2741 = vmatprep.subr.mxu0 0.0
  %2742 = vmatpush2.msra.mxu0 0.0
  %2743 = vmatprep.subr.mxu0 0.0
  %2744 = vmatpush2.msra.mxu0 0.0
  %2745 = vmatprep.mubr.f32.mxu0 0.0
  %2746 = vmatmul.mubr.f32.gmra.mxu0 %v2670
  %v2747 = vpop.f32.mrf.mxu0
  %v2748 = vadd.f32 %v2651, %v2747
  %v2749 = vpop.f32.mrf.mxu0
  %2750 = vmatprep.mubr.f32.mxu0 0.0
  %2751 = vmatmul.mubr.f32.gmra.mxu0 %v2673
  %v2752 = vpop.f32.mrf.mxu0
  %v2753 = vadd.f32 %v2656, %v2752
  %v2754 = vpop.f32.mrf.mxu0
  %2755 = vmatprep.mubr.f32.mxu0 0.0
  %2756 = vmatmul.mubr.f32.gmra.mxu0 %v2676
  %v2757 = vpop.f32.mrf.mxu0
  %v2758 = vadd.f32 %v2661, %v2757
  %v2759 = vpop.f32.mrf.mxu0
  %2760 = vmatprep.mubr.f32.mxu0 0.0
  %2761 = vmatmul.mubr.f32.gmra.mxu0 %v2679
  %v2762 = vpop.f32.mrf.mxu0
  %v2763 = vadd.f32 %v2666, %v2762
  %v2764 = vpop.f32.mrf.mxu0
  %2765 = vdwg.mxu0
  %v2766 = vld [vmem:[%s1 + $0x318] sm:$0xff]
  %v2767 = vld [vmem:[%s1 + $0x320] sm:$0xff]
  %v2768 = vld [vmem:[%s1 + $0x328] sm:$0xff]
  %v2769 = vld [vmem:[%s1 + $0x330] sm:$0xff]
  %v2771 = vsel %vm90, %v2564, 0
  %v2774 = vsel %vm90, %v2565, 0
  %v2777 = vsel %vm90, %v2566, 0
  %v2780 = vsel %vm90, %v2567, 0
  %2782 = vmatprep.subr.mxu0 0.0
  %2783 = vmatpush1.msra.mxu0 0.0
  %2784 = vmatprep.subr.mxu0 0.0
  %2785 = vmatpush1.msra.mxu0 0.0
  %2786 = vmatprep.subr.mxu0 0.0
  %2787 = vmatpush1.msra.mxu0 0.0
  %2788 = vmatprep.subr.mxu0 0.0
  %2789 = vmatpush1.msra.mxu0 0.0
  %2790 = vmatprep.subr.mxu0 0.0
  %2791 = vmatpush1.msra.mxu0 0.0
  %2792 = vmatprep.subr.mxu0 0.0
  %2793 = vmatpush1.msra.mxu0 0.0
  %2794 = vmatprep.subr.mxu0 0.0
  %2795 = vmatpush1.msra.mxu0 0.0
  %2796 = vmatprep.subr.mxu0 0.0
  %2797 = vmatpush1.msra.mxu0 0.0
  %2798 = vmatprep.subr.mxu0 0.0
  %2799 = vmatpush1.msra.mxu0 0.0
  %2800 = vmatprep.subr.mxu0 0.0
  %2801 = vmatpush1.msra.mxu0 0.0
  %2802 = vmatprep.subr.mxu0 0.0
  %2803 = vmatpush1.msra.mxu0 0.0
  %2804 = vmatprep.subr.mxu0 0.0
  %2805 = vmatpush1.msra.mxu0 0.0
  %2806 = vmatprep.subr.mxu0 0.0
  %2807 = vmatpush1.msra.mxu0 %v2769
  %2808 = vmatprep.subr.mxu0 0.0
  %2809 = vmatpush1.msra.mxu0 %v2768
  %2810 = vmatprep.subr.mxu0 0.0
  %2811 = vmatpush1.msra.mxu0 %v2767
  %2812 = vmatprep.subr.mxu0 0.0
  %2813 = vmatpush1.msra.mxu0 %v2766
  %2814 = vmatprep.subr.mxu0 0.0
  %2815 = vmatpush2.msra.mxu0 0.0
  %2816 = vmatprep.subr.mxu0 0.0
  %2817 = vmatpush2.msra.mxu0 0.0
  %2818 = vmatprep.subr.mxu0 0.0
  %2819 = vmatpush2.msra.mxu0 0.0
  %2820 = vmatprep.subr.mxu0 0.0
  %2821 = vmatpush2.msra.mxu0 0.0
  %2822 = vmatprep.subr.mxu0 0.0
  %2823 = vmatpush2.msra.mxu0 0.0
  %2824 = vmatprep.subr.mxu0 0.0
  %2825 = vmatpush2.msra.mxu0 0.0
  %2826 = vmatprep.subr.mxu0 0.0
  %2827 = vmatpush2.msra.mxu0 0.0
  %2828 = vmatprep.subr.mxu0 0.0
  %2829 = vmatpush2.msra.mxu0 0.0
  %2830 = vmatprep.subr.mxu0 0.0
  %2831 = vmatpush2.msra.mxu0 0.0
  %2832 = vmatprep.subr.mxu0 0.0
  %2833 = vmatpush2.msra.mxu0 0.0
  %2834 = vmatprep.subr.mxu0 0.0
  %2835 = vmatpush2.msra.mxu0 0.0
  %2836 = vmatprep.subr.mxu0 0.0
  %2837 = vmatpush2.msra.mxu0 0.0
  %2838 = vmatprep.subr.mxu0 0.0
  %2839 = vmatpush2.msra.mxu0 0.0
  %2840 = vmatprep.subr.mxu0 0.0
  %2841 = vmatpush2.msra.mxu0 0.0
  %2842 = vmatprep.subr.mxu0 0.0
  %2843 = vmatpush2.msra.mxu0 0.0
  %2844 = vmatprep.subr.mxu0 0.0
  %2845 = vmatpush2.msra.mxu0 0.0
  %2846 = vmatprep.mubr.f32.mxu0 0.0
  %2847 = vmatmul.mubr.f32.gmra.mxu0 %v2771
  %v2848 = vpop.f32.mrf.mxu0
  %v2849 = vadd.f32 0.0, %v2848
  %v2850 = vpop.f32.mrf.mxu0
  %2851 = vmatprep.mubr.f32.mxu0 0.0
  %2852 = vmatmul.mubr.f32.gmra.mxu0 %v2774
  %v2853 = vpop.f32.mrf.mxu0
  %v2854 = vadd.f32 0.0, %v2853
  %v2855 = vpop.f32.mrf.mxu0
  %2856 = vmatprep.mubr.f32.mxu0 0.0
  %2857 = vmatmul.mubr.f32.gmra.mxu0 %v2777
  %v2858 = vpop.f32.mrf.mxu0
  %v2859 = vadd.f32 0.0, %v2858
  %v2860 = vpop.f32.mrf.mxu0
  %2861 = vmatprep.mubr.f32.mxu0 0.0
  %2862 = vmatmul.mubr.f32.gmra.mxu0 %v2780
  %v2863 = vpop.f32.mrf.mxu0
  %v2864 = vadd.f32 0.0, %v2863
  %v2865 = vpop.f32.mrf.mxu0
  %2866 = vdwg.mxu0
  %v2867 = vadd.f32 %v2748, %v2849
  %v2868 = vadd.f32 %v2753, %v2854
  %v2869 = vadd.f32 %v2758, %v2859
  %v2870 = vadd.f32 %v2763, %v2864
  %v2871 = vld [vmem:[%s1 + $0x398] sm:$0x1]
  %v2872 = vlaneseq
  %v2873 = vshrl.u32 %v2872, 7
  %v2874 = vsub.s32 0, %v2873
  %v2875 = vrot.slane %v2871, %v2874
  %v2876 = vadd.f32 %v2867, %v2875
  %v2877 = vadd.f32 %v2868, %v2875
  %v2878 = vadd.f32 %v2869, %v2875
  %v2879 = vadd.f32 %v2870, %v2875
  %v2880 = vld [vmem:[%s1 + $0x338] sm:$0xff]
  %v2881 = vld [vmem:[%s1 + $0x340] sm:$0xff]
  %v2882 = vld [vmem:[%s1 + $0x348] sm:$0xff]
  %v2883 = vld [vmem:[%s1 + $0x350] sm:$0xff]
  %v2884 = vld [vmem:[%s1 + $0x358] sm:$0xff]
  %v2885 = vld [vmem:[%s1 + $0x360] sm:$0xff]
  %v2886 = vld [vmem:[%s1 + $0x368] sm:$0xff]
  %v2887 = vld [vmem:[%s1 + $0x370] sm:$0xff]
  %2888 = vmatprep.subr.mxu0 0.0
  %2889 = vmatpush1.msra.mxu0 0.0
  %2890 = vmatprep.subr.mxu0 0.0
  %2891 = vmatpush1.msra.mxu0 0.0
  %2892 = vmatprep.subr.mxu0 0.0
  %2893 = vmatpush1.msra.mxu0 0.0
  %2894 = vmatprep.subr.mxu0 0.0
  %2895 = vmatpush1.msra.mxu0 0.0
  %2896 = vmatprep.subr.mxu0 0.0
  %2897 = vmatpush1.msra.mxu0 0.0
  %2898 = vmatprep.subr.mxu0 0.0
  %2899 = vmatpush1.msra.mxu0 0.0
  %2900 = vmatprep.subr.mxu0 0.0
  %2901 = vmatpush1.msra.mxu0 0.0
  %2902 = vmatprep.subr.mxu0 0.0
  %2903 = vmatpush1.msra.mxu0 0.0
  %2904 = vmatprep.subr.mxu0 0.0
  %2905 = vmatpush1.msra.mxu0 0.0
  %2906 = vmatprep.subr.mxu0 0.0
  %2907 = vmatpush1.msra.mxu0 0.0
  %2908 = vmatprep.subr.mxu0 0.0
  %2909 = vmatpush1.msra.mxu0 0.0
  %2910 = vmatprep.subr.mxu0 0.0
  %2911 = vmatpush1.msra.mxu0 0.0
  %2912 = vmatprep.subr.mxu0 0.0
  %2913 = vmatpush1.msra.mxu0 %v2887
  %2914 = vmatprep.subr.mxu0 0.0
  %2915 = vmatpush1.msra.mxu0 %v2886
  %2916 = vmatprep.subr.mxu0 0.0
  %2917 = vmatpush1.msra.mxu0 %v2885
  %2918 = vmatprep.subr.mxu0 0.0
  %2919 = vmatpush1.msra.mxu0 %v2884
  %2920 = vmatprep.subr.mxu0 0.0
  %2921 = vmatpush2.msra.mxu0 0.0
  %2922 = vmatprep.subr.mxu0 0.0
  %2923 = vmatpush2.msra.mxu0 0.0
  %2924 = vmatprep.subr.mxu0 0.0
  %2925 = vmatpush2.msra.mxu0 0.0
  %2926 = vmatprep.subr.mxu0 0.0
  %2927 = vmatpush2.msra.mxu0 0.0
  %2928 = vmatprep.subr.mxu0 0.0
  %2929 = vmatpush2.msra.mxu0 0.0
  %2930 = vmatprep.subr.mxu0 0.0
  %2931 = vmatpush2.msra.mxu0 0.0
  %2932 = vmatprep.subr.mxu0 0.0
  %2933 = vmatpush2.msra.mxu0 0.0
  %2934 = vmatprep.subr.mxu0 0.0
  %2935 = vmatpush2.msra.mxu0 0.0
  %2936 = vmatprep.subr.mxu0 0.0
  %2937 = vmatpush2.msra.mxu0 0.0
  %2938 = vmatprep.subr.mxu0 0.0
  %2939 = vmatpush2.msra.mxu0 0.0
  %2940 = vmatprep.subr.mxu0 0.0
  %2941 = vmatpush2.msra.mxu0 0.0
  %2942 = vmatprep.subr.mxu0 0.0
  %2943 = vmatpush2.msra.mxu0 0.0
  %2944 = vmatprep.subr.mxu0 0.0
  %2945 = vmatpush2.msra.mxu0 0.0
  %2946 = vmatprep.subr.mxu0 0.0
  %2947 = vmatpush2.msra.mxu0 0.0
  %2948 = vmatprep.subr.mxu0 0.0
  %2949 = vmatpush2.msra.mxu0 0.0
  %2950 = vmatprep.subr.mxu0 0.0
  %2951 = vmatpush2.msra.mxu0 0.0
  %2952 = vmatprep.mubr.f32.mxu0 0.0
  %2953 = vmatmul.mubr.f32.gmra.mxu0 %v2576
  %v2954 = vpop.f32.mrf.mxu0
  %v2955 = vadd.f32 0.0, %v2954
  %v2956 = vpop.f32.mrf.mxu0
  %2957 = vmatprep.mubr.f32.mxu0 0.0
  %2958 = vmatmul.mubr.f32.gmra.mxu0 %v2578
  %v2959 = vpop.f32.mrf.mxu0
  %v2960 = vadd.f32 0.0, %v2959
  %v2961 = vpop.f32.mrf.mxu0
  %2962 = vmatprep.mubr.f32.mxu0 0.0
  %2963 = vmatmul.mubr.f32.gmra.mxu0 %v2580
  %v2964 = vpop.f32.mrf.mxu0
  %v2965 = vadd.f32 0.0, %v2964
  %v2966 = vpop.f32.mrf.mxu0
  %2967 = vmatprep.mubr.f32.mxu0 0.0
  %2968 = vmatmul.mubr.f32.gmra.mxu0 %v2582
  %v2969 = vpop.f32.mrf.mxu0
  %v2970 = vadd.f32 0.0, %v2969
  %v2971 = vpop.f32.mrf.mxu0
  %2972 = vdwg.mxu0
  %2973 = vmatprep.subr.mxu0 0.0
  %2974 = vmatpush1.msra.mxu0 0.0
  %2975 = vmatprep.subr.mxu0 0.0
  %2976 = vmatpush1.msra.mxu0 0.0
  %2977 = vmatprep.subr.mxu0 0.0
  %2978 = vmatpush1.msra.mxu0 0.0
  %2979 = vmatprep.subr.mxu0 0.0
  %2980 = vmatpush1.msra.mxu0 0.0
  %2981 = vmatprep.subr.mxu0 0.0
  %2982 = vmatpush1.msra.mxu0 0.0
  %2983 = vmatprep.subr.mxu0 0.0
  %2984 = vmatpush1.msra.mxu0 0.0
  %2985 = vmatprep.subr.mxu0 0.0
  %2986 = vmatpush1.msra.mxu0 0.0
  %2987 = vmatprep.subr.mxu0 0.0
  %2988 = vmatpush1.msra.mxu0 0.0
  %2989 = vmatprep.subr.mxu0 0.0
  %2990 = vmatpush1.msra.mxu0 0.0
  %2991 = vmatprep.subr.mxu0 0.0
  %2992 = vmatpush1.msra.mxu0 0.0
  %2993 = vmatprep.subr.mxu0 0.0
  %2994 = vmatpush1.msra.mxu0 0.0
  %2995 = vmatprep.subr.mxu0 0.0
  %2996 = vmatpush1.msra.mxu0 0.0
  %2997 = vmatprep.subr.mxu0 0.0
  %2998 = vmatpush1.msra.mxu0 %v2883
  %2999 = vmatprep.subr.mxu0 0.0
  %3000 = vmatpush1.msra.mxu0 %v2882
  %3001 = vmatprep.subr.mxu0 0.0
  %3002 = vmatpush1.msra.mxu0 %v2881
  %3003 = vmatprep.subr.mxu0 0.0
  %3004 = vmatpush1.msra.mxu0 %v2880
  %3005 = vmatprep.subr.mxu0 0.0
  %3006 = vmatpush2.msra.mxu0 0.0
  %3007 = vmatprep.subr.mxu0 0.0
  %3008 = vmatpush2.msra.mxu0 0.0
  %3009 = vmatprep.subr.mxu0 0.0
  %3010 = vmatpush2.msra.mxu0 0.0
  %3011 = vmatprep.subr.mxu0 0.0
  %3012 = vmatpush2.msra.mxu0 0.0
  %3013 = vmatprep.subr.mxu0 0.0
  %3014 = vmatpush2.msra.mxu0 0.0
  %3015 = vmatprep.subr.mxu0 0.0
  %3016 = vmatpush2.msra.mxu0 0.0
  %3017 = vmatprep.subr.mxu0 0.0
  %3018 = vmatpush2.msra.mxu0 0.0
  %3019 = vmatprep.subr.mxu0 0.0
  %3020 = vmatpush2.msra.mxu0 0.0
  %3021 = vmatprep.subr.mxu0 0.0
  %3022 = vmatpush2.msra.mxu0 0.0
  %3023 = vmatprep.subr.mxu0 0.0
  %3024 = vmatpush2.msra.mxu0 0.0
  %3025 = vmatprep.subr.mxu0 0.0
  %3026 = vmatpush2.msra.mxu0 0.0
  %3027 = vmatprep.subr.mxu0 0.0
  %3028 = vmatpush2.msra.mxu0 0.0
  %3029 = vmatprep.subr.mxu0 0.0
  %3030 = vmatpush2.msra.mxu0 0.0
  %3031 = vmatprep.subr.mxu0 0.0
  %3032 = vmatpush2.msra.mxu0 0.0
  %3033 = vmatprep.subr.mxu0 0.0
  %3034 = vmatpush2.msra.mxu0 0.0
  %3035 = vmatprep.subr.mxu0 0.0
  %3036 = vmatpush2.msra.mxu0 0.0
  %3037 = vmatprep.mubr.f32.mxu0 0.0
  %3038 = vmatmul.mubr.f32.gmra.mxu0 %v2670
  %v3039 = vpop.f32.mrf.mxu0
  %v3040 = vadd.f32 %v2955, %v3039
  %v3041 = vpop.f32.mrf.mxu0
  %3042 = vmatprep.mubr.f32.mxu0 0.0
  %3043 = vmatmul.mubr.f32.gmra.mxu0 %v2673
  %v3044 = vpop.f32.mrf.mxu0
  %v3045 = vadd.f32 %v2960, %v3044
  %v3046 = vpop.f32.mrf.mxu0
  %3047 = vmatprep.mubr.f32.mxu0 0.0
  %3048 = vmatmul.mubr.f32.gmra.mxu0 %v2676
  %v3049 = vpop.f32.mrf.mxu0
  %v3050 = vadd.f32 %v2965, %v3049
  %v3051 = vpop.f32.mrf.mxu0
  %3052 = vmatprep.mubr.f32.mxu0 0.0
  %3053 = vmatmul.mubr.f32.gmra.mxu0 %v2679
  %v3054 = vpop.f32.mrf.mxu0
  %v3055 = vadd.f32 %v2970, %v3054
  %v3056 = vpop.f32.mrf.mxu0
  %3057 = vdwg.mxu0
  %v3058 = vld [vmem:[%s1 + $0x378] sm:$0xff]
  %v3059 = vld [vmem:[%s1 + $0x380] sm:$0xff]
  %v3060 = vld [vmem:[%s1 + $0x388] sm:$0xff]
  %v3061 = vld [vmem:[%s1 + $0x390] sm:$0xff]
  %3062 = vmatprep.subr.mxu0 0.0
  %3063 = vmatpush1.msra.mxu0 0.0
  %3064 = vmatprep.subr.mxu0 0.0
  %3065 = vmatpush1.msra.mxu0 0.0
  %3066 = vmatprep.subr.mxu0 0.0
  %3067 = vmatpush1.msra.mxu0 0.0
  %3068 = vmatprep.subr.mxu0 0.0
  %3069 = vmatpush1.msra.mxu0 0.0
  %3070 = vmatprep.subr.mxu0 0.0
  %3071 = vmatpush1.msra.mxu0 0.0
  %3072 = vmatprep.subr.mxu0 0.0
  %3073 = vmatpush1.msra.mxu0 0.0
  %3074 = vmatprep.subr.mxu0 0.0
  %3075 = vmatpush1.msra.mxu0 0.0
  %3076 = vmatprep.subr.mxu0 0.0
  %3077 = vmatpush1.msra.mxu0 0.0
  %3078 = vmatprep.subr.mxu0 0.0
  %3079 = vmatpush1.msra.mxu0 0.0
  %3080 = vmatprep.subr.mxu0 0.0
  %3081 = vmatpush1.msra.mxu0 0.0
  %3082 = vmatprep.subr.mxu0 0.0
  %3083 = vmatpush1.msra.mxu0 0.0
  %3084 = vmatprep.subr.mxu0 0.0
  %3085 = vmatpush1.msra.mxu0 0.0
  %3086 = vmatprep.subr.mxu0 0.0
  %3087 = vmatpush1.msra.mxu0 %v3061
  %3088 = vmatprep.subr.mxu0 0.0
  %3089 = vmatpush1.msra.mxu0 %v3060
  %3090 = vmatprep.subr.mxu0 0.0
  %3091 = vmatpush1.msra.mxu0 %v3059
  %3092 = vmatprep.subr.mxu0 0.0
  %3093 = vmatpush1.msra.mxu0 %v3058
  %3094 = vmatprep.subr.mxu0 0.0
  %3095 = vmatpush2.msra.mxu0 0.0
  %3096 = vmatprep.subr.mxu0 0.0
  %3097 = vmatpush2.msra.mxu0 0.0
  %3098 = vmatprep.subr.mxu0 0.0
  %3099 = vmatpush2.msra.mxu0 0.0
  %3100 = vmatprep.subr.mxu0 0.0
  %3101 = vmatpush2.msra.mxu0 0.0
  %3102 = vmatprep.subr.mxu0 0.0
  %3103 = vmatpush2.msra.mxu0 0.0
  %3104 = vmatprep.subr.mxu0 0.0
  %3105 = vmatpush2.msra.mxu0 0.0
  %3106 = vmatprep.subr.mxu0 0.0
  %3107 = vmatpush2.msra.mxu0 0.0
  %3108 = vmatprep.subr.mxu0 0.0
  %3109 = vmatpush2.msra.mxu0 0.0
  %3110 = vmatprep.subr.mxu0 0.0
  %3111 = vmatpush2.msra.mxu0 0.0
  %3112 = vmatprep.subr.mxu0 0.0
  %3113 = vmatpush2.msra.mxu0 0.0
  %3114 = vmatprep.subr.mxu0 0.0
  %3115 = vmatpush2.msra.mxu0 0.0
  %3116 = vmatprep.subr.mxu0 0.0
  %3117 = vmatpush2.msra.mxu0 0.0
  %3118 = vmatprep.subr.mxu0 0.0
  %3119 = vmatpush2.msra.mxu0 0.0
  %3120 = vmatprep.subr.mxu0 0.0
  %3121 = vmatpush2.msra.mxu0 0.0
  %3122 = vmatprep.subr.mxu0 0.0
  %3123 = vmatpush2.msra.mxu0 0.0
  %3124 = vmatprep.subr.mxu0 0.0
  %3125 = vmatpush2.msra.mxu0 0.0
  %3126 = vmatprep.mubr.f32.mxu0 0.0
  %3127 = vmatmul.mubr.f32.gmra.mxu0 %v2771
  %v3128 = vpop.f32.mrf.mxu0
  %v3129 = vadd.f32 0.0, %v3128
  %v3130 = vpop.f32.mrf.mxu0
  %3131 = vmatprep.mubr.f32.mxu0 0.0
  %3132 = vmatmul.mubr.f32.gmra.mxu0 %v2774
  %v3133 = vpop.f32.mrf.mxu0
  %v3134 = vadd.f32 0.0, %v3133
  %v3135 = vpop.f32.mrf.mxu0
  %3136 = vmatprep.mubr.f32.mxu0 0.0
  %3137 = vmatmul.mubr.f32.gmra.mxu0 %v2777
  %v3138 = vpop.f32.mrf.mxu0
  %v3139 = vadd.f32 0.0, %v3138
  %v3140 = vpop.f32.mrf.mxu0
  %3141 = vmatprep.mubr.f32.mxu0 0.0
  %3142 = vmatmul.mubr.f32.gmra.mxu0 %v2780
  %v3143 = vpop.f32.mrf.mxu0
  %v3144 = vadd.f32 0.0, %v3143
  %v3145 = vpop.f32.mrf.mxu0
  %3146 = vdwg.mxu0
  %v3147 = vadd.f32 %v3040, %v3129
  %v3148 = vadd.f32 %v3045, %v3134
  %v3149 = vadd.f32 %v3050, %v3139
  %v3150 = vadd.f32 %v3055, %v3144
  %v3151 = vld [vmem:[%s1 + $0x3a0] sm:$0x1]
  %v3152 = vlaneseq
  %v3153 = vshrl.u32 %v3152, 7
  %v3154 = vsub.s32 0, %v3153
  %v3155 = vrot.slane %v3151, %v3154
  %v3156 = vadd.f32 %v3147, %v3155
  %v3157 = vadd.f32 %v3148, %v3155
  %v3158 = vadd.f32 %v3149, %v3155
  %v3159 = vadd.f32 %v3150, %v3155
  %v3160 = vmul.f32 %v3156, 0.5
  %v3161 = vmul.f32 %v3157, 0.5
  %v3162 = vmul.f32 %v3158, 0.5
  %v3163 = vmul.f32 %v3159, 0.5
  %v3164 = vtanh.pop %v3160
  %v3165 = vtanh.pop %v3161
  %v3166 = vtanh.pop %v3162
  %v3167 = vtanh.pop %v3163
  %v3168 = vmul.f32 %v3164, 0.5
  %v3169 = vmul.f32 %v3165, 0.5
  %v3170 = vmul.f32 %v3166, 0.5
  %v3171 = vmul.f32 %v3167, 0.5
  %v3172 = vadd.f32 %v3168, 0.5
  %v3173 = vadd.f32 %v3169, 0.5
  %v3174 = vadd.f32 %v3170, 0.5
  %v3175 = vadd.f32 %v3171, 0.5
  %v3176 = vmul.f32 %v2876, %v3172
  %v3177 = vmul.f32 %v2877, %v3173
  %v3178 = vmul.f32 %v2878, %v3174
  %v3179 = vmul.f32 %v2879, %v3175
  %v3180 = vsel %vm90, %v3176, 0.0
  %v3181 = vsel %vm90, %v3177, 0.0
  %v3182 = vadd.f32 %v3180, %v3181
  %v3183 = vsel %vm90, %v3178, 0.0
  %v3184 = vadd.f32 %v3182, %v3183
  %v3185 = vsel %vm90, %v3179, 0.0
  %v3186 = vadd.f32 %v3184, %v3185
  %v3187 = vrot.slane %v3186, 4
  %v3188 = vadd.f32 %v3186, %v3187
  %v3189 = vrot.slane %v3188, 2
  %v3190 = vadd.f32 %v3188, %v3189
  %v3191 = vrot.slane %v3190, 1
  %v3192 = vadd.f32 %v3190, %v3191
  %v3193 = vmul.f32 %v3192, %v432
  %v3194 = vsub.f32 %v3176, %v3193
  %v3195 = vsub.f32 %v3177, %v3193
  %v3196 = vsub.f32 %v3178, %v3193
  %v3197 = vsub.f32 %v3179, %v3193
  %v3198 = vmul.f32 %v3194, %v3194
  %v3199 = vmul.f32 %v3195, %v3195
  %v3200 = vmul.f32 %v3196, %v3196
  %v3201 = vmul.f32 %v3197, %v3197
  %v3202 = vsel %vm90, %v3198, 0.0
  %v3203 = vsel %vm90, %v3199, 0.0
  %v3204 = vadd.f32 %v3202, %v3203
  %v3205 = vsel %vm90, %v3200, 0.0
  %v3206 = vadd.f32 %v3204, %v3205
  %v3207 = vsel %vm90, %v3201, 0.0
  %v3208 = vadd.f32 %v3206, %v3207
  %v3209 = vrot.slane %v3208, 4
  %v3210 = vadd.f32 %v3208, %v3209
  %v3211 = vrot.slane %v3210, 2
  %v3212 = vadd.f32 %v3210, %v3211
  %v3213 = vrot.slane %v3212, 1
  %v3214 = vadd.f32 %v3212, %v3213
  %v3215 = vmul.f32 %v3214, %v432
  %v3216 = vadd.f32 %v3215, 1e-05
  %v3217 = vrsqrt.pop %v3216
  %v3218 = vmul.f32 %v3194, %v3217
  %v3219 = vmul.f32 %v3195, %v3217
  %v3220 = vmul.f32 %v3196, %v3217
  %v3221 = vmul.f32 %v3197, %v3217
  %v3226 = vrot.slane %v3218, 7
  %v3227 = vrot.slane %v3219, 7
  %v3228 = vsel %vm48, %v3226, %v3227
  %v3229 = vrot.slane %v3220, 7
  %v3230 = vsel %vm48, %v3227, %v3229
  %v3231 = vrot.slane %v3221, 7
  %v3232 = vsel %vm48, %v3229, %v3231
  %v3237 = vsel %vm48, 0.0, %v3226
  %v3238 = vrot.slane %v3218, 1
  %v3239 = vrot.slane %v3219, 1
  %v3240 = vsel %vm61, %v3238, %v3239
  %v3241 = vrot.slane %v3220, 1
  %v3242 = vsel %vm61, %v3239, %v3241
  %v3243 = vrot.slane %v3221, 1
  %v3244 = vsel %vm61, %v3241, %v3243
  %v3249 = vsel %vm61, %v3243, 0.0
  %v3250 = vsel %vm32, 0.0, %v3237
  %v3251 = vsel %vm33, 0.0, %v3228
  %v3252 = vsel %vm34, 0.0, %v3230
  %v3253 = vsel %vm35, 0.0, %v3232
  %v3254 = vsel %vm40, 0.0, %v3240
  %v3255 = vsel %vm41, 0.0, %v3242
  %v3256 = vsel %vm42, 0.0, %v3244
  %v3257 = vsel %vm43, 0.0, %v3249
  %v3258 = vld [vmem:[%s1 + $0x3a8] sm:$0xff]
  %v3259 = vld [vmem:[%s1 + $0x3b0] sm:$0xff]
  %v3260 = vld [vmem:[%s1 + $0x3b8] sm:$0xff]
  %v3261 = vld [vmem:[%s1 + $0x3c0] sm:$0xff]
  %v3262 = vld [vmem:[%s1 + $0x3c8] sm:$0xff]
  %v3263 = vld [vmem:[%s1 + $0x3d0] sm:$0xff]
  %v3264 = vld [vmem:[%s1 + $0x3d8] sm:$0xff]
  %v3265 = vld [vmem:[%s1 + $0x3e0] sm:$0xff]
  %v3266 = vsel %vm90, %v3218, 0
  %v3268 = vsel %vm90, %v3219, 0
  %v3270 = vsel %vm90, %v3220, 0
  %v3272 = vsel %vm90, %v3221, 0
  %3274 = vmatprep.subr.mxu0 0.0
  %3275 = vmatpush1.msra.mxu0 0.0
  %3276 = vmatprep.subr.mxu0 0.0
  %3277 = vmatpush1.msra.mxu0 0.0
  %3278 = vmatprep.subr.mxu0 0.0
  %3279 = vmatpush1.msra.mxu0 0.0
  %3280 = vmatprep.subr.mxu0 0.0
  %3281 = vmatpush1.msra.mxu0 0.0
  %3282 = vmatprep.subr.mxu0 0.0
  %3283 = vmatpush1.msra.mxu0 0.0
  %3284 = vmatprep.subr.mxu0 0.0
  %3285 = vmatpush1.msra.mxu0 0.0
  %3286 = vmatprep.subr.mxu0 0.0
  %3287 = vmatpush1.msra.mxu0 0.0
  %3288 = vmatprep.subr.mxu0 0.0
  %3289 = vmatpush1.msra.mxu0 0.0
  %3290 = vmatprep.subr.mxu0 0.0
  %3291 = vmatpush1.msra.mxu0 0.0
  %3292 = vmatprep.subr.mxu0 0.0
  %3293 = vmatpush1.msra.mxu0 0.0
  %3294 = vmatprep.subr.mxu0 0.0
  %3295 = vmatpush1.msra.mxu0 0.0
  %3296 = vmatprep.subr.mxu0 0.0
  %3297 = vmatpush1.msra.mxu0 0.0
  %3298 = vmatprep.subr.mxu0 0.0
  %3299 = vmatpush1.msra.mxu0 %v3265
  %3300 = vmatprep.subr.mxu0 0.0
  %3301 = vmatpush1.msra.mxu0 %v3264
  %3302 = vmatprep.subr.mxu0 0.0
  %3303 = vmatpush1.msra.mxu0 %v3263
  %3304 = vmatprep.subr.mxu0 0.0
  %3305 = vmatpush1.msra.mxu0 %v3262
  %3306 = vmatprep.subr.mxu0 0.0
  %3307 = vmatpush2.msra.mxu0 0.0
  %3308 = vmatprep.subr.mxu0 0.0
  %3309 = vmatpush2.msra.mxu0 0.0
  %3310 = vmatprep.subr.mxu0 0.0
  %3311 = vmatpush2.msra.mxu0 0.0
  %3312 = vmatprep.subr.mxu0 0.0
  %3313 = vmatpush2.msra.mxu0 0.0
  %3314 = vmatprep.subr.mxu0 0.0
  %3315 = vmatpush2.msra.mxu0 0.0
  %3316 = vmatprep.subr.mxu0 0.0
  %3317 = vmatpush2.msra.mxu0 0.0
  %3318 = vmatprep.subr.mxu0 0.0
  %3319 = vmatpush2.msra.mxu0 0.0
  %3320 = vmatprep.subr.mxu0 0.0
  %3321 = vmatpush2.msra.mxu0 0.0
  %3322 = vmatprep.subr.mxu0 0.0
  %3323 = vmatpush2.msra.mxu0 0.0
  %3324 = vmatprep.subr.mxu0 0.0
  %3325 = vmatpush2.msra.mxu0 0.0
  %3326 = vmatprep.subr.mxu0 0.0
  %3327 = vmatpush2.msra.mxu0 0.0
  %3328 = vmatprep.subr.mxu0 0.0
  %3329 = vmatpush2.msra.mxu0 0.0
  %3330 = vmatprep.subr.mxu0 0.0
  %3331 = vmatpush2.msra.mxu0 0.0
  %3332 = vmatprep.subr.mxu0 0.0
  %3333 = vmatpush2.msra.mxu0 0.0
  %3334 = vmatprep.subr.mxu0 0.0
  %3335 = vmatpush2.msra.mxu0 0.0
  %3336 = vmatprep.subr.mxu0 0.0
  %3337 = vmatpush2.msra.mxu0 0.0
  %3338 = vmatprep.mubr.f32.mxu0 0.0
  %3339 = vmatmul.mubr.f32.gmra.mxu0 %v3266
  %v3340 = vpop.f32.mrf.mxu0
  %v3341 = vadd.f32 0.0, %v3340
  %v3342 = vpop.f32.mrf.mxu0
  %3343 = vmatprep.mubr.f32.mxu0 0.0
  %3344 = vmatmul.mubr.f32.gmra.mxu0 %v3268
  %v3345 = vpop.f32.mrf.mxu0
  %v3346 = vadd.f32 0.0, %v3345
  %v3347 = vpop.f32.mrf.mxu0
  %3348 = vmatprep.mubr.f32.mxu0 0.0
  %3349 = vmatmul.mubr.f32.gmra.mxu0 %v3270
  %v3350 = vpop.f32.mrf.mxu0
  %v3351 = vadd.f32 0.0, %v3350
  %v3352 = vpop.f32.mrf.mxu0
  %3353 = vmatprep.mubr.f32.mxu0 0.0
  %3354 = vmatmul.mubr.f32.gmra.mxu0 %v3272
  %v3355 = vpop.f32.mrf.mxu0
  %v3356 = vadd.f32 0.0, %v3355
  %v3357 = vpop.f32.mrf.mxu0
  %3358 = vdwg.mxu0
  %v3360 = vsel %vm90, %v3250, 0
  %v3363 = vsel %vm90, %v3251, 0
  %v3366 = vsel %vm90, %v3252, 0
  %v3369 = vsel %vm90, %v3253, 0
  %3371 = vmatprep.subr.mxu0 0.0
  %3372 = vmatpush1.msra.mxu0 0.0
  %3373 = vmatprep.subr.mxu0 0.0
  %3374 = vmatpush1.msra.mxu0 0.0
  %3375 = vmatprep.subr.mxu0 0.0
  %3376 = vmatpush1.msra.mxu0 0.0
  %3377 = vmatprep.subr.mxu0 0.0
  %3378 = vmatpush1.msra.mxu0 0.0
  %3379 = vmatprep.subr.mxu0 0.0
  %3380 = vmatpush1.msra.mxu0 0.0
  %3381 = vmatprep.subr.mxu0 0.0
  %3382 = vmatpush1.msra.mxu0 0.0
  %3383 = vmatprep.subr.mxu0 0.0
  %3384 = vmatpush1.msra.mxu0 0.0
  %3385 = vmatprep.subr.mxu0 0.0
  %3386 = vmatpush1.msra.mxu0 0.0
  %3387 = vmatprep.subr.mxu0 0.0
  %3388 = vmatpush1.msra.mxu0 0.0
  %3389 = vmatprep.subr.mxu0 0.0
  %3390 = vmatpush1.msra.mxu0 0.0
  %3391 = vmatprep.subr.mxu0 0.0
  %3392 = vmatpush1.msra.mxu0 0.0
  %3393 = vmatprep.subr.mxu0 0.0
  %3394 = vmatpush1.msra.mxu0 0.0
  %3395 = vmatprep.subr.mxu0 0.0
  %3396 = vmatpush1.msra.mxu0 %v3261
  %3397 = vmatprep.subr.mxu0 0.0
  %3398 = vmatpush1.msra.mxu0 %v3260
  %3399 = vmatprep.subr.mxu0 0.0
  %3400 = vmatpush1.msra.mxu0 %v3259
  %3401 = vmatprep.subr.mxu0 0.0
  %3402 = vmatpush1.msra.mxu0 %v3258
  %3403 = vmatprep.subr.mxu0 0.0
  %3404 = vmatpush2.msra.mxu0 0.0
  %3405 = vmatprep.subr.mxu0 0.0
  %3406 = vmatpush2.msra.mxu0 0.0
  %3407 = vmatprep.subr.mxu0 0.0
  %3408 = vmatpush2.msra.mxu0 0.0
  %3409 = vmatprep.subr.mxu0 0.0
  %3410 = vmatpush2.msra.mxu0 0.0
  %3411 = vmatprep.subr.mxu0 0.0
  %3412 = vmatpush2.msra.mxu0 0.0
  %3413 = vmatprep.subr.mxu0 0.0
  %3414 = vmatpush2.msra.mxu0 0.0
  %3415 = vmatprep.subr.mxu0 0.0
  %3416 = vmatpush2.msra.mxu0 0.0
  %3417 = vmatprep.subr.mxu0 0.0
  %3418 = vmatpush2.msra.mxu0 0.0
  %3419 = vmatprep.subr.mxu0 0.0
  %3420 = vmatpush2.msra.mxu0 0.0
  %3421 = vmatprep.subr.mxu0 0.0
  %3422 = vmatpush2.msra.mxu0 0.0
  %3423 = vmatprep.subr.mxu0 0.0
  %3424 = vmatpush2.msra.mxu0 0.0
  %3425 = vmatprep.subr.mxu0 0.0
  %3426 = vmatpush2.msra.mxu0 0.0
  %3427 = vmatprep.subr.mxu0 0.0
  %3428 = vmatpush2.msra.mxu0 0.0
  %3429 = vmatprep.subr.mxu0 0.0
  %3430 = vmatpush2.msra.mxu0 0.0
  %3431 = vmatprep.subr.mxu0 0.0
  %3432 = vmatpush2.msra.mxu0 0.0
  %3433 = vmatprep.subr.mxu0 0.0
  %3434 = vmatpush2.msra.mxu0 0.0
  %3435 = vmatprep.mubr.f32.mxu0 0.0
  %3436 = vmatmul.mubr.f32.gmra.mxu0 %v3360
  %v3437 = vpop.f32.mrf.mxu0
  %v3438 = vadd.f32 %v3341, %v3437
  %v3439 = vpop.f32.mrf.mxu0
  %3440 = vmatprep.mubr.f32.mxu0 0.0
  %3441 = vmatmul.mubr.f32.gmra.mxu0 %v3363
  %v3442 = vpop.f32.mrf.mxu0
  %v3443 = vadd.f32 %v3346, %v3442
  %v3444 = vpop.f32.mrf.mxu0
  %3445 = vmatprep.mubr.f32.mxu0 0.0
  %3446 = vmatmul.mubr.f32.gmra.mxu0 %v3366
  %v3447 = vpop.f32.mrf.mxu0
  %v3448 = vadd.f32 %v3351, %v3447
  %v3449 = vpop.f32.mrf.mxu0
  %3450 = vmatprep.mubr.f32.mxu0 0.0
  %3451 = vmatmul.mubr.f32.gmra.mxu0 %v3369
  %v3452 = vpop.f32.mrf.mxu0
  %v3453 = vadd.f32 %v3356, %v3452
  %v3454 = vpop.f32.mrf.mxu0
  %3455 = vdwg.mxu0
  %v3456 = vld [vmem:[%s1 + $0x3e8] sm:$0xff]
  %v3457 = vld [vmem:[%s1 + $0x3f0] sm:$0xff]
  %v3458 = vld [vmem:[%s1 + $0x3f8] sm:$0xff]
  %v3459 = vld [vmem:[%s1 + $0x400] sm:$0xff]
  %v3461 = vsel %vm90, %v3254, 0
  %v3464 = vsel %vm90, %v3255, 0
  %v3467 = vsel %vm90, %v3256, 0
  %v3470 = vsel %vm90, %v3257, 0
  %3472 = vmatprep.subr.mxu0 0.0
  %3473 = vmatpush1.msra.mxu0 0.0
  %3474 = vmatprep.subr.mxu0 0.0
  %3475 = vmatpush1.msra.mxu0 0.0
  %3476 = vmatprep.subr.mxu0 0.0
  %3477 = vmatpush1.msra.mxu0 0.0
  %3478 = vmatprep.subr.mxu0 0.0
  %3479 = vmatpush1.msra.mxu0 0.0
  %3480 = vmatprep.subr.mxu0 0.0
  %3481 = vmatpush1.msra.mxu0 0.0
  %3482 = vmatprep.subr.mxu0 0.0
  %3483 = vmatpush1.msra.mxu0 0.0
  %3484 = vmatprep.subr.mxu0 0.0
  %3485 = vmatpush1.msra.mxu0 0.0
  %3486 = vmatprep.subr.mxu0 0.0
  %3487 = vmatpush1.msra.mxu0 0.0
  %3488 = vmatprep.subr.mxu0 0.0
  %3489 = vmatpush1.msra.mxu0 0.0
  %3490 = vmatprep.subr.mxu0 0.0
  %3491 = vmatpush1.msra.mxu0 0.0
  %3492 = vmatprep.subr.mxu0 0.0
  %3493 = vmatpush1.msra.mxu0 0.0
  %3494 = vmatprep.subr.mxu0 0.0
  %3495 = vmatpush1.msra.mxu0 0.0
  %3496 = vmatprep.subr.mxu0 0.0
  %3497 = vmatpush1.msra.mxu0 %v3459
  %3498 = vmatprep.subr.mxu0 0.0
  %3499 = vmatpush1.msra.mxu0 %v3458
  %3500 = vmatprep.subr.mxu0 0.0
  %3501 = vmatpush1.msra.mxu0 %v3457
  %3502 = vmatprep.subr.mxu0 0.0
  %3503 = vmatpush1.msra.mxu0 %v3456
  %3504 = vmatprep.subr.mxu0 0.0
  %3505 = vmatpush2.msra.mxu0 0.0
  %3506 = vmatprep.subr.mxu0 0.0
  %3507 = vmatpush2.msra.mxu0 0.0
  %3508 = vmatprep.subr.mxu0 0.0
  %3509 = vmatpush2.msra.mxu0 0.0
  %3510 = vmatprep.subr.mxu0 0.0
  %3511 = vmatpush2.msra.mxu0 0.0
  %3512 = vmatprep.subr.mxu0 0.0
  %3513 = vmatpush2.msra.mxu0 0.0
  %3514 = vmatprep.subr.mxu0 0.0
  %3515 = vmatpush2.msra.mxu0 0.0
  %3516 = vmatprep.subr.mxu0 0.0
  %3517 = vmatpush2.msra.mxu0 0.0
  %3518 = vmatprep.subr.mxu0 0.0
  %3519 = vmatpush2.msra.mxu0 0.0
  %3520 = vmatprep.subr.mxu0 0.0
  %3521 = vmatpush2.msra.mxu0 0.0
  %3522 = vmatprep.subr.mxu0 0.0
  %3523 = vmatpush2.msra.mxu0 0.0
  %3524 = vmatprep.subr.mxu0 0.0
  %3525 = vmatpush2.msra.mxu0 0.0
  %3526 = vmatprep.subr.mxu0 0.0
  %3527 = vmatpush2.msra.mxu0 0.0
  %3528 = vmatprep.subr.mxu0 0.0
  %3529 = vmatpush2.msra.mxu0 0.0
  %3530 = vmatprep.subr.mxu0 0.0
  %3531 = vmatpush2.msra.mxu0 0.0
  %3532 = vmatprep.subr.mxu0 0.0
  %3533 = vmatpush2.msra.mxu0 0.0
  %3534 = vmatprep.subr.mxu0 0.0
  %3535 = vmatpush2.msra.mxu0 0.0
  %3536 = vmatprep.mubr.f32.mxu0 0.0
  %3537 = vmatmul.mubr.f32.gmra.mxu0 %v3461
  %v3538 = vpop.f32.mrf.mxu0
  %v3539 = vadd.f32 0.0, %v3538
  %v3540 = vpop.f32.mrf.mxu0
  %3541 = vmatprep.mubr.f32.mxu0 0.0
  %3542 = vmatmul.mubr.f32.gmra.mxu0 %v3464
  %v3543 = vpop.f32.mrf.mxu0
  %v3544 = vadd.f32 0.0, %v3543
  %v3545 = vpop.f32.mrf.mxu0
  %3546 = vmatprep.mubr.f32.mxu0 0.0
  %3547 = vmatmul.mubr.f32.gmra.mxu0 %v3467
  %v3548 = vpop.f32.mrf.mxu0
  %v3549 = vadd.f32 0.0, %v3548
  %v3550 = vpop.f32.mrf.mxu0
  %3551 = vmatprep.mubr.f32.mxu0 0.0
  %3552 = vmatmul.mubr.f32.gmra.mxu0 %v3470
  %v3553 = vpop.f32.mrf.mxu0
  %v3554 = vadd.f32 0.0, %v3553
  %v3555 = vpop.f32.mrf.mxu0
  %3556 = vdwg.mxu0
  %v3557 = vadd.f32 %v3438, %v3539
  %v3558 = vadd.f32 %v3443, %v3544
  %v3559 = vadd.f32 %v3448, %v3549
  %v3560 = vadd.f32 %v3453, %v3554
  %v3561 = vld [vmem:[%s1 + $0x468] sm:$0x1]
  %v3562 = vlaneseq
  %v3563 = vshrl.u32 %v3562, 7
  %v3564 = vsub.s32 0, %v3563
  %v3565 = vrot.slane %v3561, %v3564
  %v3566 = vadd.f32 %v3557, %v3565
  %v3567 = vadd.f32 %v3558, %v3565
  %v3568 = vadd.f32 %v3559, %v3565
  %v3569 = vadd.f32 %v3560, %v3565
  %v3570 = vld [vmem:[%s1 + $0x408] sm:$0xff]
  %v3571 = vld [vmem:[%s1 + $0x410] sm:$0xff]
  %v3572 = vld [vmem:[%s1 + $0x418] sm:$0xff]
  %v3573 = vld [vmem:[%s1 + $0x420] sm:$0xff]
  %v3574 = vld [vmem:[%s1 + $0x428] sm:$0xff]
  %v3575 = vld [vmem:[%s1 + $0x430] sm:$0xff]
  %v3576 = vld [vmem:[%s1 + $0x438] sm:$0xff]
  %v3577 = vld [vmem:[%s1 + $0x440] sm:$0xff]
  %3578 = vmatprep.subr.mxu0 0.0
  %3579 = vmatpush1.msra.mxu0 0.0
  %3580 = vmatprep.subr.mxu0 0.0
  %3581 = vmatpush1.msra.mxu0 0.0
  %3582 = vmatprep.subr.mxu0 0.0
  %3583 = vmatpush1.msra.mxu0 0.0
  %3584 = vmatprep.subr.mxu0 0.0
  %3585 = vmatpush1.msra.mxu0 0.0
  %3586 = vmatprep.subr.mxu0 0.0
  %3587 = vmatpush1.msra.mxu0 0.0
  %3588 = vmatprep.subr.mxu0 0.0
  %3589 = vmatpush1.msra.mxu0 0.0
  %3590 = vmatprep.subr.mxu0 0.0
  %3591 = vmatpush1.msra.mxu0 0.0
  %3592 = vmatprep.subr.mxu0 0.0
  %3593 = vmatpush1.msra.mxu0 0.0
  %3594 = vmatprep.subr.mxu0 0.0
  %3595 = vmatpush1.msra.mxu0 0.0
  %3596 = vmatprep.subr.mxu0 0.0
  %3597 = vmatpush1.msra.mxu0 0.0
  %3598 = vmatprep.subr.mxu0 0.0
  %3599 = vmatpush1.msra.mxu0 0.0
  %3600 = vmatprep.subr.mxu0 0.0
  %3601 = vmatpush1.msra.mxu0 0.0
  %3602 = vmatprep.subr.mxu0 0.0
  %3603 = vmatpush1.msra.mxu0 %v3577
  %3604 = vmatprep.subr.mxu0 0.0
  %3605 = vmatpush1.msra.mxu0 %v3576
  %3606 = vmatprep.subr.mxu0 0.0
  %3607 = vmatpush1.msra.mxu0 %v3575
  %3608 = vmatprep.subr.mxu0 0.0
  %3609 = vmatpush1.msra.mxu0 %v3574
  %3610 = vmatprep.subr.mxu0 0.0
  %3611 = vmatpush2.msra.mxu0 0.0
  %3612 = vmatprep.subr.mxu0 0.0
  %3613 = vmatpush2.msra.mxu0 0.0
  %3614 = vmatprep.subr.mxu0 0.0
  %3615 = vmatpush2.msra.mxu0 0.0
  %3616 = vmatprep.subr.mxu0 0.0
  %3617 = vmatpush2.msra.mxu0 0.0
  %3618 = vmatprep.subr.mxu0 0.0
  %3619 = vmatpush2.msra.mxu0 0.0
  %3620 = vmatprep.subr.mxu0 0.0
  %3621 = vmatpush2.msra.mxu0 0.0
  %3622 = vmatprep.subr.mxu0 0.0
  %3623 = vmatpush2.msra.mxu0 0.0
  %3624 = vmatprep.subr.mxu0 0.0
  %3625 = vmatpush2.msra.mxu0 0.0
  %3626 = vmatprep.subr.mxu0 0.0
  %3627 = vmatpush2.msra.mxu0 0.0
  %3628 = vmatprep.subr.mxu0 0.0
  %3629 = vmatpush2.msra.mxu0 0.0
  %3630 = vmatprep.subr.mxu0 0.0
  %3631 = vmatpush2.msra.mxu0 0.0
  %3632 = vmatprep.subr.mxu0 0.0
  %3633 = vmatpush2.msra.mxu0 0.0
  %3634 = vmatprep.subr.mxu0 0.0
  %3635 = vmatpush2.msra.mxu0 0.0
  %3636 = vmatprep.subr.mxu0 0.0
  %3637 = vmatpush2.msra.mxu0 0.0
  %3638 = vmatprep.subr.mxu0 0.0
  %3639 = vmatpush2.msra.mxu0 0.0
  %3640 = vmatprep.subr.mxu0 0.0
  %3641 = vmatpush2.msra.mxu0 0.0
  %3642 = vmatprep.mubr.f32.mxu0 0.0
  %3643 = vmatmul.mubr.f32.gmra.mxu0 %v3266
  %v3644 = vpop.f32.mrf.mxu0
  %v3645 = vadd.f32 0.0, %v3644
  %v3646 = vpop.f32.mrf.mxu0
  %3647 = vmatprep.mubr.f32.mxu0 0.0
  %3648 = vmatmul.mubr.f32.gmra.mxu0 %v3268
  %v3649 = vpop.f32.mrf.mxu0
  %v3650 = vadd.f32 0.0, %v3649
  %v3651 = vpop.f32.mrf.mxu0
  %3652 = vmatprep.mubr.f32.mxu0 0.0
  %3653 = vmatmul.mubr.f32.gmra.mxu0 %v3270
  %v3654 = vpop.f32.mrf.mxu0
  %v3655 = vadd.f32 0.0, %v3654
  %v3656 = vpop.f32.mrf.mxu0
  %3657 = vmatprep.mubr.f32.mxu0 0.0
  %3658 = vmatmul.mubr.f32.gmra.mxu0 %v3272
  %v3659 = vpop.f32.mrf.mxu0
  %v3660 = vadd.f32 0.0, %v3659
  %v3661 = vpop.f32.mrf.mxu0
  %3662 = vdwg.mxu0
  %3663 = vmatprep.subr.mxu0 0.0
  %3664 = vmatpush1.msra.mxu0 0.0
  %3665 = vmatprep.subr.mxu0 0.0
  %3666 = vmatpush1.msra.mxu0 0.0
  %3667 = vmatprep.subr.mxu0 0.0
  %3668 = vmatpush1.msra.mxu0 0.0
  %3669 = vmatprep.subr.mxu0 0.0
  %3670 = vmatpush1.msra.mxu0 0.0
  %3671 = vmatprep.subr.mxu0 0.0
  %3672 = vmatpush1.msra.mxu0 0.0
  %3673 = vmatprep.subr.mxu0 0.0
  %3674 = vmatpush1.msra.mxu0 0.0
  %3675 = vmatprep.subr.mxu0 0.0
  %3676 = vmatpush1.msra.mxu0 0.0
  %3677 = vmatprep.subr.mxu0 0.0
  %3678 = vmatpush1.msra.mxu0 0.0
  %3679 = vmatprep.subr.mxu0 0.0
  %3680 = vmatpush1.msra.mxu0 0.0
  %3681 = vmatprep.subr.mxu0 0.0
  %3682 = vmatpush1.msra.mxu0 0.0
  %3683 = vmatprep.subr.mxu0 0.0
  %3684 = vmatpush1.msra.mxu0 0.0
  %3685 = vmatprep.subr.mxu0 0.0
  %3686 = vmatpush1.msra.mxu0 0.0
  %3687 = vmatprep.subr.mxu0 0.0
  %3688 = vmatpush1.msra.mxu0 %v3573
  %3689 = vmatprep.subr.mxu0 0.0
  %3690 = vmatpush1.msra.mxu0 %v3572
  %3691 = vmatprep.subr.mxu0 0.0
  %3692 = vmatpush1.msra.mxu0 %v3571
  %3693 = vmatprep.subr.mxu0 0.0
  %3694 = vmatpush1.msra.mxu0 %v3570
  %3695 = vmatprep.subr.mxu0 0.0
  %3696 = vmatpush2.msra.mxu0 0.0
  %3697 = vmatprep.subr.mxu0 0.0
  %3698 = vmatpush2.msra.mxu0 0.0
  %3699 = vmatprep.subr.mxu0 0.0
  %3700 = vmatpush2.msra.mxu0 0.0
  %3701 = vmatprep.subr.mxu0 0.0
  %3702 = vmatpush2.msra.mxu0 0.0
  %3703 = vmatprep.subr.mxu0 0.0
  %3704 = vmatpush2.msra.mxu0 0.0
  %3705 = vmatprep.subr.mxu0 0.0
  %3706 = vmatpush2.msra.mxu0 0.0
  %3707 = vmatprep.subr.mxu0 0.0
  %3708 = vmatpush2.msra.mxu0 0.0
  %3709 = vmatprep.subr.mxu0 0.0
  %3710 = vmatpush2.msra.mxu0 0.0
  %3711 = vmatprep.subr.mxu0 0.0
  %3712 = vmatpush2.msra.mxu0 0.0
  %3713 = vmatprep.subr.mxu0 0.0
  %3714 = vmatpush2.msra.mxu0 0.0
  %3715 = vmatprep.subr.mxu0 0.0
  %3716 = vmatpush2.msra.mxu0 0.0
  %3717 = vmatprep.subr.mxu0 0.0
  %3718 = vmatpush2.msra.mxu0 0.0
  %3719 = vmatprep.subr.mxu0 0.0
  %3720 = vmatpush2.msra.mxu0 0.0
  %3721 = vmatprep.subr.mxu0 0.0
  %3722 = vmatpush2.msra.mxu0 0.0
  %3723 = vmatprep.subr.mxu0 0.0
  %3724 = vmatpush2.msra.mxu0 0.0
  %3725 = vmatprep.subr.mxu0 0.0
  %3726 = vmatpush2.msra.mxu0 0.0
  %3727 = vmatprep.mubr.f32.mxu0 0.0
  %3728 = vmatmul.mubr.f32.gmra.mxu0 %v3360
  %v3729 = vpop.f32.mrf.mxu0
  %v3730 = vadd.f32 %v3645, %v3729
  %v3731 = vpop.f32.mrf.mxu0
  %3732 = vmatprep.mubr.f32.mxu0 0.0
  %3733 = vmatmul.mubr.f32.gmra.mxu0 %v3363
  %v3734 = vpop.f32.mrf.mxu0
  %v3735 = vadd.f32 %v3650, %v3734
  %v3736 = vpop.f32.mrf.mxu0
  %3737 = vmatprep.mubr.f32.mxu0 0.0
  %3738 = vmatmul.mubr.f32.gmra.mxu0 %v3366
  %v3739 = vpop.f32.mrf.mxu0
  %v3740 = vadd.f32 %v3655, %v3739
  %v3741 = vpop.f32.mrf.mxu0
  %3742 = vmatprep.mubr.f32.mxu0 0.0
  %3743 = vmatmul.mubr.f32.gmra.mxu0 %v3369
  %v3744 = vpop.f32.mrf.mxu0
  %v3745 = vadd.f32 %v3660, %v3744
  %v3746 = vpop.f32.mrf.mxu0
  %3747 = vdwg.mxu0
  %v3748 = vld [vmem:[%s1 + $0x448] sm:$0xff]
  %v3749 = vld [vmem:[%s1 + $0x450] sm:$0xff]
  %v3750 = vld [vmem:[%s1 + $0x458] sm:$0xff]
  %v3751 = vld [vmem:[%s1 + $0x460] sm:$0xff]
  %3752 = vmatprep.subr.mxu0 0.0
  %3753 = vmatpush1.msra.mxu0 0.0
  %3754 = vmatprep.subr.mxu0 0.0
  %3755 = vmatpush1.msra.mxu0 0.0
  %3756 = vmatprep.subr.mxu0 0.0
  %3757 = vmatpush1.msra.mxu0 0.0
  %3758 = vmatprep.subr.mxu0 0.0
  %3759 = vmatpush1.msra.mxu0 0.0
  %3760 = vmatprep.subr.mxu0 0.0
  %3761 = vmatpush1.msra.mxu0 0.0
  %3762 = vmatprep.subr.mxu0 0.0
  %3763 = vmatpush1.msra.mxu0 0.0
  %3764 = vmatprep.subr.mxu0 0.0
  %3765 = vmatpush1.msra.mxu0 0.0
  %3766 = vmatprep.subr.mxu0 0.0
  %3767 = vmatpush1.msra.mxu0 0.0
  %3768 = vmatprep.subr.mxu0 0.0
  %3769 = vmatpush1.msra.mxu0 0.0
  %3770 = vmatprep.subr.mxu0 0.0
  %3771 = vmatpush1.msra.mxu0 0.0
  %3772 = vmatprep.subr.mxu0 0.0
  %3773 = vmatpush1.msra.mxu0 0.0
  %3774 = vmatprep.subr.mxu0 0.0
  %3775 = vmatpush1.msra.mxu0 0.0
  %3776 = vmatprep.subr.mxu0 0.0
  %3777 = vmatpush1.msra.mxu0 %v3751
  %3778 = vmatprep.subr.mxu0 0.0
  %3779 = vmatpush1.msra.mxu0 %v3750
  %3780 = vmatprep.subr.mxu0 0.0
  %3781 = vmatpush1.msra.mxu0 %v3749
  %3782 = vmatprep.subr.mxu0 0.0
  %3783 = vmatpush1.msra.mxu0 %v3748
  %3784 = vmatprep.subr.mxu0 0.0
  %3785 = vmatpush2.msra.mxu0 0.0
  %3786 = vmatprep.subr.mxu0 0.0
  %3787 = vmatpush2.msra.mxu0 0.0
  %3788 = vmatprep.subr.mxu0 0.0
  %3789 = vmatpush2.msra.mxu0 0.0
  %3790 = vmatprep.subr.mxu0 0.0
  %3791 = vmatpush2.msra.mxu0 0.0
  %3792 = vmatprep.subr.mxu0 0.0
  %3793 = vmatpush2.msra.mxu0 0.0
  %3794 = vmatprep.subr.mxu0 0.0
  %3795 = vmatpush2.msra.mxu0 0.0
  %3796 = vmatprep.subr.mxu0 0.0
  %3797 = vmatpush2.msra.mxu0 0.0
  %3798 = vmatprep.subr.mxu0 0.0
  %3799 = vmatpush2.msra.mxu0 0.0
  %3800 = vmatprep.subr.mxu0 0.0
  %3801 = vmatpush2.msra.mxu0 0.0
  %3802 = vmatprep.subr.mxu0 0.0
  %3803 = vmatpush2.msra.mxu0 0.0
  %3804 = vmatprep.subr.mxu0 0.0
  %3805 = vmatpush2.msra.mxu0 0.0
  %3806 = vmatprep.subr.mxu0 0.0
  %3807 = vmatpush2.msra.mxu0 0.0
  %3808 = vmatprep.subr.mxu0 0.0
  %3809 = vmatpush2.msra.mxu0 0.0
  %3810 = vmatprep.subr.mxu0 0.0
  %3811 = vmatpush2.msra.mxu0 0.0
  %3812 = vmatprep.subr.mxu0 0.0
  %3813 = vmatpush2.msra.mxu0 0.0
  %3814 = vmatprep.subr.mxu0 0.0
  %3815 = vmatpush2.msra.mxu0 0.0
  %3816 = vmatprep.mubr.f32.mxu0 0.0
  %3817 = vmatmul.mubr.f32.gmra.mxu0 %v3461
  %v3818 = vpop.f32.mrf.mxu0
  %v3819 = vadd.f32 0.0, %v3818
  %v3820 = vpop.f32.mrf.mxu0
  %3821 = vmatprep.mubr.f32.mxu0 0.0
  %3822 = vmatmul.mubr.f32.gmra.mxu0 %v3464
  %v3823 = vpop.f32.mrf.mxu0
  %v3824 = vadd.f32 0.0, %v3823
  %v3825 = vpop.f32.mrf.mxu0
  %3826 = vmatprep.mubr.f32.mxu0 0.0
  %3827 = vmatmul.mubr.f32.gmra.mxu0 %v3467
  %v3828 = vpop.f32.mrf.mxu0
  %v3829 = vadd.f32 0.0, %v3828
  %v3830 = vpop.f32.mrf.mxu0
  %3831 = vmatprep.mubr.f32.mxu0 0.0
  %3832 = vmatmul.mubr.f32.gmra.mxu0 %v3470
  %v3833 = vpop.f32.mrf.mxu0
  %v3834 = vadd.f32 0.0, %v3833
  %v3835 = vpop.f32.mrf.mxu0
  %3836 = vdwg.mxu0
  %v3837 = vadd.f32 %v3730, %v3819
  %v3838 = vadd.f32 %v3735, %v3824
  %v3839 = vadd.f32 %v3740, %v3829
  %v3840 = vadd.f32 %v3745, %v3834
  %v3841 = vld [vmem:[%s1 + $0x470] sm:$0x1]
  %v3842 = vlaneseq
  %v3843 = vshrl.u32 %v3842, 7
  %v3844 = vsub.s32 0, %v3843
  %v3845 = vrot.slane %v3841, %v3844
  %v3846 = vadd.f32 %v3837, %v3845
  %v3847 = vadd.f32 %v3838, %v3845
  %v3848 = vadd.f32 %v3839, %v3845
  %v3849 = vadd.f32 %v3840, %v3845
  %v3850 = vmul.f32 %v3846, 0.5
  %v3851 = vmul.f32 %v3847, 0.5
  %v3852 = vmul.f32 %v3848, 0.5
  %v3853 = vmul.f32 %v3849, 0.5
  %v3854 = vtanh.pop %v3850
  %v3855 = vtanh.pop %v3851
  %v3856 = vtanh.pop %v3852
  %v3857 = vtanh.pop %v3853
  %v3858 = vmul.f32 %v3854, 0.5
  %v3859 = vmul.f32 %v3855, 0.5
  %v3860 = vmul.f32 %v3856, 0.5
  %v3861 = vmul.f32 %v3857, 0.5
  %v3862 = vadd.f32 %v3858, 0.5
  %v3863 = vadd.f32 %v3859, 0.5
  %v3864 = vadd.f32 %v3860, 0.5
  %v3865 = vadd.f32 %v3861, 0.5
  %v3866 = vmul.f32 %v3566, %v3862
  %v3867 = vmul.f32 %v3567, %v3863
  %v3868 = vmul.f32 %v3568, %v3864
  %v3869 = vmul.f32 %v3569, %v3865
  %v3870 = vld [vmem:[%s1 + $0x478] sm:$0xff]
  %v3871 = vld [vmem:[%s1 + $0x480] sm:$0xff]
  %v3872 = vld [vmem:[%s1 + $0x488] sm:$0xff]
  %v3873 = vld [vmem:[%s1 + $0x490] sm:$0xff]
  %3874 = vmatprep.subr.mxu0 0.0
  %3875 = vmatpush1.msra.mxu0 0.0
  %3876 = vmatprep.subr.mxu0 0.0
  %3877 = vmatpush1.msra.mxu0 0.0
  %3878 = vmatprep.subr.mxu0 0.0
  %3879 = vmatpush1.msra.mxu0 0.0
  %3880 = vmatprep.subr.mxu0 0.0
  %3881 = vmatpush1.msra.mxu0 0.0
  %3882 = vmatprep.subr.mxu0 0.0
  %3883 = vmatpush1.msra.mxu0 0.0
  %3884 = vmatprep.subr.mxu0 0.0
  %3885 = vmatpush1.msra.mxu0 0.0
  %3886 = vmatprep.subr.mxu0 0.0
  %3887 = vmatpush1.msra.mxu0 0.0
  %3888 = vmatprep.subr.mxu0 0.0
  %3889 = vmatpush1.msra.mxu0 0.0
  %3890 = vmatprep.subr.mxu0 0.0
  %3891 = vmatpush1.msra.mxu0 0.0
  %3892 = vmatprep.subr.mxu0 0.0
  %3893 = vmatpush1.msra.mxu0 0.0
  %3894 = vmatprep.subr.mxu0 0.0
  %3895 = vmatpush1.msra.mxu0 0.0
  %3896 = vmatprep.subr.mxu0 0.0
  %3897 = vmatpush1.msra.mxu0 0.0
  %3898 = vmatprep.subr.mxu0 0.0
  %3899 = vmatpush1.msra.mxu0 %v3873
  %3900 = vmatprep.subr.mxu0 0.0
  %3901 = vmatpush1.msra.mxu0 %v3872
  %3902 = vmatprep.subr.mxu0 0.0
  %3903 = vmatpush1.msra.mxu0 %v3871
  %3904 = vmatprep.subr.mxu0 0.0
  %3905 = vmatpush1.msra.mxu0 %v3870
  %3906 = vmatprep.subr.mxu0 0.0
  %3907 = vmatpush2.msra.mxu0 0.0
  %3908 = vmatprep.subr.mxu0 0.0
  %3909 = vmatpush2.msra.mxu0 0.0
  %3910 = vmatprep.subr.mxu0 0.0
  %3911 = vmatpush2.msra.mxu0 0.0
  %3912 = vmatprep.subr.mxu0 0.0
  %3913 = vmatpush2.msra.mxu0 0.0
  %3914 = vmatprep.subr.mxu0 0.0
  %3915 = vmatpush2.msra.mxu0 0.0
  %3916 = vmatprep.subr.mxu0 0.0
  %3917 = vmatpush2.msra.mxu0 0.0
  %3918 = vmatprep.subr.mxu0 0.0
  %3919 = vmatpush2.msra.mxu0 0.0
  %3920 = vmatprep.subr.mxu0 0.0
  %3921 = vmatpush2.msra.mxu0 0.0
  %3922 = vmatprep.subr.mxu0 0.0
  %3923 = vmatpush2.msra.mxu0 0.0
  %3924 = vmatprep.subr.mxu0 0.0
  %3925 = vmatpush2.msra.mxu0 0.0
  %3926 = vmatprep.subr.mxu0 0.0
  %3927 = vmatpush2.msra.mxu0 0.0
  %3928 = vmatprep.subr.mxu0 0.0
  %3929 = vmatpush2.msra.mxu0 0.0
  %3930 = vmatprep.subr.mxu0 0.0
  %3931 = vmatpush2.msra.mxu0 0.0
  %3932 = vmatprep.subr.mxu0 0.0
  %3933 = vmatpush2.msra.mxu0 0.0
  %3934 = vmatprep.subr.mxu0 0.0
  %3935 = vmatpush2.msra.mxu0 0.0
  %3936 = vmatprep.subr.mxu0 0.0
  %3937 = vmatpush2.msra.mxu0 0.0
  %3938 = vmatprep.mubr.f32.mxu0 0.0
  %3939 = vmatmul.mubr.f32.gmra.mxu0 %v91
  %v3940 = vpop.f32.mrf.mxu0
  %v3941 = vadd.f32 0.0, %v3940
  %v3942 = vpop.f32.mrf.mxu0
  %3943 = vmatprep.mubr.f32.mxu0 0.0
  %3944 = vmatmul.mubr.f32.gmra.mxu0 %v93
  %v3945 = vpop.f32.mrf.mxu0
  %v3946 = vadd.f32 0.0, %v3945
  %v3947 = vpop.f32.mrf.mxu0
  %3948 = vmatprep.mubr.f32.mxu0 0.0
  %3949 = vmatmul.mubr.f32.gmra.mxu0 %v95
  %v3950 = vpop.f32.mrf.mxu0
  %v3951 = vadd.f32 0.0, %v3950
  %v3952 = vpop.f32.mrf.mxu0
  %3953 = vmatprep.mubr.f32.mxu0 0.0
  %3954 = vmatmul.mubr.f32.gmra.mxu0 %v97
  %v3955 = vpop.f32.mrf.mxu0
  %v3956 = vadd.f32 0.0, %v3955
  %v3957 = vpop.f32.mrf.mxu0
  %3958 = vdwg.mxu0
  %v3959 = vmul.f32 %v3866, %v3941
  %v3960 = vmul.f32 %v3867, %v3946
  %v3961 = vmul.f32 %v3868, %v3951
  %v3962 = vmul.f32 %v3869, %v3956
  %v3963 = vld [vmem:[%s1 + $0x498] sm:$0x1]
  %v3964 = vlaneseq
  %v3965 = vshrl.u32 %v3964, 7
  %v3966 = vsub.s32 0, %v3965
  %v3967 = vrot.slane %v3963, %v3966
  %v3968 = vmul.f32 %v11, %v3967
  %v3969 = vmul.f32 %v12, %v3967
  %v3970 = vmul.f32 %v13, %v3967
  %v3971 = vmul.f32 %v14, %v3967
  %v3972 = vadd.f32 %v3959, %v3968
  %v3973 = vadd.f32 %v3960, %v3969
  %v3974 = vadd.f32 %v3961, %v3970
  %v3975 = vadd.f32 %v3962, %v3971
  %v3976 = vsel %vm90, %v3972, 0.0
  %v3977 = vsel %vm90, %v3973, 0.0
  %v3978 = vadd.f32 %v3976, %v3977
  %v3979 = vrot.slane %v3978, 4
  %v3980 = vadd.f32 %v3978, %v3979
  %v3981 = vrot.slane %v3980, 2
  %v3982 = vadd.f32 %v3980, %v3981
  %v3983 = vrot.slane %v3982, 1
  %v3984 = vadd.f32 %v3982, %v3983
  %v3985 = vsel %vm90, %v3974, 0.0
  %v3986 = vsel %vm90, %v3975, 0.0
  %v3987 = vadd.f32 %v3985, %v3986
  %v3988 = vrot.slane %v3987, 4
  %v3989 = vadd.f32 %v3987, %v3988
  %v3990 = vrot.slane %v3989, 2
  %v3991 = vadd.f32 %v3989, %v3990
  %v3992 = vrot.slane %v3991, 1
  %v3993 = vadd.f32 %v3991, %v3992
  %v3994 = vsel %vm48, %v3984, %v3993
  %vm3995 = vcmask 254976
  %v3996 = vsel %vm3995, %v3994, 0.0
  %3997 = vadd.xlane.f32.xlu0 %v3996
  %v3998 = vpop.xlane.xlu0 %3997
  %vm3999 = vcmask 1024
  %4000 = vst.msk [vmem:[%s2] sm:$0x3] %vm3999, %v3998
  // Predicated region
  $region10: #{simplenet_forward.1} parent=0 // pred_check
    _
  $region11: #{simplenet_forward.1} parent=0 // pred_check_branch
    %4002 = sbr.rel (0) target = $region13
  $region12: #{simplenet_forward.1} parent=0 // pred_region
    _
  $region13: #{simplenet_forward.1} parent=0 // pred_fallthru
    _
  // Predicated region
  $region14: #{simplenet_forward.1} parent=0 // pred_check
    _
  $region15: #{simplenet_forward.1} parent=0 // pred_check_branch
    %4004 = sbr.rel (0) target = $region17
  $region16: #{simplenet_forward.1} parent=0 // pred_region
    _
  $region17: #{simplenet_forward.1} parent=0 // pred_fallthru
    _

</llo_original>
